<compile_context>
chip_gen: v7x
topology: tpu7x:2x2x1
jax: 0.10.0
libtpu: 0.0.40
codegen_flags: <defaults>
</compile_context>

<pallas_src>
import numpy as np
import jax
import jax.numpy as jnp
from jax.experimental import pallas as pl
from jax.experimental.pallas import tpu as pltpu


# ----------------------------------------------------------------------------
# helpers / hardware-aware budgets
# ----------------------------------------------------------------------------
def _round_up(x, m):
    return ((x + m - 1) // m) * m


def _vmem_capacity_bytes():
    try:
        info = pltpu.get_tpu_info()
        cap = getattr(info, "vmem_capacity_bytes", None)
        if cap:
            return int(cap)
    except Exception:
        pass
    return 64 << 20            # conservative fallback (v7x per-core VMEM)


_VMEM_CAP = _vmem_capacity_bytes()
# main-buffer budget used by the tile pickers, and the scoped limit we request.
_VMEM_BUDGET = min(int(_VMEM_CAP * 0.40), 40 << 20)
_VMEM_LIMIT = max(min(int(_VMEM_CAP * 0.75), 64 << 20), 32 << 20)
_MIN_M_TILES = 8               # keep both v7x TensorCores pipelined


def _mosaic_params(*semantics):
    return pltpu.CompilerParams(dimension_semantics=semantics,
                                vmem_limit_bytes=_VMEM_LIMIT)


# ----------------------------------------------------------------------------
# Pallas matmul (full-K resident-B preferred; K-tiled fallback); fused BN stats
# ----------------------------------------------------------------------------
def _pick_matmul_tiles(M, K, Nout):
    Np = _round_up(max(Nout, 128), 128)
    Kp_full = _round_up(K, 128)
    # preferred: full K, weight matrix resident (constant block index), no
    # accumulator scratch, bf16 output.
    for tm in (1024, 512, 256, 128):
        foot = (2 * tm * Kp_full * 2        # A double-buffered, bf16
                + 2 * Kp_full * Np * 2      # B (counted x2 to be safe), bf16
                + 2 * tm * Np * 2           # y out double-buffered, bf16
                + 4 * Np * 4 * 2)           # stats outputs (tiny)
        if foot <= _VMEM_BUDGET and (tm == 128 or pl.cdiv(M, tm) >= _MIN_M_TILES):
            return tm, Kp_full, None, Np
    # fallback: K-tiled accumulation; pick tk minimizing K padding waste.
    best_tk, best_pad = 128, None
    for tk in (512, 384, 256, 128):
        pad = _round_up(K, tk) - K
        if best_pad is None or pad < best_pad:
            best_tk, best_pad = tk, pad
    tk = best_tk
    Kp = _round_up(K, tk)
    for tm in (1024, 512, 256, 128):
        foot = (2 * tm * tk * 2 + 2 * tk * Np * 2 + 2 * tm * Np * 2
                + tm * Np * 4)
        if foot <= _VMEM_BUDGET and (tm == 128 or pl.cdiv(M, tm) >= _MIN_M_TILES):
            return tm, Kp, tk, Np
    return 128, Kp, tk, Np


def _mm_full_kernel(a_ref, b_ref, o_ref):
    o_ref[...] = jnp.dot(a_ref[...], b_ref[...],
                         preferred_element_type=jnp.float32).astype(o_ref.dtype)


def _mm_full_stats_kernel(a_ref, b_ref, o_ref, sum_ref, ssq_ref):
    acc = jnp.dot(a_ref[...], b_ref[...], preferred_element_type=jnp.float32)
    o_ref[...] = acc.astype(o_ref.dtype)
    # per-tile column sum / sum-of-squares (padded rows are exact zeros).
    sum_ref[...] = jnp.sum(acc, axis=0, keepdims=True)[None]
    ssq_ref[...] = jnp.sum(acc * acc, axis=0, keepdims=True)[None]


def _mm_ktiled_kernel(a_ref, b_ref, o_ref, acc_ref):
    k = pl.program_id(1)

    @pl.when(k == 0)
    def _():
        acc_ref[...] = jnp.zeros_like(acc_ref)

    acc_ref[...] += jnp.dot(a_ref[...], b_ref[...],
                            preferred_element_type=jnp.float32)

    @pl.when(k == pl.num_programs(1) - 1)
    def _():
        o_ref[...] = acc_ref[...].astype(o_ref.dtype)


def _mm_ktiled_stats_kernel(a_ref, b_ref, o_ref, sum_ref, ssq_ref, acc_ref):
    k = pl.program_id(1)

    @pl.when(k == 0)
    def _():
        acc_ref[...] = jnp.zeros_like(acc_ref)

    acc_ref[...] += jnp.dot(a_ref[...], b_ref[...],
                            preferred_element_type=jnp.float32)

    @pl.when(k == pl.num_programs(1) - 1)
    def _():
        acc = acc_ref[...]
        o_ref[...] = acc.astype(o_ref.dtype)
        sum_ref[...] = jnp.sum(acc, axis=0, keepdims=True)[None]
        ssq_ref[...] = jnp.sum(acc * acc, axis=0, keepdims=True)[None]


def pallas_matmul(a, b, *, with_stats=False, out_dtype=jnp.bfloat16):
    """a:(M,K) @ b:(K,N) -> (M, Np) with Np = N rounded up to 128 lanes.

    bf16 MXU operands, f32 accumulation, bf16 (default) output.  When
    with_stats, also returns per-column sum / sum-of-squares of the f32
    accumulator over the M valid rows (fused BatchNorm batch statistics)."""
    M, K = a.shape
    K2, Nout = b.shape
    assert K == K2
    tm, Kp, tk, Np = _pick_matmul_tiles(M, K, Nout)
    Mp = _round_up(M, tm)

    a = a.astype(jnp.bfloat16)
    b = b.astype(jnp.bfloat16)
    if (Mp, Kp) != (M, K):
        a = jnp.pad(a, ((0, Mp - M), (0, Kp - K)))
    if (Kp, Np) != (K, Nout):
        b = jnp.pad(b, ((0, Kp - K), (0, Np - Nout)))
    nm = Mp // tm

    if tk is None:
        # full-K path: B resident in VMEM (constant index map -> fetched once),
        # no K grid axis, no accumulator scratch.
        in_specs = [pl.BlockSpec((tm, Kp), lambda i: (i, 0)),
                    pl.BlockSpec((Kp, Np), lambda i: (0, 0))]
        out_spec_y = pl.BlockSpec((tm, Np), lambda i: (i, 0))
        stat_spec = pl.BlockSpec((1, 1, Np), lambda i: (i, 0, 0))
        cparams = _mosaic_params("parallel")
        if with_stats:
            y, psum, pssq = pl.pallas_call(
                _mm_full_stats_kernel,
                out_shape=(jax.ShapeDtypeStruct((Mp, Np), out_dtype),
                           jax.ShapeDtypeStruct((nm, 1, Np), jnp.float32),
                           jax.ShapeDtypeStruct((nm, 1, Np), jnp.float32)),
                grid=(nm,),
                in_specs=in_specs,
                out_specs=(out_spec_y, stat_spec, stat_spec),
                compiler_params=cparams,
            )(a, b)
            return y[:M], jnp.sum(psum, axis=(0, 1)), jnp.sum(pssq, axis=(0, 1))
        y = pl.pallas_call(
            _mm_full_kernel,
            out_shape=jax.ShapeDtypeStruct((Mp, Np), out_dtype),
            grid=(nm,),
            in_specs=in_specs,
            out_specs=out_spec_y,
            compiler_params=cparams,
        )(a, b)
        return y[:M]

    # K-tiled fallback (large K only).
    nk = Kp // tk
    in_specs = [pl.BlockSpec((tm, tk), lambda i, k: (i, k)),
                pl.BlockSpec((tk, Np), lambda i, k: (k, 0))]
    out_spec_y = pl.BlockSpec((tm, Np), lambda i, k: (i, 0))
    stat_spec = pl.BlockSpec((1, 1, Np), lambda i, k: (i, 0, 0))
    scratch = [pltpu.VMEM((tm, Np), jnp.float32)]
    cparams = _mosaic_params("parallel", "arbitrary")
    if with_stats:
        y, psum, pssq = pl.pallas_call(
            _mm_ktiled_stats_kernel,
            out_shape=(jax.ShapeDtypeStruct((Mp, Np), out_dtype),
                       jax.ShapeDtypeStruct((nm, 1, Np), jnp.float32),
                       jax.ShapeDtypeStruct((nm, 1, Np), jnp.float32)),
            grid=(nm, nk),
            in_specs=in_specs,
            out_specs=(out_spec_y, stat_spec, stat_spec),
            scratch_shapes=scratch,
            compiler_params=cparams,
        )(a, b)
        return y[:M], jnp.sum(psum, axis=(0, 1)), jnp.sum(pssq, axis=(0, 1))
    y = pl.pallas_call(
        _mm_ktiled_kernel,
        out_shape=jax.ShapeDtypeStruct((Mp, Np), out_dtype),
        grid=(nm, nk),
        in_specs=in_specs,
        out_specs=out_spec_y,
        scratch_shapes=scratch,
        compiler_params=cparams,
    )(a, b)
    return y[:M]


# ----------------------------------------------------------------------------
# 3x3x3 offset conv as a Pallas kernel (no im2col slab in HBM)
# ----------------------------------------------------------------------------
def pallas_offset_conv3x3x3(xp_bf, w_offset):
    """3x3x3 'same' conv (stride 1) over the zero-padded channels-last input.

    xp_bf: (b, H, W, D, c) bf16 with H=h+2, W=w+2, D=d+2 (padding=1 applied).
    w_offset: (3*27, c, 3, 3, 3) PyTorch Conv3d weight (f32).
    Returns offset (b, h, w, d, 81) f32.

    The halo in h is handled by three shifted h-plane BlockSpecs on the same
    input array; the w/d taps are static slices of the VMEM-resident flattened
    (W*D, c) plane, accumulated over 27 small MXU matmuls.
    """
    b, H, W, D, c = xp_bf.shape
    h, w_, d = H - 2, W - 2, D - 2
    N = 27
    Np = 128                                   # 3N = 81 padded to 128 lanes
    c8 = max(8, _round_up(c, 8))

    # tap-major weights (27, c8, Np) bf16, zero padded.
    w_taps = jnp.transpose(w_offset.reshape(3 * N, c, N), (2, 1, 0))   # (27,c,81)
    w_taps = jnp.pad(w_taps, ((0, 0), (0, c8 - c), (0, Np - 3 * N)))
    w_taps = w_taps.astype(jnp.bfloat16)

    # flatten (W, D); pad a few rows so every tap window stays in range, and
    # pad channels to a multiple of 8 for clean layouts.
    PADR = 8
    L = w_ * D                                  # plane-local rows (x*D + z)
    R = W * D + PADR
    xp_fl = xp_bf.reshape(b, H, W * D, c)
    xp_fl = jnp.pad(xp_fl, ((0, 0), (0, 0), (0, PADR), (0, c8 - c)))

    def kernel(p0_ref, p1_ref, p2_ref, w_ref, o_ref):
        acc = jnp.zeros((L, Np), jnp.float32)
        for di, pref in enumerate((p0_ref, p1_ref, p2_ref)):
            plane = pref[...]                                   # (R, c8) bf16
            for dj in range(3):
                for dk in range(3):
                    t = di * 9 + dj * 3 + dk
                    start = dj * D + dk
                    a = plane[start:start + L, :]               # (L, c8)
                    acc = acc + jnp.dot(a, w_ref[t],
                                        preferred_element_type=jnp.float32)
        o_ref[...] = acc

    plane_spec0 = pl.BlockSpec((None, None, R, c8), lambda bi, hi: (bi, hi, 0, 0))
    plane_spec1 = pl.BlockSpec((None, None, R, c8), lambda bi, hi: (bi, hi + 1, 0, 0))
    plane_spec2 = pl.BlockSpec((None, None, R, c8), lambda bi, hi: (bi, hi + 2, 0, 0))
    w_spec = pl.BlockSpec((N, c8, Np), lambda bi, hi: (0, 0, 0))   # resident
    out_spec = pl.BlockSpec((None, None, L, Np), lambda bi, hi: (bi, hi, 0, 0))

    # TODO(synk): each padded h-plane is streamed 3x; a manual halo-carry
    # (P4-style double buffer) would get this to ~1x of the input bytes.
    out = pl.pallas_call(
        kernel,
        out_shape=jax.ShapeDtypeStruct((b, h, L, Np), jnp.float32),
        grid=(b, h),
        in_specs=[plane_spec0, plane_spec1, plane_spec2, w_spec],
        out_specs=out_spec,
        compiler_params=_mosaic_params("parallel", "arbitrary"),
    )(xp_fl, xp_fl, xp_fl, w_taps)

    return out.reshape(b, h, w_, D, Np)[:, :, :, :d, :3 * N]


# ----------------------------------------------------------------------------
# Fused BatchNorm-affine (+ optional residual) + ReLU (bf16 streams)
# ----------------------------------------------------------------------------
def _bn_relu_kernel(y_ref, scale_ref, bias_ref, o_ref):
    z = y_ref[...].astype(jnp.float32) * scale_ref[...] + bias_ref[...]
    o_ref[...] = jnp.maximum(z, 0.0).astype(o_ref.dtype)


def _bn_res_relu_kernel(y_ref, scale_ref, bias_ref, res_ref, o_ref):
    z = (y_ref[...].astype(jnp.float32) * scale_ref[...] + bias_ref[...]
         + res_ref[...].astype(jnp.float32))
    o_ref[...] = jnp.maximum(z, 0.0).astype(o_ref.dtype)


def _choose_tm_rows(M, C, n_streams):
    for tm in (2048, 1024, 512, 256, 128):
        foot = n_streams * 2 * tm * C * 2       # bf16 streams, double buffered
        if foot <= _VMEM_BUDGET and (tm == 128 or pl.cdiv(M, tm) >= _MIN_M_TILES):
            return tm
    return 128


def pallas_bn_relu(y, scale, bias, res=None):
    """y (and res): (M, C) bf16 with C a multiple of 128; scale/bias: (C,) f32.
    Returns (M, C) bf16.  Math in f32 registers, HBM streams in bf16."""
    M, C = y.shape
    assert C % 128 == 0
    has_res = res is not None
    tm = _choose_tm_rows(M, C, 3 if has_res else 2)
    Mp = _round_up(M, tm)
    y = y.astype(jnp.bfloat16)
    if Mp != M:
        y = jnp.pad(y, ((0, Mp - M), (0, 0)))

    row_spec = pl.BlockSpec((tm, C), lambda i: (i, 0))
    vec_spec = pl.BlockSpec((1, C), lambda i: (0, 0))
    args = [y, scale.reshape(1, C).astype(jnp.float32),
            bias.reshape(1, C).astype(jnp.float32)]
    in_specs = [row_spec, vec_spec, vec_spec]
    kernel = _bn_relu_kernel
    if has_res:
        res = res.astype(jnp.bfloat16)
        if Mp != M:
            res = jnp.pad(res, ((0, Mp - M), (0, 0)))
        args.append(res)
        in_specs.append(row_spec)
        kernel = _bn_res_relu_kernel

    out = pl.pallas_call(
        kernel,
        out_shape=jax.ShapeDtypeStruct((Mp, C), jnp.bfloat16),
        grid=(Mp // tm,),
        in_specs=in_specs,
        out_specs=row_spec,
        compiler_params=_mosaic_params("parallel"),
    )(*args)
    return out[:M]


# ----------------------------------------------------------------------------
# DeformConv3d forward (kernel_size=3, stride=1, padding=1, bias=False)
# ----------------------------------------------------------------------------
def deform_conv3d(x_cl, w_offset, w_point, *, with_stats=True, ks=3, padding=1):
    """x_cl: (b, h, w, d, c) channels-last (bf16 or f32).
    w_offset: (3*ks^3, c, ks, ks, ks) PyTorch Conv3d weight layout.
    w_point : (out, c*ks^3)           (1x1x1 conv weight, in-channel = ch*N + t)
    Returns (M, Np) bf16 with out channels lane-padded to a multiple of 128,
    plus per-column sum / sum-of-squares (f32) when with_stats."""
    assert ks == 3 and padding == 1
    b, h, w_, d, c = x_cl.shape
    N = ks ** 3
    M = b * h * w_ * d
    out_ch = w_point.shape[0]

    x_bf = x_cl.astype(jnp.bfloat16)
    xp_bf = jnp.pad(x_bf, ((0, 0), (padding, padding), (padding, padding),
                           (padding, padding), (0, 0)))
    H, W, D = h + 2 * padding, w_ + 2 * padding, d + 2 * padding

    # ---- offset = offset_conv_kernel(x): Pallas 3x3x3 conv, no im2col -------
    offset = pallas_offset_conv3x3x3(xp_bf, w_offset)    # (b,h,w,d,3N) f32

    # ---- sampling positions p = p_0 + p_n + offset (padded coordinates) -----
    rng = np.arange(-(ks - 1) // 2, (ks - 1) // 2 + 1)
    pnx, pny, pnz = np.meshgrid(rng, rng, rng, indexing="ij")
    p_n = np.concatenate([pnx.flatten(), pny.flatten(), pnz.flatten()]
                         ).reshape(1, 1, 1, 1, 3 * N).astype(np.float32)
    p0x, p0y, p0z = np.meshgrid(np.arange(1, h + 1), np.arange(1, w_ + 1),
                                np.arange(1, d + 1), indexing="ij")
    p_0 = np.concatenate(
        [np.broadcast_to(p0x[..., None], (h, w_, d, N)),
         np.broadcast_to(p0y[..., None], (h, w_, d, N)),
         np.broadcast_to(p0z[..., None], (h, w_, d, N))], axis=-1
    ).reshape(1, h, w_, d, 3 * N).astype(np.float32)

    p = jnp.asarray(p_0) + jnp.asarray(p_n) + offset      # (b, h, w, d, 3N)

    def clamp3(q):
        return jnp.concatenate([jnp.clip(q[..., :N], 0, H - 1),
                                jnp.clip(q[..., N:2 * N], 0, W - 1),
                                jnp.clip(q[..., 2 * N:], 0, D - 1)], axis=-1)

    q_sss = clamp3(jnp.floor(p)).astype(jnp.int32)
    q_lll = clamp3(jnp.floor(p) + 1.0).astype(jnp.int32)

    def combo(qa, qb, qc):
        return jnp.concatenate([qa[..., :N], qb[..., N:2 * N], qc[..., 2 * N:]],
                               axis=-1)

    q_ssl = combo(q_sss, q_sss, q_lll)
    q_sls = combo(q_sss, q_lll, q_sss)
    q_sll = combo(q_sss, q_lll, q_lll)
    q_lss = combo(q_lll, q_sss, q_sss)
    q_lsl = combo(q_lll, q_sss, q_lll)
    q_lls = combo(q_lll, q_lll, q_sss)

    mask = jnp.concatenate([
        jnp.logical_or(p[..., :N] < padding, p[..., :N] > H - 1 - padding),
        jnp.logical_or(p[..., N:2 * N] < padding,
                       p[..., N:2 * N] > W - 1 - padding),
        jnp.logical_or(p[..., 2 * N:] < padding,
                       p[..., 2 * N:] > D - 1 - padding),
    ], axis=-1).astype(p.dtype)
    floor_p = jnp.floor(p)
    p = p * (1 - mask) + floor_p * mask
    p = clamp3(p)

    def g(q, sx, sy, sz):
        qf = q.astype(p.dtype)
        return ((1 + sx * (qf[..., :N] - p[..., :N]))
                * (1 + sy * (qf[..., N:2 * N] - p[..., N:2 * N]))
                * (1 + sz * (qf[..., 2 * N:] - p[..., 2 * N:])))

    corners = (q_sss, q_lll, q_ssl, q_sls, q_sll, q_lss, q_lsl, q_lls)
    signs = ((+1, +1, +1), (-1, -1, -1), (+1, +1, -1), (+1, -1, +1),
             (+1, -1, -1), (-1, +1, +1), (-1, +1, -1), (-1, -1, +1))
    weights = jnp.stack([g(q, *s) for q, s in zip(corners, signs)], axis=-1)
    # weights: (b, h, w, d, N, 8) f32

    # ---- single consolidated gather of all 8 trilinear corners (bf16) -------
    # TODO(synk): still a plain-JAX (XLA) gather; a Pallas version would need
    # per-voxel DMA gathers (scalar-prefetch index tables) feeding the matmul.
    def flat_idx(q):
        return q[..., :N] * (W * D) + q[..., N:2 * N] * D + q[..., 2 * N:]

    idx = jnp.stack([flat_idx(q) for q in corners], axis=-1)  # (b,h,w,d,N,8)
    xp_flat = xp_bf.reshape(b, H * W * D, c)
    vals = jnp.take_along_axis(
        xp_flat, idx.reshape(b, h * w_ * d * N * 8, 1), axis=1)
    vals = vals.reshape(b, h, w_, d, N, 8, c)                  # bf16 (no f32 copy)

    # trilinear combine: f32 accumulation via promotion, stored bf16, flattened
    # straight into the (M, N*c) matmul operand (no x_offset HBM round-trip in
    # f32, no NCDHW round-trip).
    x_off = jnp.sum(weights[..., None] * vals, axis=5)         # (b,h,w,d,N,c) f32
    a_mat = x_off.reshape(M, N * c).astype(jnp.bfloat16)

    # ---- 1x1x1 conv_kernel: resident-B MXU matmul; BN stats fused -----------
    w_pt_mat = jnp.transpose(w_point.reshape(out_ch, c, N), (2, 1, 0)
                             ).reshape(N * c, out_ch)
    return pallas_matmul(a_mat, w_pt_mat, with_stats=with_stats)


# ----------------------------------------------------------------------------
# DeformBasicBlock forward
# ----------------------------------------------------------------------------
def deform_basic_block(x, params, eps=1e-5):
    """x: (b, inplanes, h, w, d) f32 -> (b, planes, h, w, d) f32."""
    b, c, h, w_, d = x.shape
    M = b * h * w_ * d
    planes = params["gamma1"].shape[0]
    assert c == planes, "identity residual requires inplanes == planes"

    # single layout change + bf16 cast at entry; channels-last inside
    x_cl = jnp.transpose(x, (0, 2, 3, 4, 1)).astype(jnp.bfloat16)  # (b,h,w,d,c)

    def bn_coeffs(col_sum, col_ssq, gamma, beta, Cp):
        # TODO(synk): single-pass E[x^2]-E[x]^2 in f32; switch to a mean-shifted
        # / Welford combine if M or activation magnitudes become large.
        mean = col_sum / M
        var = jnp.maximum(col_ssq / M - mean * mean, 0.0)  # biased (training BN)
        gamma_p = jnp.pad(gamma, (0, Cp - gamma.shape[0]))
        beta_p = jnp.pad(beta, (0, Cp - beta.shape[0]))
        scale = gamma_p / jnp.sqrt(var + eps)
        return scale, beta_p - mean * scale

    # conv1 -> bn1 -> relu (stats fused in the matmul epilogue, no residual)
    y1, s1, ss1 = deform_conv3d(x_cl, params["w_off1"], params["w_pt1"])
    Cp = y1.shape[1]
    scale1, bias1 = bn_coeffs(s1, ss1, params["gamma1"], params["beta1"], Cp)
    out1 = pallas_bn_relu(y1, scale1, bias1)               # (M, Cp) bf16

    out1_cl = out1[:, :planes].reshape(b, h, w_, d, planes)  # bf16, no f32 trip

    # conv2 -> bn2 -> (+residual) -> relu
    y2, s2, ss2 = deform_conv3d(out1_cl, params["w_off2"], params["w_pt2"])
    scale2, bias2 = bn_coeffs(s2, ss2, params["gamma2"], params["beta2"], Cp)
    res = x_cl.reshape(M, c)
    if Cp != c:
        res = jnp.pad(res, ((0, 0), (0, Cp - c)))          # bf16; no-op when c==Cp
    out2 = pallas_bn_relu(y2, scale2, bias2, res=res)      # (M, Cp) bf16

    out = out2[:, :planes].reshape(b, h, w_, d, planes)
    return jnp.transpose(out, (0, 4, 1, 2, 3)).astype(jnp.float32)


def init_params(key, inplanes, planes, ks=3):
    N = ks ** 3
    keys = jax.random.split(key, 6)
    return {
        # offset_conv_kernel: Conv3d(in, 3N, k=3, pad=1, bias=False)
        "w_off1": 0.02 * jax.random.normal(keys[0], (3 * N, inplanes, ks, ks, ks),
                                           jnp.float32),
        # conv_kernel: Conv3d(in*N, out, k=1, bias=False), flattened (out, c*N)
        "w_pt1": 0.05 * jax.random.normal(keys[1], (planes, inplanes * N),
                                          jnp.float32),
        "w_off2": 0.02 * jax.random.normal(keys[2], (3 * N, planes, ks, ks, ks),
                                           jnp.float32),
        "w_pt2": 0.05 * jax.random.normal(keys[3], (planes, planes * N),
                                          jnp.float32),
        "gamma1": 1.0 + 0.1 * jax.random.normal(keys[4], (planes,), jnp.float32),
        "beta1": jnp.zeros((planes,), jnp.float32),
        "gamma2": 1.0 + 0.1 * jax.random.normal(keys[5], (planes,), jnp.float32),
        "beta2": jnp.zeros((planes,), jnp.float32),
    }


if __name__ == "__main__":
    key = jax.random.PRNGKey(0)
    k_x, k_p = jax.random.split(key)

    inplanes = planes = 4      # identity residual requires inplanes == planes
    b, h, w, d = 2, 8, 8, 8
    x = jax.random.normal(k_x, (b, inplanes, h, w, d), jnp.float32)
    params = init_params(k_p, inplanes, planes)

    fwd = jax.jit(deform_basic_block)
    out = jax.block_until_ready(fwd(x, params))

    assert out.shape == (b, planes, h, w, d)
    assert bool(jnp.all(jnp.isfinite(out)))
    assert bool(jnp.all(out >= 0.0))   # final ReLU
    print("KERNEL_OK")
</pallas_src>

<mosaic_0001>
module attributes {stable_mosaic.version = 11 : i64} {
  func.func @kernel(%arg0: i32, %arg1: i32, %arg2: memref<1x1x108x8xbf16, #tpu.memory_space<vmem>>, %arg3: memref<1x1x108x8xbf16, #tpu.memory_space<vmem>>, %arg4: memref<1x1x108x8xbf16, #tpu.memory_space<vmem>>, %arg5: memref<27x8x128xbf16, #tpu.memory_space<vmem>>, %arg6: memref<1x1x80x128xf32, #tpu.memory_space<vmem>>) attributes {dimension_semantics = [#tpu.dimension_semantics<parallel>, #tpu.dimension_semantics<arbitrary>], iteration_bounds = array<i64: 2, 8>, scalar_prefetch = 0 : i64, scratch_operands = 0 : i64, tpu.core_type = #tpu.core_type<tc>, window_params = [{transform_indices = @transform_0, window_bounds = array<i64: 1, 1, 108, 8>}, {transform_indices = @transform_1, window_bounds = array<i64: 1, 1, 108, 8>}, {transform_indices = @transform_2, window_bounds = array<i64: 1, 1, 108, 8>}, {pipeline_mode = #tpu.pipeline_mode<synchronous>, transform_indices = @transform_3, window_bounds = array<i64: 27, 8, 128>}, {transform_indices = @transform_4, window_bounds = array<i64: 1, 1, 80, 128>}]} {
    %cst = arith.constant 0.000000e+00 : f32
    %0 = vector.broadcast %cst : f32 to vector<80x128xf32>
    %c0 = arith.constant 0 : index
    %c0_0 = arith.constant 0 : index
    %c0_1 = arith.constant 0 : index
    %c0_2 = arith.constant 0 : index
    %1 = vector.load %arg2[%c0, %c0_0, %c0_1, %c0_2] : memref<1x1x108x8xbf16, #tpu.memory_space<vmem>>, vector<1x1x108x8xbf16>
    %2 = vector.shape_cast %1 : vector<1x1x108x8xbf16> to vector<108x8xbf16>
    %3 = vector.extract_strided_slice %2 {offsets = [0, 0], sizes = [80, 8], strides = [1, 1]} : vector<108x8xbf16> to vector<80x8xbf16>
    %c0_3 = arith.constant 0 : index
    %c0_4 = arith.constant 0 : index
    %c0_5 = arith.constant 0 : index
    %4 = vector.load %arg5[%c0_3, %c0_4, %c0_5] : memref<27x8x128xbf16, #tpu.memory_space<vmem>>, vector<1x8x128xbf16>
    %5 = vector.shape_cast %4 : vector<1x8x128xbf16> to vector<8x128xbf16>
    %cst_6 = arith.constant dense<0.000000e+00> : vector<80x128xf32>
    %6 = tpu.matmul %3, %5, %cst_6 {dimension_numbers = #tpu.dot_dimension_numbers<[1], [0], [0], [1], [0, 0, 1, 1], [], []>} : vector<80x8xbf16>, vector<8x128xbf16>, vector<80x128xf32> -> vector<80x128xf32>
    %7 = arith.addf %0, %6 : vector<80x128xf32>
    %8 = vector.extract_strided_slice %2 {offsets = [1, 0], sizes = [80, 8], strides = [1, 1]} : vector<108x8xbf16> to vector<80x8xbf16>
    %c1 = arith.constant 1 : index
    %c0_7 = arith.constant 0 : index
    %c0_8 = arith.constant 0 : index
    %9 = vector.load %arg5[%c1, %c0_7, %c0_8] : memref<27x8x128xbf16, #tpu.memory_space<vmem>>, vector<1x8x128xbf16>
    %10 = vector.shape_cast %9 : vector<1x8x128xbf16> to vector<8x128xbf16>
    %cst_9 = arith.constant dense<0.000000e+00> : vector<80x128xf32>
    %11 = tpu.matmul %8, %10, %cst_9 {dimension_numbers = #tpu.dot_dimension_numbers<[1], [0], [0], [1], [0, 0, 1, 1], [], []>} : vector<80x8xbf16>, vector<8x128xbf16>, vector<80x128xf32> -> vector<80x128xf32>
    %12 = arith.addf %7, %11 : vector<80x128xf32>
    %13 = vector.extract_strided_slice %2 {offsets = [2, 0], sizes = [80, 8], strides = [1, 1]} : vector<108x8xbf16> to vector<80x8xbf16>
    %c2 = arith.constant 2 : index
    %c0_10 = arith.constant 0 : index
    %c0_11 = arith.constant 0 : index
    %14 = vector.load %arg5[%c2, %c0_10, %c0_11] : memref<27x8x128xbf16, #tpu.memory_space<vmem>>, vector<1x8x128xbf16>
    %15 = vector.shape_cast %14 : vector<1x8x128xbf16> to vector<8x128xbf16>
    %cst_12 = arith.constant dense<0.000000e+00> : vector<80x128xf32>
    %16 = tpu.matmul %13, %15, %cst_12 {dimension_numbers = #tpu.dot_dimension_numbers<[1], [0], [0], [1], [0, 0, 1, 1], [], []>} : vector<80x8xbf16>, vector<8x128xbf16>, vector<80x128xf32> -> vector<80x128xf32>
    %17 = arith.addf %12, %16 : vector<80x128xf32>
    %18 = vector.extract_strided_slice %2 {offsets = [10, 0], sizes = [80, 8], strides = [1, 1]} : vector<108x8xbf16> to vector<80x8xbf16>
    %c3 = arith.constant 3 : index
    %c0_13 = arith.constant 0 : index
    %c0_14 = arith.constant 0 : index
    %19 = vector.load %arg5[%c3, %c0_13, %c0_14] : memref<27x8x128xbf16, #tpu.memory_space<vmem>>, vector<1x8x128xbf16>
    %20 = vector.shape_cast %19 : vector<1x8x128xbf16> to vector<8x128xbf16>
    %cst_15 = arith.constant dense<0.000000e+00> : vector<80x128xf32>
    %21 = tpu.matmul %18, %20, %cst_15 {dimension_numbers = #tpu.dot_dimension_numbers<[1], [0], [0], [1], [0, 0, 1, 1], [], []>} : vector<80x8xbf16>, vector<8x128xbf16>, vector<80x128xf32> -> vector<80x128xf32>
    %22 = arith.addf %17, %21 : vector<80x128xf32>
    %23 = vector.extract_strided_slice %2 {offsets = [11, 0], sizes = [80, 8], strides = [1, 1]} : vector<108x8xbf16> to vector<80x8xbf16>
    %c4 = arith.constant 4 : index
    %c0_16 = arith.constant 0 : index
    %c0_17 = arith.constant 0 : index
    %24 = vector.load %arg5[%c4, %c0_16, %c0_17] : memref<27x8x128xbf16, #tpu.memory_space<vmem>>, vector<1x8x128xbf16>
    %25 = vector.shape_cast %24 : vector<1x8x128xbf16> to vector<8x128xbf16>
    %cst_18 = arith.constant dense<0.000000e+00> : vector<80x128xf32>
    %26 = tpu.matmul %23, %25, %cst_18 {dimension_numbers = #tpu.dot_dimension_numbers<[1], [0], [0], [1], [0, 0, 1, 1], [], []>} : vector<80x8xbf16>, vector<8x128xbf16>, vector<80x128xf32> -> vector<80x128xf32>
    %27 = arith.addf %22, %26 : vector<80x128xf32>
    %28 = vector.extract_strided_slice %2 {offsets = [12, 0], sizes = [80, 8], strides = [1, 1]} : vector<108x8xbf16> to vector<80x8xbf16>
    %c5 = arith.constant 5 : index
    %c0_19 = arith.constant 0 : index
    %c0_20 = arith.constant 0 : index
    %29 = vector.load %arg5[%c5, %c0_19, %c0_20] : memref<27x8x128xbf16, #tpu.memory_space<vmem>>, vector<1x8x128xbf16>
    %30 = vector.shape_cast %29 : vector<1x8x128xbf16> to vector<8x128xbf16>
    %cst_21 = arith.constant dense<0.000000e+00> : vector<80x128xf32>
    %31 = tpu.matmul %28, %30, %cst_21 {dimension_numbers = #tpu.dot_dimension_numbers<[1], [0], [0], [1], [0, 0, 1, 1], [], []>} : vector<80x8xbf16>, vector<8x128xbf16>, vector<80x128xf32> -> vector<80x128xf32>
    %32 = arith.addf %27, %31 : vector<80x128xf32>
    %33 = vector.extract_strided_slice %2 {offsets = [20, 0], sizes = [80, 8], strides = [1, 1]} : vector<108x8xbf16> to vector<80x8xbf16>
    %c6 = arith.constant 6 : index
    %c0_22 = arith.constant 0 : index
    %c0_23 = arith.constant 0 : index
    %34 = vector.load %arg5[%c6, %c0_22, %c0_23] : memref<27x8x128xbf16, #tpu.memory_space<vmem>>, vector<1x8x128xbf16>
    %35 = vector.shape_cast %34 : vector<1x8x128xbf16> to vector<8x128xbf16>
    %cst_24 = arith.constant dense<0.000000e+00> : vector<80x128xf32>
    %36 = tpu.matmul %33, %35, %cst_24 {dimension_numbers = #tpu.dot_dimension_numbers<[1], [0], [0], [1], [0, 0, 1, 1], [], []>} : vector<80x8xbf16>, vector<8x128xbf16>, vector<80x128xf32> -> vector<80x128xf32>
    %37 = arith.addf %32, %36 : vector<80x128xf32>
    %38 = vector.extract_strided_slice %2 {offsets = [21, 0], sizes = [80, 8], strides = [1, 1]} : vector<108x8xbf16> to vector<80x8xbf16>
    %c7 = arith.constant 7 : index
    %c0_25 = arith.constant 0 : index
    %c0_26 = arith.constant 0 : index
    %39 = vector.load %arg5[%c7, %c0_25, %c0_26] : memref<27x8x128xbf16, #tpu.memory_space<vmem>>, vector<1x8x128xbf16>
    %40 = vector.shape_cast %39 : vector<1x8x128xbf16> to vector<8x128xbf16>
    %cst_27 = arith.constant dense<0.000000e+00> : vector<80x128xf32>
    %41 = tpu.matmul %38, %40, %cst_27 {dimension_numbers = #tpu.dot_dimension_numbers<[1], [0], [0], [1], [0, 0, 1, 1], [], []>} : vector<80x8xbf16>, vector<8x128xbf16>, vector<80x128xf32> -> vector<80x128xf32>
    %42 = arith.addf %37, %41 : vector<80x128xf32>
    %43 = vector.extract_strided_slice %2 {offsets = [22, 0], sizes = [80, 8], strides = [1, 1]} : vector<108x8xbf16> to vector<80x8xbf16>
    %c8 = arith.constant 8 : index
    %c0_28 = arith.constant 0 : index
    %c0_29 = arith.constant 0 : index
    %44 = vector.load %arg5[%c8, %c0_28, %c0_29] : memref<27x8x128xbf16, #tpu.memory_space<vmem>>, vector<1x8x128xbf16>
    %45 = vector.shape_cast %44 : vector<1x8x128xbf16> to vector<8x128xbf16>
    %cst_30 = arith.constant dense<0.000000e+00> : vector<80x128xf32>
    %46 = tpu.matmul %43, %45, %cst_30 {dimension_numbers = #tpu.dot_dimension_numbers<[1], [0], [0], [1], [0, 0, 1, 1], [], []>} : vector<80x8xbf16>, vector<8x128xbf16>, vector<80x128xf32> -> vector<80x128xf32>
    %47 = arith.addf %42, %46 : vector<80x128xf32>
    %c0_31 = arith.constant 0 : index
    %c0_32 = arith.constant 0 : index
    %c0_33 = arith.constant 0 : index
    %c0_34 = arith.constant 0 : index
    %48 = vector.load %arg3[%c0_31, %c0_32, %c0_33, %c0_34] : memref<1x1x108x8xbf16, #tpu.memory_space<vmem>>, vector<1x1x108x8xbf16>
    %49 = vector.shape_cast %48 : vector<1x1x108x8xbf16> to vector<108x8xbf16>
    %50 = vector.extract_strided_slice %49 {offsets = [0, 0], sizes = [80, 8], strides = [1, 1]} : vector<108x8xbf16> to vector<80x8xbf16>
    %c9 = arith.constant 9 : index
    %c0_35 = arith.constant 0 : index
    %c0_36 = arith.constant 0 : index
    %51 = vector.load %arg5[%c9, %c0_35, %c0_36] : memref<27x8x128xbf16, #tpu.memory_space<vmem>>, vector<1x8x128xbf16>
    %52 = vector.shape_cast %51 : vector<1x8x128xbf16> to vector<8x128xbf16>
    %cst_37 = arith.constant dense<0.000000e+00> : vector<80x128xf32>
    %53 = tpu.matmul %50, %52, %cst_37 {dimension_numbers = #tpu.dot_dimension_numbers<[1], [0], [0], [1], [0, 0, 1, 1], [], []>} : vector<80x8xbf16>, vector<8x128xbf16>, vector<80x128xf32> -> vector<80x128xf32>
    %54 = arith.addf %47, %53 : vector<80x128xf32>
    %55 = vector.extract_strided_slice %49 {offsets = [1, 0], sizes = [80, 8], strides = [1, 1]} : vector<108x8xbf16> to vector<80x8xbf16>
    %c10 = arith.constant 10 : index
    %c0_38 = arith.constant 0 : index
    %c0_39 = arith.constant 0 : index
    %56 = vector.load %arg5[%c10, %c0_38, %c0_39] : memref<27x8x128xbf16, #tpu.memory_space<vmem>>, vector<1x8x128xbf16>
    %57 = vector.shape_cast %56 : vector<1x8x128xbf16> to vector<8x128xbf16>
    %cst_40 = arith.constant dense<0.000000e+00> : vector<80x128xf32>
    %58 = tpu.matmul %55, %57, %cst_40 {dimension_numbers = #tpu.dot_dimension_numbers<[1], [0], [0], [1], [0, 0, 1, 1], [], []>} : vector<80x8xbf16>, vector<8x128xbf16>, vector<80x128xf32> -> vector<80x128xf32>
    %59 = arith.addf %54, %58 : vector<80x128xf32>
    %60 = vector.extract_strided_slice %49 {offsets = [2, 0], sizes = [80, 8], strides = [1, 1]} : vector<108x8xbf16> to vector<80x8xbf16>
    %c11 = arith.constant 11 : index
    %c0_41 = arith.constant 0 : index
    %c0_42 = arith.constant 0 : index
    %61 = vector.load %arg5[%c11, %c0_41, %c0_42] : memref<27x8x128xbf16, #tpu.memory_space<vmem>>, vector<1x8x128xbf16>
    %62 = vector.shape_cast %61 : vector<1x8x128xbf16> to vector<8x128xbf16>
    %cst_43 = arith.constant dense<0.000000e+00> : vector<80x128xf32>
    %63 = tpu.matmul %60, %62, %cst_43 {dimension_numbers = #tpu.dot_dimension_numbers<[1], [0], [0], [1], [0, 0, 1, 1], [], []>} : vector<80x8xbf16>, vector<8x128xbf16>, vector<80x128xf32> -> vector<80x128xf32>
    %64 = arith.addf %59, %63 : vector<80x128xf32>
    %65 = vector.extract_strided_slice %49 {offsets = [10, 0], sizes = [80, 8], strides = [1, 1]} : vector<108x8xbf16> to vector<80x8xbf16>
    %c12 = arith.constant 12 : index
    %c0_44 = arith.constant 0 : index
    %c0_45 = arith.constant 0 : index
    %66 = vector.load %arg5[%c12, %c0_44, %c0_45] : memref<27x8x128xbf16, #tpu.memory_space<vmem>>, vector<1x8x128xbf16>
    %67 = vector.shape_cast %66 : vector<1x8x128xbf16> to vector<8x128xbf16>
    %cst_46 = arith.constant dense<0.000000e+00> : vector<80x128xf32>
    %68 = tpu.matmul %65, %67, %cst_46 {dimension_numbers = #tpu.dot_dimension_numbers<[1], [0], [0], [1], [0, 0, 1, 1], [], []>} : vector<80x8xbf16>, vector<8x128xbf16>, vector<80x128xf32> -> vector<80x128xf32>
    %69 = arith.addf %64, %68 : vector<80x128xf32>
    %70 = vector.extract_strided_slice %49 {offsets = [11, 0], sizes = [80, 8], strides = [1, 1]} : vector<108x8xbf16> to vector<80x8xbf16>
    %c13 = arith.constant 13 : index
    %c0_47 = arith.constant 0 : index
    %c0_48 = arith.constant 0 : index
    %71 = vector.load %arg5[%c13, %c0_47, %c0_48] : memref<27x8x128xbf16, #tpu.memory_space<vmem>>, vector<1x8x128xbf16>
    %72 = vector.shape_cast %71 : vector<1x8x128xbf16> to vector<8x128xbf16>
    %cst_49 = arith.constant dense<0.000000e+00> : vector<80x128xf32>
    %73 = tpu.matmul %70, %72, %cst_49 {dimension_numbers = #tpu.dot_dimension_numbers<[1], [0], [0], [1], [0, 0, 1, 1], [], []>} : vector<80x8xbf16>, vector<8x128xbf16>, vector<80x128xf32> -> vector<80x128xf32>
    %74 = arith.addf %69, %73 : vector<80x128xf32>
    %75 = vector.extract_strided_slice %49 {offsets = [12, 0], sizes = [80, 8], strides = [1, 1]} : vector<108x8xbf16> to vector<80x8xbf16>
    %c14 = arith.constant 14 : index
    %c0_50 = arith.constant 0 : index
    %c0_51 = arith.constant 0 : index
    %76 = vector.load %arg5[%c14, %c0_50, %c0_51] : memref<27x8x128xbf16, #tpu.memory_space<vmem>>, vector<1x8x128xbf16>
    %77 = vector.shape_cast %76 : vector<1x8x128xbf16> to vector<8x128xbf16>
    %cst_52 = arith.constant dense<0.000000e+00> : vector<80x128xf32>
    %78 = tpu.matmul %75, %77, %cst_52 {dimension_numbers = #tpu.dot_dimension_numbers<[1], [0], [0], [1], [0, 0, 1, 1], [], []>} : vector<80x8xbf16>, vector<8x128xbf16>, vector<80x128xf32> -> vector<80x128xf32>
    %79 = arith.addf %74, %78 : vector<80x128xf32>
    %80 = vector.extract_strided_slice %49 {offsets = [20, 0], sizes = [80, 8], strides = [1, 1]} : vector<108x8xbf16> to vector<80x8xbf16>
    %c15 = arith.constant 15 : index
    %c0_53 = arith.constant 0 : index
    %c0_54 = arith.constant 0 : index
    %81 = vector.load %arg5[%c15, %c0_53, %c0_54] : memref<27x8x128xbf16, #tpu.memory_space<vmem>>, vector<1x8x128xbf16>
    %82 = vector.shape_cast %81 : vector<1x8x128xbf16> to vector<8x128xbf16>
    %cst_55 = arith.constant dense<0.000000e+00> : vector<80x128xf32>
    %83 = tpu.matmul %80, %82, %cst_55 {dimension_numbers = #tpu.dot_dimension_numbers<[1], [0], [0], [1], [0, 0, 1, 1], [], []>} : vector<80x8xbf16>, vector<8x128xbf16>, vector<80x128xf32> -> vector<80x128xf32>
    %84 = arith.addf %79, %83 : vector<80x128xf32>
    %85 = vector.extract_strided_slice %49 {offsets = [21, 0], sizes = [80, 8], strides = [1, 1]} : vector<108x8xbf16> to vector<80x8xbf16>
    %c16 = arith.constant 16 : index
    %c0_56 = arith.constant 0 : index
    %c0_57 = arith.constant 0 : index
    %86 = vector.load %arg5[%c16, %c0_56, %c0_57] : memref<27x8x128xbf16, #tpu.memory_space<vmem>>, vector<1x8x128xbf16>
    %87 = vector.shape_cast %86 : vector<1x8x128xbf16> to vector<8x128xbf16>
    %cst_58 = arith.constant dense<0.000000e+00> : vector<80x128xf32>
    %88 = tpu.matmul %85, %87, %cst_58 {dimension_numbers = #tpu.dot_dimension_numbers<[1], [0], [0], [1], [0, 0, 1, 1], [], []>} : vector<80x8xbf16>, vector<8x128xbf16>, vector<80x128xf32> -> vector<80x128xf32>
    %89 = arith.addf %84, %88 : vector<80x128xf32>
    %90 = vector.extract_strided_slice %49 {offsets = [22, 0], sizes = [80, 8], strides = [1, 1]} : vector<108x8xbf16> to vector<80x8xbf16>
    %c17 = arith.constant 17 : index
    %c0_59 = arith.constant 0 : index
    %c0_60 = arith.constant 0 : index
    %91 = vector.load %arg5[%c17, %c0_59, %c0_60] : memref<27x8x128xbf16, #tpu.memory_space<vmem>>, vector<1x8x128xbf16>
    %92 = vector.shape_cast %91 : vector<1x8x128xbf16> to vector<8x128xbf16>
    %cst_61 = arith.constant dense<0.000000e+00> : vector<80x128xf32>
    %93 = tpu.matmul %90, %92, %cst_61 {dimension_numbers = #tpu.dot_dimension_numbers<[1], [0], [0], [1], [0, 0, 1, 1], [], []>} : vector<80x8xbf16>, vector<8x128xbf16>, vector<80x128xf32> -> vector<80x128xf32>
    %94 = arith.addf %89, %93 : vector<80x128xf32>
    %c0_62 = arith.constant 0 : index
    %c0_63 = arith.constant 0 : index
    %c0_64 = arith.constant 0 : index
    %c0_65 = arith.constant 0 : index
    %95 = vector.load %arg4[%c0_62, %c0_63, %c0_64, %c0_65] : memref<1x1x108x8xbf16, #tpu.memory_space<vmem>>, vector<1x1x108x8xbf16>
    %96 = vector.shape_cast %95 : vector<1x1x108x8xbf16> to vector<108x8xbf16>
    %97 = vector.extract_strided_slice %96 {offsets = [0, 0], sizes = [80, 8], strides = [1, 1]} : vector<108x8xbf16> to vector<80x8xbf16>
    %c18 = arith.constant 18 : index
    %c0_66 = arith.constant 0 : index
    %c0_67 = arith.constant 0 : index
    %98 = vector.load %arg5[%c18, %c0_66, %c0_67] : memref<27x8x128xbf16, #tpu.memory_space<vmem>>, vector<1x8x128xbf16>
    %99 = vector.shape_cast %98 : vector<1x8x128xbf16> to vector<8x128xbf16>
    %cst_68 = arith.constant dense<0.000000e+00> : vector<80x128xf32>
    %100 = tpu.matmul %97, %99, %cst_68 {dimension_numbers = #tpu.dot_dimension_numbers<[1], [0], [0], [1], [0, 0, 1, 1], [], []>} : vector<80x8xbf16>, vector<8x128xbf16>, vector<80x128xf32> -> vector<80x128xf32>
    %101 = arith.addf %94, %100 : vector<80x128xf32>
    %102 = vector.extract_strided_slice %96 {offsets = [1, 0], sizes = [80, 8], strides = [1, 1]} : vector<108x8xbf16> to vector<80x8xbf16>
    %c19 = arith.constant 19 : index
    %c0_69 = arith.constant 0 : index
    %c0_70 = arith.constant 0 : index
    %103 = vector.load %arg5[%c19, %c0_69, %c0_70] : memref<27x8x128xbf16, #tpu.memory_space<vmem>>, vector<1x8x128xbf16>
    %104 = vector.shape_cast %103 : vector<1x8x128xbf16> to vector<8x128xbf16>
    %cst_71 = arith.constant dense<0.000000e+00> : vector<80x128xf32>
    %105 = tpu.matmul %102, %104, %cst_71 {dimension_numbers = #tpu.dot_dimension_numbers<[1], [0], [0], [1], [0, 0, 1, 1], [], []>} : vector<80x8xbf16>, vector<8x128xbf16>, vector<80x128xf32> -> vector<80x128xf32>
    %106 = arith.addf %101, %105 : vector<80x128xf32>
    %107 = vector.extract_strided_slice %96 {offsets = [2, 0], sizes = [80, 8], strides = [1, 1]} : vector<108x8xbf16> to vector<80x8xbf16>
    %c20 = arith.constant 20 : index
    %c0_72 = arith.constant 0 : index
    %c0_73 = arith.constant 0 : index
    %108 = vector.load %arg5[%c20, %c0_72, %c0_73] : memref<27x8x128xbf16, #tpu.memory_space<vmem>>, vector<1x8x128xbf16>
    %109 = vector.shape_cast %108 : vector<1x8x128xbf16> to vector<8x128xbf16>
    %cst_74 = arith.constant dense<0.000000e+00> : vector<80x128xf32>
    %110 = tpu.matmul %107, %109, %cst_74 {dimension_numbers = #tpu.dot_dimension_numbers<[1], [0], [0], [1], [0, 0, 1, 1], [], []>} : vector<80x8xbf16>, vector<8x128xbf16>, vector<80x128xf32> -> vector<80x128xf32>
    %111 = arith.addf %106, %110 : vector<80x128xf32>
    %112 = vector.extract_strided_slice %96 {offsets = [10, 0], sizes = [80, 8], strides = [1, 1]} : vector<108x8xbf16> to vector<80x8xbf16>
    %c21 = arith.constant 21 : index
    %c0_75 = arith.constant 0 : index
    %c0_76 = arith.constant 0 : index
    %113 = vector.load %arg5[%c21, %c0_75, %c0_76] : memref<27x8x128xbf16, #tpu.memory_space<vmem>>, vector<1x8x128xbf16>
    %114 = vector.shape_cast %113 : vector<1x8x128xbf16> to vector<8x128xbf16>
    %cst_77 = arith.constant dense<0.000000e+00> : vector<80x128xf32>
    %115 = tpu.matmul %112, %114, %cst_77 {dimension_numbers = #tpu.dot_dimension_numbers<[1], [0], [0], [1], [0, 0, 1, 1], [], []>} : vector<80x8xbf16>, vector<8x128xbf16>, vector<80x128xf32> -> vector<80x128xf32>
    %116 = arith.addf %111, %115 : vector<80x128xf32>
    %117 = vector.extract_strided_slice %96 {offsets = [11, 0], sizes = [80, 8], strides = [1, 1]} : vector<108x8xbf16> to vector<80x8xbf16>
    %c22 = arith.constant 22 : index
    %c0_78 = arith.constant 0 : index
    %c0_79 = arith.constant 0 : index
    %118 = vector.load %arg5[%c22, %c0_78, %c0_79] : memref<27x8x128xbf16, #tpu.memory_space<vmem>>, vector<1x8x128xbf16>
    %119 = vector.shape_cast %118 : vector<1x8x128xbf16> to vector<8x128xbf16>
    %cst_80 = arith.constant dense<0.000000e+00> : vector<80x128xf32>
    %120 = tpu.matmul %117, %119, %cst_80 {dimension_numbers = #tpu.dot_dimension_numbers<[1], [0], [0], [1], [0, 0, 1, 1], [], []>} : vector<80x8xbf16>, vector<8x128xbf16>, vector<80x128xf32> -> vector<80x128xf32>
    %121 = arith.addf %116, %120 : vector<80x128xf32>
    %122 = vector.extract_strided_slice %96 {offsets = [12, 0], sizes = [80, 8], strides = [1, 1]} : vector<108x8xbf16> to vector<80x8xbf16>
    %c23 = arith.constant 23 : index
    %c0_81 = arith.constant 0 : index
    %c0_82 = arith.constant 0 : index
    %123 = vector.load %arg5[%c23, %c0_81, %c0_82] : memref<27x8x128xbf16, #tpu.memory_space<vmem>>, vector<1x8x128xbf16>
    %124 = vector.shape_cast %123 : vector<1x8x128xbf16> to vector<8x128xbf16>
    %cst_83 = arith.constant dense<0.000000e+00> : vector<80x128xf32>
    %125 = tpu.matmul %122, %124, %cst_83 {dimension_numbers = #tpu.dot_dimension_numbers<[1], [0], [0], [1], [0, 0, 1, 1], [], []>} : vector<80x8xbf16>, vector<8x128xbf16>, vector<80x128xf32> -> vector<80x128xf32>
    %126 = arith.addf %121, %125 : vector<80x128xf32>
    %127 = vector.extract_strided_slice %96 {offsets = [20, 0], sizes = [80, 8], strides = [1, 1]} : vector<108x8xbf16> to vector<80x8xbf16>
    %c24 = arith.constant 24 : index
    %c0_84 = arith.constant 0 : index
    %c0_85 = arith.constant 0 : index
    %128 = vector.load %arg5[%c24, %c0_84, %c0_85] : memref<27x8x128xbf16, #tpu.memory_space<vmem>>, vector<1x8x128xbf16>
    %129 = vector.shape_cast %128 : vector<1x8x128xbf16> to vector<8x128xbf16>
    %cst_86 = arith.constant dense<0.000000e+00> : vector<80x128xf32>
    %130 = tpu.matmul %127, %129, %cst_86 {dimension_numbers = #tpu.dot_dimension_numbers<[1], [0], [0], [1], [0, 0, 1, 1], [], []>} : vector<80x8xbf16>, vector<8x128xbf16>, vector<80x128xf32> -> vector<80x128xf32>
    %131 = arith.addf %126, %130 : vector<80x128xf32>
    %132 = vector.extract_strided_slice %96 {offsets = [21, 0], sizes = [80, 8], strides = [1, 1]} : vector<108x8xbf16> to vector<80x8xbf16>
    %c25 = arith.constant 25 : index
    %c0_87 = arith.constant 0 : index
    %c0_88 = arith.constant 0 : index
    %133 = vector.load %arg5[%c25, %c0_87, %c0_88] : memref<27x8x128xbf16, #tpu.memory_space<vmem>>, vector<1x8x128xbf16>
    %134 = vector.shape_cast %133 : vector<1x8x128xbf16> to vector<8x128xbf16>
    %cst_89 = arith.constant dense<0.000000e+00> : vector<80x128xf32>
    %135 = tpu.matmul %132, %134, %cst_89 {dimension_numbers = #tpu.dot_dimension_numbers<[1], [0], [0], [1], [0, 0, 1, 1], [], []>} : vector<80x8xbf16>, vector<8x128xbf16>, vector<80x128xf32> -> vector<80x128xf32>
    %136 = arith.addf %131, %135 : vector<80x128xf32>
    %137 = vector.extract_strided_slice %96 {offsets = [22, 0], sizes = [80, 8], strides = [1, 1]} : vector<108x8xbf16> to vector<80x8xbf16>
    %c26 = arith.constant 26 : index
    %c0_90 = arith.constant 0 : index
    %c0_91 = arith.constant 0 : index
    %138 = vector.load %arg5[%c26, %c0_90, %c0_91] : memref<27x8x128xbf16, #tpu.memory_space<vmem>>, vector<1x8x128xbf16>
    %139 = vector.shape_cast %138 : vector<1x8x128xbf16> to vector<8x128xbf16>
    %cst_92 = arith.constant dense<0.000000e+00> : vector<80x128xf32>
    %140 = tpu.matmul %137, %139, %cst_92 {dimension_numbers = #tpu.dot_dimension_numbers<[1], [0], [0], [1], [0, 0, 1, 1], [], []>} : vector<80x8xbf16>, vector<8x128xbf16>, vector<80x128xf32> -> vector<80x128xf32>
    %141 = arith.addf %136, %140 : vector<80x128xf32>
    %c0_93 = arith.constant 0 : index
    %c0_94 = arith.constant 0 : index
    %c0_95 = arith.constant 0 : index
    %c0_96 = arith.constant 0 : index
    %142 = vector.load %arg6[%c0_93, %c0_94, %c0_95, %c0_96] : memref<1x1x80x128xf32, #tpu.memory_space<vmem>>, vector<1x1x80x128xf32>
    %143 = vector.shape_cast %142 : vector<1x1x80x128xf32> to vector<80x128xf32>
    %144 = vector.shape_cast %141 : vector<80x128xf32> to vector<1x1x80x128xf32>
    tpu.vector_store %arg6[%c0_93, %c0_94, %c0_95, %c0_96], %144 {strides = array<i32>} : memref<1x1x80x128xf32, #tpu.memory_space<vmem>>, vector<1x1x80x128xf32>,
    return
  }
  func.func @transform_0(%arg0: i32, %arg1: i32) -> (i32, i32, i32, i32) {
    %c0_i32 = arith.constant 0 : i32
    %c0_i32_0 = arith.constant 0 : i32
    %c0_i32_1 = arith.constant 0 : i32
    return %arg0, %arg1, %c0_i32, %c0_i32_0 : i32, i32, i32, i32
  }
  func.func @transform_1(%arg0: i32, %arg1: i32) -> (i32, i32, i32, i32) {
    %c1_i32 = arith.constant 1 : i32
    %0 = arith.addi %arg1, %c1_i32 : i32
    %c0_i32 = arith.constant 0 : i32
    %c0_i32_0 = arith.constant 0 : i32
    %c0_i32_1 = arith.constant 0 : i32
    return %arg0, %0, %c0_i32, %c0_i32_0 : i32, i32, i32, i32
  }
  func.func @transform_2(%arg0: i32, %arg1: i32) -> (i32, i32, i32, i32) {
    %c2_i32 = arith.constant 2 : i32
    %0 = arith.addi %arg1, %c2_i32 : i32
    %c0_i32 = arith.constant 0 : i32
    %c0_i32_0 = arith.constant 0 : i32
    %c0_i32_1 = arith.constant 0 : i32
    return %arg0, %0, %c0_i32, %c0_i32_0 : i32, i32, i32, i32
  }
  func.func @transform_3(%arg0: i32, %arg1: i32) -> (i32, i32, i32) {
    %c0_i32 = arith.constant 0 : i32
    %c0_i32_0 = arith.constant 0 : i32
    %c0_i32_1 = arith.constant 0 : i32
    %c0_i32_2 = arith.constant 0 : i32
    return %c0_i32, %c0_i32_0, %c0_i32_1 : i32, i32, i32
  }
  func.func @transform_4(%arg0: i32, %arg1: i32) -> (i32, i32, i32, i32) {
    %c0_i32 = arith.constant 0 : i32
    %c0_i32_0 = arith.constant 0 : i32
    %c0_i32_1 = arith.constant 0 : i32
    return %arg0, %arg1, %c0_i32, %c0_i32_0 : i32, i32, i32, i32
  }
}

module attributes {stable_mosaic.version = 11 : i64} {
  func.func @_mm_full_stats_kernel(%arg0: i32, %arg1: memref<128x128xbf16, #tpu.memory_space<vmem>>, %arg2: memref<128x128xbf16, #tpu.memory_space<vmem>>, %arg3: memref<128x128xbf16, #tpu.memory_space<vmem>>, %arg4: memref<1x1x128xf32, #tpu.memory_space<vmem>>, %arg5: memref<1x1x128xf32, #tpu.memory_space<vmem>>) attributes {dimension_semantics = [#tpu.dimension_semantics<parallel>], iteration_bounds = array<i64: 8>, scalar_prefetch = 0 : i64, scratch_operands = 0 : i64, tpu.core_type = #tpu.core_type<tc>, window_params = [{transform_indices = @transform_0, window_bounds = array<i64: 128, 128>}, {pipeline_mode = #tpu.pipeline_mode<synchronous>, transform_indices = @transform_1, window_bounds = array<i64: 128, 128>}, {transform_indices = @transform_2, window_bounds = array<i64: 128, 128>}, {transform_indices = @transform_3, window_bounds = array<i64: 1, 1, 128>}, {transform_indices = @transform_4, window_bounds = array<i64: 1, 1, 128>}]} {
    %c0 = arith.constant 0 : index
    %c0_0 = arith.constant 0 : index
    %0 = vector.load %arg1[%c0, %c0_0] : memref<128x128xbf16, #tpu.memory_space<vmem>>, vector<128x128xbf16>
    %c0_1 = arith.constant 0 : index
    %c0_2 = arith.constant 0 : index
    %1 = vector.load %arg2[%c0_1, %c0_2] : memref<128x128xbf16, #tpu.memory_space<vmem>>, vector<128x128xbf16>
    %cst = arith.constant dense<0.000000e+00> : vector<128x128xf32>
    %2 = tpu.matmul %0, %1, %cst {dimension_numbers = #tpu.dot_dimension_numbers<[1], [0], [0], [1], [0, 0, 1, 1], [], []>} : vector<128x128xbf16>, vector<128x128xbf16>, vector<128x128xf32> -> vector<128x128xf32>
    %3 = arith.truncf %2 : vector<128x128xf32> to vector<128x128xbf16>
    %c0_3 = arith.constant 0 : index
    %c0_4 = arith.constant 0 : index
    %4 = vector.load %arg3[%c0_3, %c0_4] : memref<128x128xbf16, #tpu.memory_space<vmem>>, vector<128x128xbf16>
    tpu.vector_store %arg3[%c0_3, %c0_4], %3 {strides = array<i32>} : memref<128x128xbf16, #tpu.memory_space<vmem>>, vector<128x128xbf16>,
    %cst_5 = arith.constant dense<0.000000e+00> : vector<128xf32>
    %5 = vector.multi_reduction <add>, %2, %cst_5 [0] : vector<128x128xf32> to vector<128xf32>
    %6 = vector.shape_cast %5 : vector<128xf32> to vector<1x128xf32>
    %7 = vector.shape_cast %6 : vector<1x128xf32> to vector<1x1x128xf32>
    %c0_6 = arith.constant 0 : index
    %c0_7 = arith.constant 0 : index
    %c0_8 = arith.constant 0 : index
    %8 = vector.load %arg4[%c0_6, %c0_7, %c0_8] : memref<1x1x128xf32, #tpu.memory_space<vmem>>, vector<1x1x128xf32>
    tpu.vector_store %arg4[%c0_6, %c0_7, %c0_8], %7 {strides = array<i32>} : memref<1x1x128xf32, #tpu.memory_space<vmem>>, vector<1x1x128xf32>,
    %9 = arith.mulf %2, %2 : vector<128x128xf32>
    %cst_9 = arith.constant dense<0.000000e+00> : vector<128xf32>
    %10 = vector.multi_reduction <add>, %9, %cst_9 [0] : vector<128x128xf32> to vector<128xf32>
    %11 = vector.shape_cast %10 : vector<128xf32> to vector<1x128xf32>
    %12 = vector.shape_cast %11 : vector<1x128xf32> to vector<1x1x128xf32>
    %c0_10 = arith.constant 0 : index
    %c0_11 = arith.constant 0 : index
    %c0_12 = arith.constant 0 : index
    %13 = vector.load %arg5[%c0_10, %c0_11, %c0_12] : memref<1x1x128xf32, #tpu.memory_space<vmem>>, vector<1x1x128xf32>
    tpu.vector_store %arg5[%c0_10, %c0_11, %c0_12], %12 {strides = array<i32>} : memref<1x1x128xf32, #tpu.memory_space<vmem>>, vector<1x1x128xf32>,
    return
  }
  func.func @transform_0(%arg0: i32) -> (i32, i32) {
    %c0_i32 = arith.constant 0 : i32
    %c0_i32_0 = arith.constant 0 : i32
    return %arg0, %c0_i32 : i32, i32
  }
  func.func @transform_1(%arg0: i32) -> (i32, i32) {
    %c0_i32 = arith.constant 0 : i32
    %c0_i32_0 = arith.constant 0 : i32
    %c0_i32_1 = arith.constant 0 : i32
    return %c0_i32, %c0_i32_0 : i32, i32
  }
  func.func @transform_2(%arg0: i32) -> (i32, i32) {
    %c0_i32 = arith.constant 0 : i32
    %c0_i32_0 = arith.constant 0 : i32
    return %arg0, %c0_i32 : i32, i32
  }
  func.func @transform_3(%arg0: i32) -> (i32, i32, i32) {
    %c0_i32 = arith.constant 0 : i32
    %c0_i32_0 = arith.constant 0 : i32
    %c0_i32_1 = arith.constant 0 : i32
    return %arg0, %c0_i32, %c0_i32_0 : i32, i32, i32
  }
  func.func @transform_4(%arg0: i32) -> (i32, i32, i32) {
    %c0_i32 = arith.constant 0 : i32
    %c0_i32_0 = arith.constant 0 : i32
    %c0_i32_1 = arith.constant 0 : i32
    return %arg0, %c0_i32, %c0_i32_0 : i32, i32, i32
  }
}

module attributes {stable_mosaic.version = 11 : i64} {
  func.func @_bn_relu_kernel(%arg0: i32, %arg1: memref<128x128xbf16, #tpu.memory_space<vmem>>, %arg2: memref<1x128xf32, #tpu.memory_space<vmem>>, %arg3: memref<1x128xf32, #tpu.memory_space<vmem>>, %arg4: memref<128x128xbf16, #tpu.memory_space<vmem>>) attributes {dimension_semantics = [#tpu.dimension_semantics<parallel>], iteration_bounds = array<i64: 8>, scalar_prefetch = 0 : i64, scratch_operands = 0 : i64, tpu.core_type = #tpu.core_type<tc>, window_params = [{transform_indices = @transform_0, window_bounds = array<i64: 128, 128>}, {pipeline_mode = #tpu.pipeline_mode<synchronous>, transform_indices = @transform_1, window_bounds = array<i64: 1, 128>}, {pipeline_mode = #tpu.pipeline_mode<synchronous>, transform_indices = @transform_2, window_bounds = array<i64: 1, 128>}, {transform_indices = @transform_3, window_bounds = array<i64: 128, 128>}]} {
    %c0 = arith.constant 0 : index
    %c0_0 = arith.constant 0 : index
    %0 = vector.load %arg1[%c0, %c0_0] : memref<128x128xbf16, #tpu.memory_space<vmem>>, vector<128x128xbf16>
    %1 = arith.extf %0 : vector<128x128xbf16> to vector<128x128xf32>
    %c0_1 = arith.constant 0 : index
    %c0_2 = arith.constant 0 : index
    %2 = vector.load %arg2[%c0_1, %c0_2] : memref<1x128xf32, #tpu.memory_space<vmem>>, vector<1x128xf32>
    %3 = vector.broadcast %2 : vector<1x128xf32> to vector<128x128xf32>
    %4 = arith.mulf %1, %3 : vector<128x128xf32>
    %c0_3 = arith.constant 0 : index
    %c0_4 = arith.constant 0 : index
    %5 = vector.load %arg3[%c0_3, %c0_4] : memref<1x128xf32, #tpu.memory_space<vmem>>, vector<1x128xf32>
    %6 = vector.broadcast %5 : vector<1x128xf32> to vector<128x128xf32>
    %7 = arith.addf %4, %6 : vector<128x128xf32>
    %cst = arith.constant 0.000000e+00 : f32
    %8 = vector.broadcast %cst : f32 to vector<128x128xf32>
    %9 = arith.maximumf %7, %8 : vector<128x128xf32>
    %10 = arith.truncf %9 : vector<128x128xf32> to vector<128x128xbf16>
    %c0_5 = arith.constant 0 : index
    %c0_6 = arith.constant 0 : index
    %11 = vector.load %arg4[%c0_5, %c0_6] : memref<128x128xbf16, #tpu.memory_space<vmem>>, vector<128x128xbf16>
    tpu.vector_store %arg4[%c0_5, %c0_6], %10 {strides = array<i32>} : memref<128x128xbf16, #tpu.memory_space<vmem>>, vector<128x128xbf16>,
    return
  }
  func.func @transform_0(%arg0: i32) -> (i32, i32) {
    %c0_i32 = arith.constant 0 : i32
    %c0_i32_0 = arith.constant 0 : i32
    return %arg0, %c0_i32 : i32, i32
  }
  func.func @transform_1(%arg0: i32) -> (i32, i32) {
    %c0_i32 = arith.constant 0 : i32
    %c0_i32_0 = arith.constant 0 : i32
    %c0_i32_1 = arith.constant 0 : i32
    return %c0_i32, %c0_i32_0 : i32, i32
  }
  func.func @transform_2(%arg0: i32) -> (i32, i32) {
    %c0_i32 = arith.constant 0 : i32
    %c0_i32_0 = arith.constant 0 : i32
    %c0_i32_1 = arith.constant 0 : i32
    return %c0_i32, %c0_i32_0 : i32, i32
  }
  func.func @transform_3(%arg0: i32) -> (i32, i32) {
    %c0_i32 = arith.constant 0 : i32
    %c0_i32_0 = arith.constant 0 : i32
    return %arg0, %c0_i32 : i32, i32
  }
}

module attributes {stable_mosaic.version = 11 : i64} {
  func.func @_bn_res_relu_kernel(%arg0: i32, %arg1: memref<128x128xbf16, #tpu.memory_space<vmem>>, %arg2: memref<1x128xf32, #tpu.memory_space<vmem>>, %arg3: memref<1x128xf32, #tpu.memory_space<vmem>>, %arg4: memref<128x128xbf16, #tpu.memory_space<vmem>>, %arg5: memref<128x128xbf16, #tpu.memory_space<vmem>>) attributes {dimension_semantics = [#tpu.dimension_semantics<parallel>], iteration_bounds = array<i64: 8>, scalar_prefetch = 0 : i64, scratch_operands = 0 : i64, tpu.core_type = #tpu.core_type<tc>, window_params = [{transform_indices = @transform_0, window_bounds = array<i64: 128, 128>}, {pipeline_mode = #tpu.pipeline_mode<synchronous>, transform_indices = @transform_1, window_bounds = array<i64: 1, 128>}, {pipeline_mode = #tpu.pipeline_mode<synchronous>, transform_indices = @transform_2, window_bounds = array<i64: 1, 128>}, {transform_indices = @transform_3, window_bounds = array<i64: 128, 128>}, {transform_indices = @transform_4, window_bounds = array<i64: 128, 128>}]} {
    %c0 = arith.constant 0 : index
    %c0_0 = arith.constant 0 : index
    %0 = vector.load %arg1[%c0, %c0_0] : memref<128x128xbf16, #tpu.memory_space<vmem>>, vector<128x128xbf16>
    %1 = arith.extf %0 : vector<128x128xbf16> to vector<128x128xf32>
    %c0_1 = arith.constant 0 : index
    %c0_2 = arith.constant 0 : index
    %2 = vector.load %arg2[%c0_1, %c0_2] : memref<1x128xf32, #tpu.memory_space<vmem>>, vector<1x128xf32>
    %3 = vector.broadcast %2 : vector<1x128xf32> to vector<128x128xf32>
    %4 = arith.mulf %1, %3 : vector<128x128xf32>
    %c0_3 = arith.constant 0 : index
    %c0_4 = arith.constant 0 : index
    %5 = vector.load %arg3[%c0_3, %c0_4] : memref<1x128xf32, #tpu.memory_space<vmem>>, vector<1x128xf32>
    %6 = vector.broadcast %5 : vector<1x128xf32> to vector<128x128xf32>
    %7 = arith.addf %4, %6 : vector<128x128xf32>
    %c0_5 = arith.constant 0 : index
    %c0_6 = arith.constant 0 : index
    %8 = vector.load %arg4[%c0_5, %c0_6] : memref<128x128xbf16, #tpu.memory_space<vmem>>, vector<128x128xbf16>
    %9 = arith.extf %8 : vector<128x128xbf16> to vector<128x128xf32>
    %10 = arith.addf %7, %9 : vector<128x128xf32>
    %cst = arith.constant 0.000000e+00 : f32
    %11 = vector.broadcast %cst : f32 to vector<128x128xf32>
    %12 = arith.maximumf %10, %11 : vector<128x128xf32>
    %13 = arith.truncf %12 : vector<128x128xf32> to vector<128x128xbf16>
    %c0_7 = arith.constant 0 : index
    %c0_8 = arith.constant 0 : index
    %14 = vector.load %arg5[%c0_7, %c0_8] : memref<128x128xbf16, #tpu.memory_space<vmem>>, vector<128x128xbf16>
    tpu.vector_store %arg5[%c0_7, %c0_8], %13 {strides = array<i32>} : memref<128x128xbf16, #tpu.memory_space<vmem>>, vector<128x128xbf16>,
    return
  }
  func.func @transform_0(%arg0: i32) -> (i32, i32) {
    %c0_i32 = arith.constant 0 : i32
    %c0_i32_0 = arith.constant 0 : i32
    return %arg0, %c0_i32 : i32, i32
  }
  func.func @transform_1(%arg0: i32) -> (i32, i32) {
    %c0_i32 = arith.constant 0 : i32
    %c0_i32_0 = arith.constant 0 : i32
    %c0_i32_1 = arith.constant 0 : i32
    return %c0_i32, %c0_i32_0 : i32, i32
  }
  func.func @transform_2(%arg0: i32) -> (i32, i32) {
    %c0_i32 = arith.constant 0 : i32
    %c0_i32_0 = arith.constant 0 : i32
    %c0_i32_1 = arith.constant 0 : i32
    return %c0_i32, %c0_i32_0 : i32, i32
  }
  func.func @transform_3(%arg0: i32) -> (i32, i32) {
    %c0_i32 = arith.constant 0 : i32
    %c0_i32_0 = arith.constant 0 : i32
    return %arg0, %c0_i32 : i32, i32
  }
  func.func @transform_4(%arg0: i32) -> (i32, i32) {
    %c0_i32 = arith.constant 0 : i32
    %c0_i32_0 = arith.constant 0 : i32
    return %arg0, %c0_i32 : i32, i32
  }
}

</mosaic_0001>

<llo_original>
// kernel: deform_basic_block.6
$region0: #{deform_basic_block.6}
  #allocation0 [shape = 'u32[]', space=smem, size = 0x4, offset = 0x4, fixed_abs, tag = 'smem constant byte address 0x4 - core index']
  #allocation1 [shape = 'u32[144,128]{1,0:T(1,128)}', space=vmem, size = 0x12000, scoped, tag = 'internal scratch']
  %s0 = inlined_call_operand.vmem [shape: bf16[2,10,108,8], index: 0, kind: input, shape index: {}, may-alias: {0,1,2}]
  %s1 = inlined_call_operand.vmem [shape: bf16[2,10,108,8], index: 1, kind: input, shape index: {}, may-alias: {0,1,2}]
  %s2 = inlined_call_operand.vmem [shape: bf16[2,10,108,8], index: 2, kind: input, shape index: {}, may-alias: {0,1,2}]
  %s3 = inlined_call_operand.vmem [shape: bf16[27,8,128], index: 3, kind: input, shape index: {}]
  %s4 = inlined_call_operand.vmem [shape: f32[2,8,80,128], index: 4, kind: output, shape index: {}]
  %s5 = sld [smem:[#allocation0]]
  $region49: #{deform_basic_block.6} parent=0
    _
  %s7 = ssub.s32 1, %s5
  %s8 = scalar_select 0, %s7, %s5
  loop: start=0, step=1, limit=18
  $region2: #{deform_basic_block.6} parent=0 // loop_pre_header
    _
  $region3: #{deform_basic_block.6} parent=0 // loop_header
    %s10 = sphi 0, %s14
    %p11 = scmp.ge.s32.totalorder %s10, 18
    %s17 = sphi 0, %s29
    %s18 = sphi 0, %s25
    %s19 = sphi 0, %s17
    %s20 = sphi 0, %s18
    %s21 = sphi 0, %s19
    %s22 = sphi 0, %s20
    %s34 = sphi 0, %s36
    %s37 = sphi 0, %s34
    %s38 = sphi 0, %s37
    %s54 = sphi 0, %s38
    %s64 = sphi 0, %s66
    %s67 = sphi 0, %s64
    %s68 = sphi 0, %s67
    %s84 = sphi 0, %s68
    %s94 = sphi 0, %s96
    %s97 = sphi 0, %s94
    %s98 = sphi 0, %s97
    %s114 = sphi 0, %s98
    %s118 = sphi 0, %s118
    %s120 = sphi 0, %s118
    %s121 = sphi 0, %s120
    %s135 = sphi 0, %s121
    %s143 = sphi 0, %s145
    %s146 = sphi 0, %s143
    %s147 = sphi 0, %s146
    %s163 = sphi 0, %s147
  $region4: #{deform_basic_block.6} parent=0 // loop_header_branch
    %13 = sbr.rel (%p11) target = $region8
  $region5: #{deform_basic_block.6} parent=0 // loop_body
    %s15 = ssub.s32 %s10, 1
    %s16 = ssub.s32 %s10, 2
    %s23 = sadd.s32 1, %s18
    %p24 = scmp.ge.s32.totalorder %s23, 8
    %s25 = scalar_select %p24, 0, %s23
    %s26 = sadd.s32 1, %s17
    %s27 = scalar_select %p24, %s26, %s17
    %p28 = scmp.ge.s32.totalorder %s27, 2
    %s29 = scalar_select %p28, 0, %s27
    %s30 = ssub.s32 %s17, %s29
    %s31 = ssub.s32 %s18, %s25
    %s32 = sor.u32 %s30, %s31
    %p33 = scmp.eq.s32.totalorder %s32, 0
    %s35 = sadd.s32 %s34, 1
    %s36 = scalar_select %p33, %s34, %s35
    %p39 = pneg %p33
    %p40 = scmp.eq.s32.totalorder %s10, 15
    %p41 = por %p39, %p40
    %p42 = scmp.ne.s32.totalorder %s34, %s37
    %p43 = scmp.eq.s32.totalorder %s10, 0
    %p44 = por %p42, %p43
    %p45 = scmp.ne.s32.totalorder %s34, %s37
    %p46 = scmp.eq.s32.totalorder %s15, 15
    %p47 = por %p45, %p46
    %p48 = scmp.ne.s32.totalorder %s37, %s38
    %p49 = scmp.eq.s32.totalorder %s15, 0
    %p50 = por %p48, %p49
    %p51 = scmp.ne.s32.totalorder %s37, %s38
    %p52 = scmp.eq.s32.totalorder %s16, 15
    %p53 = por %p51, %p52
    %p55 = scmp.ne.s32.totalorder %s38, %s54
    %p56 = scmp.eq.s32.totalorder %s16, 0
    %p57 = por %p55, %p56
    %s58 = sadd.s32 %s18, 1
    %s59 = sadd.s32 %s25, 1
    %s60 = ssub.s32 %s17, %s29
    %s61 = ssub.s32 %s58, %s59
    %s62 = sor.u32 %s60, %s61
    %p63 = scmp.eq.s32.totalorder %s62, 0
    %s65 = sadd.s32 %s64, 1
    %s66 = scalar_select %p63, %s64, %s65
    %p69 = pneg %p63
    %p70 = scmp.eq.s32.totalorder %s10, 15
    %p71 = por %p69, %p70
    %p72 = scmp.ne.s32.totalorder %s64, %s67
    %p73 = scmp.eq.s32.totalorder %s10, 0
    %p74 = por %p72, %p73
    %p75 = scmp.ne.s32.totalorder %s64, %s67
    %p76 = scmp.eq.s32.totalorder %s15, 15
    %p77 = por %p75, %p76
    %p78 = scmp.ne.s32.totalorder %s67, %s68
    %p79 = scmp.eq.s32.totalorder %s15, 0
    %p80 = por %p78, %p79
    %p81 = scmp.ne.s32.totalorder %s67, %s68
    %p82 = scmp.eq.s32.totalorder %s16, 15
    %p83 = por %p81, %p82
    %p85 = scmp.ne.s32.totalorder %s68, %s84
    %p86 = scmp.eq.s32.totalorder %s16, 0
    %p87 = por %p85, %p86
    %s88 = sadd.s32 %s18, 2
    %s89 = sadd.s32 %s25, 2
    %s90 = ssub.s32 %s17, %s29
    %s91 = ssub.s32 %s88, %s89
    %s92 = sor.u32 %s90, %s91
    %p93 = scmp.eq.s32.totalorder %s92, 0
    %s95 = sadd.s32 %s94, 1
    %s96 = scalar_select %p93, %s94, %s95
    %p99 = pneg %p93
    %p100 = scmp.eq.s32.totalorder %s10, 15
    %p101 = por %p99, %p100
    %p102 = scmp.ne.s32.totalorder %s94, %s97
    %p103 = scmp.eq.s32.totalorder %s10, 0
    %p104 = por %p102, %p103
    %p105 = scmp.ne.s32.totalorder %s94, %s97
    %p106 = scmp.eq.s32.totalorder %s15, 15
    %p107 = por %p105, %p106
    %p108 = scmp.ne.s32.totalorder %s97, %s98
    %p109 = scmp.eq.s32.totalorder %s15, 0
    %p110 = por %p108, %p109
    %p111 = scmp.ne.s32.totalorder %s97, %s98
    %p112 = scmp.eq.s32.totalorder %s16, 15
    %p113 = por %p111, %p112
    %p115 = scmp.ne.s32.totalorder %s98, %s114
    %p116 = scmp.eq.s32.totalorder %s16, 0
    %p117 = por %p115, %p116
    %s119 = sadd.s32 %s118, 1
    %p122 = scmp.eq.s32.totalorder %s10, 15
    %p123 = scmp.ne.s32.totalorder %s118, %s120
    %p124 = scmp.eq.s32.totalorder %s10, 0
    %p125 = por %p123, %p124
    %p126 = scmp.ne.s32.totalorder %s118, %s120
    %p127 = scmp.eq.s32.totalorder %s15, 15
    %p128 = por %p126, %p127
    %p129 = scmp.ne.s32.totalorder %s120, %s121
    %p130 = scmp.eq.s32.totalorder %s15, 0
    %p131 = por %p129, %p130
    %p132 = scmp.ne.s32.totalorder %s120, %s121
    %p133 = scmp.eq.s32.totalorder %s16, 15
    %p134 = por %p132, %p133
    %p136 = scmp.ne.s32.totalorder %s121, %s135
    %p137 = scmp.eq.s32.totalorder %s16, 0
    %p138 = por %p136, %p137
    %s139 = ssub.s32 %s17, %s29
    %s140 = ssub.s32 %s18, %s25
    %s141 = sor.u32 %s139, %s140
    %p142 = scmp.eq.s32.totalorder %s141, 0
    %s144 = sadd.s32 %s143, 1
    %s145 = scalar_select %p142, %s143, %s144
    %p148 = pneg %p142
    %p149 = scmp.eq.s32.totalorder %s10, 15
    %p150 = por %p148, %p149
    %p151 = scmp.ne.s32.totalorder %s143, %s146
    %p152 = scmp.eq.s32.totalorder %s10, 0
    %p153 = por %p151, %p152
    %p154 = scmp.ne.s32.totalorder %s143, %s146
    %p155 = scmp.eq.s32.totalorder %s15, 15
    %p156 = por %p154, %p155
    %p157 = scmp.ne.s32.totalorder %s146, %s147
    %p158 = scmp.eq.s32.totalorder %s15, 0
    %p159 = por %p157, %p158
    %p160 = scmp.ne.s32.totalorder %s146, %s147
    %p161 = scmp.eq.s32.totalorder %s16, 15
    %p162 = por %p160, %p161
    %p164 = scmp.ne.s32.totalorder %s147, %s163
    %p165 = scmp.eq.s32.totalorder %s16, 0
    %p166 = por %p164, %p165
    %p167 = scmp.le.s32.totalorder 1, %s10
    %p168 = scmp.lt.s32.totalorder %s10, 17
    %p169 = pnand %p167, %p168
    %p170 = pneg %p169
    // Predicated region
    $region9: #{deform_basic_block.6} parent=5 // pred_check
      _
    $region10: #{deform_basic_block.6} parent=5 // pred_check_branch
      %172 = sbr.rel (%p169) target = $region12
    $region11: #{deform_basic_block.6} parent=5 // pred_region
      %s173 = ssub.s32 %s10, 1
      // Predicated region
      $region13: #{deform_basic_block.6} parent=11 // pred_check
        %p174 = pneg %p131
      $region14: #{deform_basic_block.6} parent=11 // pred_check_branch
        %176 = sbr.rel (%p174) target = $region16
      $region15: #{deform_basic_block.6} parent=11 // pred_region
        _
      $region16: #{deform_basic_block.6} parent=11 // pred_fallthru
        _
    $region12: #{deform_basic_block.6} parent=5 // pred_fallthru
      _
    %p177 = scmp.lt.s32.totalorder %s10, 16
    // Predicated region
    $region17: #{deform_basic_block.6} parent=5 // pred_check
      %p178 = pneg %p177
    $region18: #{deform_basic_block.6} parent=5 // pred_check_branch
      %180 = sbr.rel (%p178) target = $region20
    $region19: #{deform_basic_block.6} parent=5 // pred_region
      // Predicated region
      $region21: #{deform_basic_block.6} parent=19 // pred_check
        %p181 = pneg %p44
      $region22: #{deform_basic_block.6} parent=19 // pred_check_branch
        %183 = sbr.rel (%p181) target = $region24
      $region23: #{deform_basic_block.6} parent=19 // pred_region
        %p184 = scmp.lt.s32.totalorder %s17, 1
        %s185 = scalar_select %p184, %s17, 1
        %p186 = scmp.lt.s32.totalorder %s18, 9
        %s187 = scalar_select %p186, %s18, 9
        %s188 = smul.addr %s187, 14
        %s189 = smul.addr %s185, 140
        %s190 = sadd.s32 %s188, %s189
        %s191 = smul.addr %s190, 4
        %s192 = scalar_lea.vmem %s0, %s191
      $region24: #{deform_basic_block.6} parent=19 // pred_fallthru
        _
      // Predicated region
      $region25: #{deform_basic_block.6} parent=19 // pred_check
        %p193 = pneg %p74
      $region26: #{deform_basic_block.6} parent=19 // pred_check_branch
        %195 = sbr.rel (%p193) target = $region28
      $region27: #{deform_basic_block.6} parent=19 // pred_region
        %s196 = sadd.s32 %s18, 1
        %p197 = scmp.lt.s32.totalorder %s17, 1
        %s198 = scalar_select %p197, %s17, 1
        %p199 = scmp.lt.s32.totalorder %s196, 9
        %s200 = scalar_select %p199, %s196, 9
        %s201 = smul.addr %s200, 14
        %s202 = smul.addr %s198, 140
        %s203 = sadd.s32 %s201, %s202
        %s204 = smul.addr %s203, 4
        %s205 = scalar_lea.vmem %s1, %s204
        %s206 = sadd.s32 %s18, 1
      $region28: #{deform_basic_block.6} parent=19 // pred_fallthru
        _
      // Predicated region
      $region29: #{deform_basic_block.6} parent=19 // pred_check
        %p207 = pneg %p104
      $region30: #{deform_basic_block.6} parent=19 // pred_check_branch
        %209 = sbr.rel (%p207) target = $region32
      $region31: #{deform_basic_block.6} parent=19 // pred_region
        %s210 = sadd.s32 %s18, 2
        %p211 = scmp.lt.s32.totalorder %s17, 1
        %s212 = scalar_select %p211, %s17, 1
        %p213 = scmp.lt.s32.totalorder %s210, 9
        %s214 = scalar_select %p213, %s210, 9
        %s215 = smul.addr %s214, 14
        %s216 = smul.addr %s212, 140
        %s217 = sadd.s32 %s215, %s216
        %s218 = smul.addr %s217, 4
        %s219 = scalar_lea.vmem %s2, %s218
        %s220 = sadd.s32 %s18, 2
      $region32: #{deform_basic_block.6} parent=19 // pred_fallthru
        _
    $region20: #{deform_basic_block.6} parent=5 // pred_fallthru
      _
    %p221 = scmp.le.s32.totalorder 1, %s10
    %p222 = scmp.lt.s32.totalorder %s10, 17
    %p223 = pnand %p221, %p222
    %p224 = pneg %p223
    // Predicated region
    $region33: #{deform_basic_block.6} parent=5 // pred_check
      _
    $region34: #{deform_basic_block.6} parent=5 // pred_check_branch
      %226 = sbr.rel (%p223) target = $region36
    $region35: #{deform_basic_block.6} parent=5 // pred_region
      %s227 = ssub.s32 %s10, 1
      %p228 = scmp.lt.s32.totalorder %s19, 1
      %s229 = scalar_select %p228, %s19, 1
      %p230 = scmp.lt.s32.totalorder %s20, 9
      %s231 = scalar_select %p230, %s20, 9
      %s232 = smul.addr %s231, 14
      %s233 = smul.addr %s229, 140
      %s234 = sadd.s32 %s232, %s233
      %s235 = smul.addr %s234, 4
      %s236 = scalar_lea.vmem %s0, %s235
      %p237 = pneg %p50
      %p238 = pneg %p47
      %s239 = sadd.s32 %s20, 1
      %p240 = scmp.lt.s32.totalorder %s19, 1
      %s241 = scalar_select %p240, %s19, 1
      %p242 = scmp.lt.s32.totalorder %s239, 9
      %s243 = scalar_select %p242, %s239, 9
      %s244 = smul.addr %s243, 14
      %s245 = smul.addr %s241, 140
      %s246 = sadd.s32 %s244, %s245
      %s247 = smul.addr %s246, 4
      %s248 = scalar_lea.vmem %s1, %s247
      %p249 = pneg %p80
      %p250 = pneg %p77
      %s251 = sadd.s32 %s20, 2
      %p252 = scmp.lt.s32.totalorder %s19, 1
      %s253 = scalar_select %p252, %s19, 1
      %p254 = scmp.lt.s32.totalorder %s251, 9
      %s255 = scalar_select %p254, %s251, 9
      %s256 = smul.addr %s255, 14
      %s257 = smul.addr %s253, 140
      %s258 = sadd.s32 %s256, %s257
      %s259 = smul.addr %s258, 4
      %s260 = scalar_lea.vmem %s2, %s259
      %p261 = pneg %p110
      %p262 = pneg %p107
      %p263 = pneg %p131
      %p264 = pneg %p128
      %p265 = pneg %p159
      %p266 = pneg %p156
      %p267 = scmp.lt.s32.totalorder %s19, 1
      %s268 = scalar_select %p267, %s19, 1
      %p269 = scmp.lt.s32.totalorder %s20, 7
      %s270 = scalar_select %p269, %s20, 7
      %s271 = smul.addr %s270, 10
      %s272 = smul.addr %s268, 80
      %s273 = sadd.s32 %s271, %s272
      %s274 = smul.addr %s273, 8
      %s275 = scalar_lea.vmem %s4, %s274
      %p276 = scmp.lt.s32.totalorder %s19, 1
      %s277 = scalar_select %p276, %s19, 1
      %p278 = scmp.lt.s32.totalorder %s20, 9
      %s279 = scalar_select %p278, %s20, 9
      %s280 = smul.addr %s279, 14
      %s281 = smul.addr %s277, 140
      %s282 = sadd.s32 %s280, %s281
      %s283 = smul.addr %s282, 4
      %s284 = scalar_lea.vmem %s0, %s283
      %s285 = sadd.s32 %s20, 1
      %p286 = scmp.lt.s32.totalorder %s19, 1
      %s287 = scalar_select %p286, %s19, 1
      %p288 = scmp.lt.s32.totalorder %s285, 9
      %s289 = scalar_select %p288, %s285, 9
      %s290 = smul.addr %s289, 14
      %s291 = smul.addr %s287, 140
      %s292 = sadd.s32 %s290, %s291
      %s293 = smul.addr %s292, 4
      %s294 = scalar_lea.vmem %s1, %s293
      %s295 = sadd.s32 %s20, 1
      %s296 = sadd.s32 %s20, 2
      %p297 = scmp.lt.s32.totalorder %s19, 1
      %s298 = scalar_select %p297, %s19, 1
      %p299 = scmp.lt.s32.totalorder %s296, 9
      %s300 = scalar_select %p299, %s296, 9
      %s301 = smul.addr %s300, 14
      %s302 = smul.addr %s298, 140
      %s303 = sadd.s32 %s301, %s302
      %s304 = smul.addr %s303, 4
      %s305 = scalar_lea.vmem %s2, %s304
      %s306 = sadd.s32 %s20, 2
      %p307 = scmp.lt.s32.totalorder %s19, 1
      %s308 = scalar_select %p307, %s19, 1
      %p309 = scmp.lt.s32.totalorder %s20, 7
      %s310 = scalar_select %p309, %s20, 7
      %s311 = smul.addr %s310, 10
      %s312 = smul.addr %s308, 80
      %s313 = sadd.s32 %s311, %s312
      %s314 = smul.addr %s313, 8
      %s315 = scalar_lea.vmem %s4, %s314
      %v317 = vld [vmem:[%s284] sm:$0xf]
      %v318 = vld [vmem:[%s284 + $0x4] sm:$0xf]
      %v319 = vld [vmem:[%s284 + $0x8] sm:$0xf]
      %v320 = vld [vmem:[%s284 + $0xc] sm:$0xf]
      %v321 = vld [vmem:[%s284 + $0x10] sm:$0xf]
      %v322 = vld [vmem:[%s284 + $0x14] sm:$0xf]
      %v323 = vld [vmem:[%s284 + $0x18] sm:$0xf]
      %v324 = vld [vmem:[%s284 + $0x1c] sm:$0xf]
      %v325 = vld [vmem:[%s284 + $0x20] sm:$0xf]
      %v326 = vld [vmem:[%s284 + $0x24] sm:$0xf]
      %v327 = vld [vmem:[%s284 + $0x28] sm:$0xf]
      %v328 = vld [vmem:[%s284 + $0x2c] sm:$0xf]
      %v329 = vld [vmem:[%s284 + $0x30] sm:$0xf]
      %v330 = vld [vmem:[%s3] sm:$0xf]
      %s331 = scalar_lea.vmem %s3, 4
      %v332 = vld [vmem:[%s331] sm:$0xf]
      %v344 = vunpack.c.l.b16 %v317
      %v345 = vunpack.c.l.b16 %v318
      %v346 = vunpack.c.l.b16 %v319
      %v347 = vunpack.c.l.b16 %v320
      %v348 = vunpack.c.l.b16 %v321
      %v349 = vunpack.c.l.b16 %v322
      %v350 = vunpack.c.l.b16 %v323
      %v351 = vunpack.c.l.b16 %v324
      %v352 = vunpack.c.l.b16 %v325
      %v353 = vunpack.c.l.b16 %v326
      %v354 = vunpack.c.l.b16 %v327
      %v355 = vpack.c.b16 %v345, %v344
      %v356 = vpack.c.b16 %v347, %v346
      %v357 = vpack.c.b16 %v349, %v348
      %v358 = vpack.c.b16 %v351, %v350
      %v359 = vpack.c.b16 %v353, %v352
      %v360 = vpack.c.b16 %v354, %v354
      %vm361 = vsmask.f32 7424
      %v363 = vshrl.u32 %v355, 16
      %v365 = vshll.u32 %v355, 16
      %v367 = vrot.slane %v365, 1
      %v368 = vor.u32 %v363, %v367
      %v370 = vshll.u32 %v356, 16
      %v372 = vrot.slane %v370, 1
      %v373 = vsel %vm361, %v368, %v372
      %v374 = vshrl.u32 %v356, 16
      %v376 = vor.u32 %v374, %v372
      %v378 = vshll.u32 %v357, 16
      %v380 = vrot.slane %v378, 1
      %v381 = vsel %vm361, %v376, %v380
      %v382 = vshrl.u32 %v357, 16
      %v384 = vor.u32 %v382, %v380
      %v386 = vshll.u32 %v358, 16
      %v388 = vrot.slane %v386, 1
      %v389 = vsel %vm361, %v384, %v388
      %v390 = vshrl.u32 %v358, 16
      %v392 = vor.u32 %v390, %v388
      %v394 = vshll.u32 %v359, 16
      %v396 = vrot.slane %v394, 1
      %v397 = vsel %vm361, %v392, %v396
      %v398 = vshrl.u32 %v359, 16
      %v400 = vor.u32 %v398, %v396
      %v402 = vshll.u32 %v360, 16
      %v404 = vrot.slane %v402, 1
      %v405 = vsel %vm361, %v400, %v404
      %vm406 = vcmask 64512
      %v408 = vsel %vm406, %v373, 0
      %v411 = vsel %vm406, %v381, 0
      %v414 = vsel %vm406, %v389, 0
      %v417 = vsel %vm406, %v397, 0
      %v420 = vsel %vm406, %v405, 0
      %vm422 = vcmask 1043456
      %v424 = vsel %vm422, %v332, 0
      %426 = vmatprep.subr.bf16.mxu0 0
      %427 = vmatpush1.bf16.msra.mxu0 %v424
      %428 = vmatprep.subr.bf16.mxu0 0
      %429 = vmatpush1.bf16.msra.mxu0 0
      %430 = vmatprep.subr.bf16.mxu0 0
      %431 = vmatpush1.bf16.msra.mxu0 0
      %432 = vmatprep.subr.bf16.mxu0 0
      %433 = vmatpush1.bf16.msra.mxu0 0
      %434 = vmatprep.subr.bf16.mxu0 0
      %435 = vmatpush1.bf16.msra.mxu0 0
      %436 = vmatprep.subr.bf16.mxu0 0
      %437 = vmatpush1.bf16.msra.mxu0 0
      %438 = vmatprep.subr.bf16.mxu0 0
      %439 = vmatpush1.bf16.msra.mxu0 0
      %440 = vmatprep.subr.bf16.mxu0 0
      %441 = vmatpush1.bf16.msra.mxu0 0
      %442 = vmatprep.subr.bf16.mxu0 0
      %443 = vmatpush1.bf16.msra.mxu0 0
      %444 = vmatprep.subr.bf16.mxu0 0
      %445 = vmatpush1.bf16.msra.mxu0 0
      %446 = vmatprep.subr.bf16.mxu0 0
      %447 = vmatpush1.bf16.msra.mxu0 0
      %448 = vmatprep.subr.bf16.mxu0 0
      %449 = vmatpush1.bf16.msra.mxu0 0
      %450 = vmatprep.subr.bf16.mxu0 0
      %451 = vmatpush1.bf16.msra.mxu0 0
      %452 = vmatprep.subr.bf16.mxu0 0
      %453 = vmatpush1.bf16.msra.mxu0 0
      %454 = vmatprep.subr.bf16.mxu0 0
      %455 = vmatpush1.bf16.msra.mxu0 0
      %456 = vmatprep.subr.bf16.mxu0 0
      %457 = vmatpush1.bf16.msra.mxu0 0
      %458 = vmatprep.mubr.bf16.mxu0 0
      %459 = vmatmul.mubr.bf16.gmra.mrb[0].mxu0 %v408
      %v460 = vpop.f32.mrb[0].mxu0
      %v461 = vadd.f32 0.0, %v460
      %v462 = vpop.f32.mrb[0].mxu0
      %v463 = vpop.f32.mrb[0].mxu0
      %v464 = vadd.f32 0.0, %v463
      %v465 = vpop.f32.mrb[0].mxu0
      %466 = vmatprep.mubr.bf16.mxu0 0
      %467 = vmatmul.mubr.bf16.gmra.mrb[0].mxu0 %v411
      %v468 = vpop.f32.mrb[0].mxu0
      %v469 = vadd.f32 0.0, %v468
      %v470 = vpop.f32.mrb[0].mxu0
      %v471 = vpop.f32.mrb[0].mxu0
      %v472 = vadd.f32 0.0, %v471
      %v473 = vpop.f32.mrb[0].mxu0
      %474 = vmatprep.mubr.bf16.mxu0 0
      %475 = vmatmul.mubr.bf16.gmra.mrb[0].mxu0 %v414
      %v476 = vpop.f32.mrb[0].mxu0
      %v477 = vadd.f32 0.0, %v476
      %v478 = vpop.f32.mrb[0].mxu0
      %v479 = vpop.f32.mrb[0].mxu0
      %v480 = vadd.f32 0.0, %v479
      %v481 = vpop.f32.mrb[0].mxu0
      %482 = vmatprep.mubr.bf16.mxu0 0
      %483 = vmatmul.mubr.bf16.gmra.mrb[0].mxu0 %v417
      %v484 = vpop.f32.mrb[0].mxu0
      %v485 = vadd.f32 0.0, %v484
      %v486 = vpop.f32.mrb[0].mxu0
      %v487 = vpop.f32.mrb[0].mxu0
      %v488 = vadd.f32 0.0, %v487
      %v489 = vpop.f32.mrb[0].mxu0
      %490 = vmatprep.mubr.bf16.mxu0 0
      %491 = vmatmul.mubr.bf16.gmra.mrb[0].mxu0 %v420
      %v492 = vpop.f32.mrb[0].mxu0
      %v493 = vadd.f32 0.0, %v492
      %v494 = vpop.f32.mrb[0].mxu0
      %v495 = vpop.f32.mrb[0].mxu0
      %v496 = vadd.f32 0.0, %v495
      %v497 = vpop.f32.mrb[0].mxu0
      %498 = vdwg.mxu0
      %v499 = vsel %vm406, %v355, 0
      %v501 = vsel %vm406, %v356, 0
      %v503 = vsel %vm406, %v357, 0
      %v505 = vsel %vm406, %v358, 0
      %v507 = vsel %vm406, %v359, 0
      %v510 = vsel %vm422, %v330, 0
      %512 = vmatprep.subr.bf16.mxu0 0
      %513 = vmatpush1.bf16.msra.mxu0 %v510
      %514 = vmatprep.subr.bf16.mxu0 0
      %515 = vmatpush1.bf16.msra.mxu0 0
      %516 = vmatprep.subr.bf16.mxu0 0
      %517 = vmatpush1.bf16.msra.mxu0 0
      %518 = vmatprep.subr.bf16.mxu0 0
      %519 = vmatpush1.bf16.msra.mxu0 0
      %520 = vmatprep.subr.bf16.mxu0 0
      %521 = vmatpush1.bf16.msra.mxu0 0
      %522 = vmatprep.subr.bf16.mxu0 0
      %523 = vmatpush1.bf16.msra.mxu0 0
      %524 = vmatprep.subr.bf16.mxu0 0
      %525 = vmatpush1.bf16.msra.mxu0 0
      %526 = vmatprep.subr.bf16.mxu0 0
      %527 = vmatpush1.bf16.msra.mxu0 0
      %528 = vmatprep.subr.bf16.mxu0 0
      %529 = vmatpush1.bf16.msra.mxu0 0
      %530 = vmatprep.subr.bf16.mxu0 0
      %531 = vmatpush1.bf16.msra.mxu0 0
      %532 = vmatprep.subr.bf16.mxu0 0
      %533 = vmatpush1.bf16.msra.mxu0 0
      %534 = vmatprep.subr.bf16.mxu0 0
      %535 = vmatpush1.bf16.msra.mxu0 0
      %536 = vmatprep.subr.bf16.mxu0 0
      %537 = vmatpush1.bf16.msra.mxu0 0
      %538 = vmatprep.subr.bf16.mxu0 0
      %539 = vmatpush1.bf16.msra.mxu0 0
      %540 = vmatprep.subr.bf16.mxu0 0
      %541 = vmatpush1.bf16.msra.mxu0 0
      %542 = vmatprep.subr.bf16.mxu0 0
      %543 = vmatpush1.bf16.msra.mxu0 0
      %544 = vmatprep.mubr.bf16.mxu0 0
      %545 = vmatmul.mubr.bf16.gmra.mrb[0].mxu0 %v499
      %v546 = vpop.f32.mrb[0].mxu0
      %v547 = vadd.f32 %v461, %v546
      %v548 = vpop.f32.mrb[0].mxu0
      %v549 = vpop.f32.mrb[0].mxu0
      %v550 = vadd.f32 %v464, %v549
      %v551 = vpop.f32.mrb[0].mxu0
      %552 = vmatprep.mubr.bf16.mxu0 0
      %553 = vmatmul.mubr.bf16.gmra.mrb[0].mxu0 %v501
      %v554 = vpop.f32.mrb[0].mxu0
      %v555 = vadd.f32 %v469, %v554
      %v556 = vpop.f32.mrb[0].mxu0
      %v557 = vpop.f32.mrb[0].mxu0
      %v558 = vadd.f32 %v472, %v557
      %v559 = vpop.f32.mrb[0].mxu0
      %560 = vmatprep.mubr.bf16.mxu0 0
      %561 = vmatmul.mubr.bf16.gmra.mrb[0].mxu0 %v503
      %v562 = vpop.f32.mrb[0].mxu0
      %v563 = vadd.f32 %v477, %v562
      %v564 = vpop.f32.mrb[0].mxu0
      %v565 = vpop.f32.mrb[0].mxu0
      %v566 = vadd.f32 %v480, %v565
      %v567 = vpop.f32.mrb[0].mxu0
      %568 = vmatprep.mubr.bf16.mxu0 0
      %569 = vmatmul.mubr.bf16.gmra.mrb[0].mxu0 %v505
      %v570 = vpop.f32.mrb[0].mxu0
      %v571 = vadd.f32 %v485, %v570
      %v572 = vpop.f32.mrb[0].mxu0
      %v573 = vpop.f32.mrb[0].mxu0
      %v574 = vadd.f32 %v488, %v573
      %v575 = vpop.f32.mrb[0].mxu0
      %576 = vmatprep.mubr.bf16.mxu0 0
      %577 = vmatmul.mubr.bf16.gmra.mrb[0].mxu0 %v507
      %v578 = vpop.f32.mrb[0].mxu0
      %v579 = vadd.f32 %v493, %v578
      %v580 = vpop.f32.mrb[0].mxu0
      %v581 = vpop.f32.mrb[0].mxu0
      %v582 = vadd.f32 %v496, %v581
      %v583 = vpop.f32.mrb[0].mxu0
      %584 = vdwg.mxu0
      %s585 = scalar_lea.vmem %s3, 8
      %v586 = vld [vmem:[%s585] sm:$0xf]
      %vm587 = vcmask 1046528
      %v588 = vrot.slane %v355, 1
      %v589 = vrot.slane %v356, 1
      %v590 = vsel %vm587, %v588, %v589
      %v591 = vrot.slane %v357, 1
      %v592 = vsel %vm587, %v589, %v591
      %v593 = vrot.slane %v358, 1
      %v594 = vsel %vm587, %v591, %v593
      %v595 = vrot.slane %v359, 1
      %v596 = vsel %vm587, %v593, %v595
      %v597 = vrot.slane %v360, 1
      %v598 = vsel %vm587, %v595, %v597
      %v600 = vsel %vm406, %v590, 0
      %v603 = vsel %vm406, %v592, 0
      %v606 = vsel %vm406, %v594, 0
      %v609 = vsel %vm406, %v596, 0
      %v612 = vsel %vm406, %v598, 0
      %v615 = vsel %vm422, %v586, 0
      %617 = vmatprep.subr.bf16.mxu0 0
      %618 = vmatpush1.bf16.msra.mxu0 %v615
      %619 = vmatprep.subr.bf16.mxu0 0
      %620 = vmatpush1.bf16.msra.mxu0 0
      %621 = vmatprep.subr.bf16.mxu0 0
      %622 = vmatpush1.bf16.msra.mxu0 0
      %623 = vmatprep.subr.bf16.mxu0 0
      %624 = vmatpush1.bf16.msra.mxu0 0
      %625 = vmatprep.subr.bf16.mxu0 0
      %626 = vmatpush1.bf16.msra.mxu0 0
      %627 = vmatprep.subr.bf16.mxu0 0
      %628 = vmatpush1.bf16.msra.mxu0 0
      %629 = vmatprep.subr.bf16.mxu0 0
      %630 = vmatpush1.bf16.msra.mxu0 0
      %631 = vmatprep.subr.bf16.mxu0 0
      %632 = vmatpush1.bf16.msra.mxu0 0
      %633 = vmatprep.subr.bf16.mxu0 0
      %634 = vmatpush1.bf16.msra.mxu0 0
      %635 = vmatprep.subr.bf16.mxu0 0
      %636 = vmatpush1.bf16.msra.mxu0 0
      %637 = vmatprep.subr.bf16.mxu0 0
      %638 = vmatpush1.bf16.msra.mxu0 0
      %639 = vmatprep.subr.bf16.mxu0 0
      %640 = vmatpush1.bf16.msra.mxu0 0
      %641 = vmatprep.subr.bf16.mxu0 0
      %642 = vmatpush1.bf16.msra.mxu0 0
      %643 = vmatprep.subr.bf16.mxu0 0
      %644 = vmatpush1.bf16.msra.mxu0 0
      %645 = vmatprep.subr.bf16.mxu0 0
      %646 = vmatpush1.bf16.msra.mxu0 0
      %647 = vmatprep.subr.bf16.mxu0 0
      %648 = vmatpush1.bf16.msra.mxu0 0
      %649 = vmatprep.mubr.bf16.mxu0 0
      %650 = vmatmul.mubr.bf16.gmra.mrb[0].mxu0 %v600
      %v651 = vpop.f32.mrb[0].mxu0
      %v652 = vadd.f32 0.0, %v651
      %v653 = vpop.f32.mrb[0].mxu0
      %v654 = vpop.f32.mrb[0].mxu0
      %v655 = vadd.f32 0.0, %v654
      %v656 = vpop.f32.mrb[0].mxu0
      %657 = vmatprep.mubr.bf16.mxu0 0
      %658 = vmatmul.mubr.bf16.gmra.mrb[0].mxu0 %v603
      %v659 = vpop.f32.mrb[0].mxu0
      %v660 = vadd.f32 0.0, %v659
      %v661 = vpop.f32.mrb[0].mxu0
      %v662 = vpop.f32.mrb[0].mxu0
      %v663 = vadd.f32 0.0, %v662
      %v664 = vpop.f32.mrb[0].mxu0
      %665 = vmatprep.mubr.bf16.mxu0 0
      %666 = vmatmul.mubr.bf16.gmra.mrb[0].mxu0 %v606
      %v667 = vpop.f32.mrb[0].mxu0
      %v668 = vadd.f32 0.0, %v667
      %v669 = vpop.f32.mrb[0].mxu0
      %v670 = vpop.f32.mrb[0].mxu0
      %v671 = vadd.f32 0.0, %v670
      %v672 = vpop.f32.mrb[0].mxu0
      %673 = vmatprep.mubr.bf16.mxu0 0
      %674 = vmatmul.mubr.bf16.gmra.mrb[0].mxu0 %v609
      %v675 = vpop.f32.mrb[0].mxu0
      %v676 = vadd.f32 0.0, %v675
      %v677 = vpop.f32.mrb[0].mxu0
      %v678 = vpop.f32.mrb[0].mxu0
      %v679 = vadd.f32 0.0, %v678
      %v680 = vpop.f32.mrb[0].mxu0
      %681 = vmatprep.mubr.bf16.mxu0 0
      %682 = vmatmul.mubr.bf16.gmra.mrb[0].mxu0 %v612
      %v683 = vpop.f32.mrb[0].mxu0
      %v684 = vadd.f32 0.0, %v683
      %v685 = vpop.f32.mrb[0].mxu0
      %v686 = vpop.f32.mrb[0].mxu0
      %v687 = vadd.f32 0.0, %v686
      %v688 = vpop.f32.mrb[0].mxu0
      %689 = vdwg.mxu0
      %v690 = vadd.f32 %v547, %v652
      %v691 = vadd.f32 %v550, %v655
      %v692 = vadd.f32 %v555, %v660
      %v693 = vadd.f32 %v558, %v663
      %v694 = vadd.f32 %v563, %v668
      %v695 = vadd.f32 %v566, %v671
      %v696 = vadd.f32 %v571, %v676
      %v697 = vadd.f32 %v574, %v679
      %v698 = vadd.f32 %v579, %v684
      %v699 = vadd.f32 %v582, %v687
      %s700 = scalar_lea.vmem %s3, 12
      %v701 = vld [vmem:[%s700] sm:$0xf]
      %v703 = vunpack.c.l.b16 %v328
      %v704 = vpack.c.b16 %v346, %v345
      %v705 = vpack.c.b16 %v348, %v347
      %v706 = vpack.c.b16 %v350, %v349
      %v707 = vpack.c.b16 %v352, %v351
      %v708 = vpack.c.b16 %v354, %v353
      %v709 = vpack.c.b16 %v703, %v703
      %v710 = vrot.slane %v704, 1
      %v711 = vrot.slane %v705, 1
      %v712 = vsel %vm587, %v710, %v711
      %v713 = vrot.slane %v706, 1
      %v714 = vsel %vm587, %v711, %v713
      %v715 = vrot.slane %v707, 1
      %v716 = vsel %vm587, %v713, %v715
      %v717 = vrot.slane %v708, 1
      %v718 = vsel %vm587, %v715, %v717
      %v719 = vrot.slane %v709, 1
      %v720 = vsel %vm587, %v717, %v719
      %v722 = vsel %vm406, %v712, 0
      %v725 = vsel %vm406, %v714, 0
      %v728 = vsel %vm406, %v716, 0
      %v731 = vsel %vm406, %v718, 0
      %v734 = vsel %vm406, %v720, 0
      %v737 = vsel %vm422, %v701, 0
      %739 = vmatprep.subr.bf16.mxu0 0
      %740 = vmatpush1.bf16.msra.mxu0 %v737
      %741 = vmatprep.subr.bf16.mxu0 0
      %742 = vmatpush1.bf16.msra.mxu0 0
      %743 = vmatprep.subr.bf16.mxu0 0
      %744 = vmatpush1.bf16.msra.mxu0 0
      %745 = vmatprep.subr.bf16.mxu0 0
      %746 = vmatpush1.bf16.msra.mxu0 0
      %747 = vmatprep.subr.bf16.mxu0 0
      %748 = vmatpush1.bf16.msra.mxu0 0
      %749 = vmatprep.subr.bf16.mxu0 0
      %750 = vmatpush1.bf16.msra.mxu0 0
      %751 = vmatprep.subr.bf16.mxu0 0
      %752 = vmatpush1.bf16.msra.mxu0 0
      %753 = vmatprep.subr.bf16.mxu0 0
      %754 = vmatpush1.bf16.msra.mxu0 0
      %755 = vmatprep.subr.bf16.mxu0 0
      %756 = vmatpush1.bf16.msra.mxu0 0
      %757 = vmatprep.subr.bf16.mxu0 0
      %758 = vmatpush1.bf16.msra.mxu0 0
      %759 = vmatprep.subr.bf16.mxu0 0
      %760 = vmatpush1.bf16.msra.mxu0 0
      %761 = vmatprep.subr.bf16.mxu0 0
      %762 = vmatpush1.bf16.msra.mxu0 0
      %763 = vmatprep.subr.bf16.mxu0 0
      %764 = vmatpush1.bf16.msra.mxu0 0
      %765 = vmatprep.subr.bf16.mxu0 0
      %766 = vmatpush1.bf16.msra.mxu0 0
      %767 = vmatprep.subr.bf16.mxu0 0
      %768 = vmatpush1.bf16.msra.mxu0 0
      %769 = vmatprep.subr.bf16.mxu0 0
      %770 = vmatpush1.bf16.msra.mxu0 0
      %771 = vmatprep.mubr.bf16.mxu0 0
      %772 = vmatmul.mubr.bf16.gmra.mrb[0].mxu0 %v722
      %v773 = vpop.f32.mrb[0].mxu0
      %v774 = vadd.f32 0.0, %v773
      %v775 = vpop.f32.mrb[0].mxu0
      %v776 = vpop.f32.mrb[0].mxu0
      %v777 = vadd.f32 0.0, %v776
      %v778 = vpop.f32.mrb[0].mxu0
      %779 = vmatprep.mubr.bf16.mxu0 0
      %780 = vmatmul.mubr.bf16.gmra.mrb[0].mxu0 %v725
      %v781 = vpop.f32.mrb[0].mxu0
      %v782 = vadd.f32 0.0, %v781
      %v783 = vpop.f32.mrb[0].mxu0
      %v784 = vpop.f32.mrb[0].mxu0
      %v785 = vadd.f32 0.0, %v784
      %v786 = vpop.f32.mrb[0].mxu0
      %787 = vmatprep.mubr.bf16.mxu0 0
      %788 = vmatmul.mubr.bf16.gmra.mrb[0].mxu0 %v728
      %v789 = vpop.f32.mrb[0].mxu0
      %v790 = vadd.f32 0.0, %v789
      %v791 = vpop.f32.mrb[0].mxu0
      %v792 = vpop.f32.mrb[0].mxu0
      %v793 = vadd.f32 0.0, %v792
      %v794 = vpop.f32.mrb[0].mxu0
      %795 = vmatprep.mubr.bf16.mxu0 0
      %796 = vmatmul.mubr.bf16.gmra.mrb[0].mxu0 %v731
      %v797 = vpop.f32.mrb[0].mxu0
      %v798 = vadd.f32 0.0, %v797
      %v799 = vpop.f32.mrb[0].mxu0
      %v800 = vpop.f32.mrb[0].mxu0
      %v801 = vadd.f32 0.0, %v800
      %v802 = vpop.f32.mrb[0].mxu0
      %803 = vmatprep.mubr.bf16.mxu0 0
      %804 = vmatmul.mubr.bf16.gmra.mrb[0].mxu0 %v734
      %v805 = vpop.f32.mrb[0].mxu0
      %v806 = vadd.f32 0.0, %v805
      %v807 = vpop.f32.mrb[0].mxu0
      %v808 = vpop.f32.mrb[0].mxu0
      %v809 = vadd.f32 0.0, %v808
      %v810 = vpop.f32.mrb[0].mxu0
      %811 = vdwg.mxu0
      %v812 = vadd.f32 %v690, %v774
      %v813 = vadd.f32 %v691, %v777
      %v814 = vadd.f32 %v692, %v782
      %v815 = vadd.f32 %v693, %v785
      %v816 = vadd.f32 %v694, %v790
      %v817 = vadd.f32 %v695, %v793
      %v818 = vadd.f32 %v696, %v798
      %v819 = vadd.f32 %v697, %v801
      %v820 = vadd.f32 %v698, %v806
      %v821 = vadd.f32 %v699, %v809
      %s822 = scalar_lea.vmem %s3, 16
      %v823 = vld [vmem:[%s822] sm:$0xf]
      %vm824 = vsmask.f32 6400
      %v826 = vshrl.u32 %v704, 16
      %v828 = vrot.slane %v826, 1
      %v829 = vshll.u32 %v704, 16
      %v831 = vrot.slane %v829, 2
      %v832 = vor.u32 %v828, %v831
      %v834 = vshrl.u32 %v705, 16
      %v836 = vrot.slane %v834, 1
      %v837 = vshll.u32 %v705, 16
      %v839 = vrot.slane %v837, 2
      %v840 = vor.u32 %v836, %v839
      %v841 = vsel %vm824, %v832, %v840
      %v843 = vshrl.u32 %v706, 16
      %v845 = vrot.slane %v843, 1
      %v846 = vshll.u32 %v706, 16
      %v848 = vrot.slane %v846, 2
      %v849 = vor.u32 %v845, %v848
      %v850 = vsel %vm824, %v840, %v849
      %v852 = vshrl.u32 %v707, 16
      %v854 = vrot.slane %v852, 1
      %v855 = vshll.u32 %v707, 16
      %v857 = vrot.slane %v855, 2
      %v858 = vor.u32 %v854, %v857
      %v859 = vsel %vm824, %v849, %v858
      %v861 = vshrl.u32 %v708, 16
      %v863 = vrot.slane %v861, 1
      %v864 = vshll.u32 %v708, 16
      %v866 = vrot.slane %v864, 2
      %v867 = vor.u32 %v863, %v866
      %v868 = vsel %vm824, %v858, %v867
      %v870 = vshrl.u32 %v709, 16
      %v872 = vrot.slane %v870, 1
      %v873 = vshll.u32 %v709, 16
      %v875 = vrot.slane %v873, 2
      %v876 = vor.u32 %v872, %v875
      %v877 = vsel %vm824, %v867, %v876
      %v879 = vsel %vm406, %v841, 0
      %v882 = vsel %vm406, %v850, 0
      %v885 = vsel %vm406, %v859, 0
      %v888 = vsel %vm406, %v868, 0
      %v891 = vsel %vm406, %v877, 0
      %v894 = vsel %vm422, %v823, 0
      %896 = vmatprep.subr.bf16.mxu0 0
      %897 = vmatpush1.bf16.msra.mxu0 %v894
      %898 = vmatprep.subr.bf16.mxu0 0
      %899 = vmatpush1.bf16.msra.mxu0 0
      %900 = vmatprep.subr.bf16.mxu0 0
      %901 = vmatpush1.bf16.msra.mxu0 0
      %902 = vmatprep.subr.bf16.mxu0 0
      %903 = vmatpush1.bf16.msra.mxu0 0
      %904 = vmatprep.subr.bf16.mxu0 0
      %905 = vmatpush1.bf16.msra.mxu0 0
      %906 = vmatprep.subr.bf16.mxu0 0
      %907 = vmatpush1.bf16.msra.mxu0 0
      %908 = vmatprep.subr.bf16.mxu0 0
      %909 = vmatpush1.bf16.msra.mxu0 0
      %910 = vmatprep.subr.bf16.mxu0 0
      %911 = vmatpush1.bf16.msra.mxu0 0
      %912 = vmatprep.subr.bf16.mxu0 0
      %913 = vmatpush1.bf16.msra.mxu0 0
      %914 = vmatprep.subr.bf16.mxu0 0
      %915 = vmatpush1.bf16.msra.mxu0 0
      %916 = vmatprep.subr.bf16.mxu0 0
      %917 = vmatpush1.bf16.msra.mxu0 0
      %918 = vmatprep.subr.bf16.mxu0 0
      %919 = vmatpush1.bf16.msra.mxu0 0
      %920 = vmatprep.subr.bf16.mxu0 0
      %921 = vmatpush1.bf16.msra.mxu0 0
      %922 = vmatprep.subr.bf16.mxu0 0
      %923 = vmatpush1.bf16.msra.mxu0 0
      %924 = vmatprep.subr.bf16.mxu0 0
      %925 = vmatpush1.bf16.msra.mxu0 0
      %926 = vmatprep.subr.bf16.mxu0 0
      %927 = vmatpush1.bf16.msra.mxu0 0
      %928 = vmatprep.mubr.bf16.mxu0 0
      %929 = vmatmul.mubr.bf16.gmra.mrb[0].mxu0 %v879
      %v930 = vpop.f32.mrb[0].mxu0
      %v931 = vadd.f32 0.0, %v930
      %v932 = vpop.f32.mrb[0].mxu0
      %v933 = vpop.f32.mrb[0].mxu0
      %v934 = vadd.f32 0.0, %v933
      %v935 = vpop.f32.mrb[0].mxu0
      %936 = vmatprep.mubr.bf16.mxu0 0
      %937 = vmatmul.mubr.bf16.gmra.mrb[0].mxu0 %v882
      %v938 = vpop.f32.mrb[0].mxu0
      %v939 = vadd.f32 0.0, %v938
      %v940 = vpop.f32.mrb[0].mxu0
      %v941 = vpop.f32.mrb[0].mxu0
      %v942 = vadd.f32 0.0, %v941
      %v943 = vpop.f32.mrb[0].mxu0
      %944 = vmatprep.mubr.bf16.mxu0 0
      %945 = vmatmul.mubr.bf16.gmra.mrb[0].mxu0 %v885
      %v946 = vpop.f32.mrb[0].mxu0
      %v947 = vadd.f32 0.0, %v946
      %v948 = vpop.f32.mrb[0].mxu0
      %v949 = vpop.f32.mrb[0].mxu0
      %v950 = vadd.f32 0.0, %v949
      %v951 = vpop.f32.mrb[0].mxu0
      %952 = vmatprep.mubr.bf16.mxu0 0
      %953 = vmatmul.mubr.bf16.gmra.mrb[0].mxu0 %v888
      %v954 = vpop.f32.mrb[0].mxu0
      %v955 = vadd.f32 0.0, %v954
      %v956 = vpop.f32.mrb[0].mxu0
      %v957 = vpop.f32.mrb[0].mxu0
      %v958 = vadd.f32 0.0, %v957
      %v959 = vpop.f32.mrb[0].mxu0
      %960 = vmatprep.mubr.bf16.mxu0 0
      %961 = vmatmul.mubr.bf16.gmra.mrb[0].mxu0 %v891
      %v962 = vpop.f32.mrb[0].mxu0
      %v963 = vadd.f32 0.0, %v962
      %v964 = vpop.f32.mrb[0].mxu0
      %v965 = vpop.f32.mrb[0].mxu0
      %v966 = vadd.f32 0.0, %v965
      %v967 = vpop.f32.mrb[0].mxu0
      %968 = vdwg.mxu0
      %v969 = vadd.f32 %v812, %v931
      %v970 = vadd.f32 %v813, %v934
      %v971 = vadd.f32 %v814, %v939
      %v972 = vadd.f32 %v815, %v942
      %v973 = vadd.f32 %v816, %v947
      %v974 = vadd.f32 %v817, %v950
      %v975 = vadd.f32 %v818, %v955
      %v976 = vadd.f32 %v819, %v958
      %v977 = vadd.f32 %v820, %v963
      %v978 = vadd.f32 %v821, %v966
      %s979 = scalar_lea.vmem %s3, 20
      %v980 = vld [vmem:[%s979] sm:$0xf]
      %vm981 = vcmask 1045504
      %v982 = vrot.slane %v704, 2
      %v983 = vrot.slane %v705, 2
      %v984 = vsel %vm981, %v982, %v983
      %v985 = vrot.slane %v706, 2
      %v986 = vsel %vm981, %v983, %v985
      %v987 = vrot.slane %v707, 2
      %v988 = vsel %vm981, %v985, %v987
      %v989 = vrot.slane %v708, 2
      %v990 = vsel %vm981, %v987, %v989
      %v991 = vrot.slane %v709, 2
      %v992 = vsel %vm981, %v989, %v991
      %v994 = vsel %vm406, %v984, 0
      %v997 = vsel %vm406, %v986, 0
      %v1000 = vsel %vm406, %v988, 0
      %v1003 = vsel %vm406, %v990, 0
      %v1006 = vsel %vm406, %v992, 0
      %v1009 = vsel %vm422, %v980, 0
      %1011 = vmatprep.subr.bf16.mxu0 0
      %1012 = vmatpush1.bf16.msra.mxu0 %v1009
      %1013 = vmatprep.subr.bf16.mxu0 0
      %1014 = vmatpush1.bf16.msra.mxu0 0
      %1015 = vmatprep.subr.bf16.mxu0 0
      %1016 = vmatpush1.bf16.msra.mxu0 0
      %1017 = vmatprep.subr.bf16.mxu0 0
      %1018 = vmatpush1.bf16.msra.mxu0 0
      %1019 = vmatprep.subr.bf16.mxu0 0
      %1020 = vmatpush1.bf16.msra.mxu0 0
      %1021 = vmatprep.subr.bf16.mxu0 0
      %1022 = vmatpush1.bf16.msra.mxu0 0
      %1023 = vmatprep.subr.bf16.mxu0 0
      %1024 = vmatpush1.bf16.msra.mxu0 0
      %1025 = vmatprep.subr.bf16.mxu0 0
      %1026 = vmatpush1.bf16.msra.mxu0 0
      %1027 = vmatprep.subr.bf16.mxu0 0
      %1028 = vmatpush1.bf16.msra.mxu0 0
      %1029 = vmatprep.subr.bf16.mxu0 0
      %1030 = vmatpush1.bf16.msra.mxu0 0
      %1031 = vmatprep.subr.bf16.mxu0 0
      %1032 = vmatpush1.bf16.msra.mxu0 0
      %1033 = vmatprep.subr.bf16.mxu0 0
      %1034 = vmatpush1.bf16.msra.mxu0 0
      %1035 = vmatprep.subr.bf16.mxu0 0
      %1036 = vmatpush1.bf16.msra.mxu0 0
      %1037 = vmatprep.subr.bf16.mxu0 0
      %1038 = vmatpush1.bf16.msra.mxu0 0
      %1039 = vmatprep.subr.bf16.mxu0 0
      %1040 = vmatpush1.bf16.msra.mxu0 0
      %1041 = vmatprep.subr.bf16.mxu0 0
      %1042 = vmatpush1.bf16.msra.mxu0 0
      %1043 = vmatprep.mubr.bf16.mxu0 0
      %1044 = vmatmul.mubr.bf16.gmra.mrb[0].mxu0 %v994
      %v1045 = vpop.f32.mrb[0].mxu0
      %v1046 = vadd.f32 0.0, %v1045
      %v1047 = vpop.f32.mrb[0].mxu0
      %v1048 = vpop.f32.mrb[0].mxu0
      %v1049 = vadd.f32 0.0, %v1048
      %v1050 = vpop.f32.mrb[0].mxu0
      %1051 = vmatprep.mubr.bf16.mxu0 0
      %1052 = vmatmul.mubr.bf16.gmra.mrb[0].mxu0 %v997
      %v1053 = vpop.f32.mrb[0].mxu0
      %v1054 = vadd.f32 0.0, %v1053
      %v1055 = vpop.f32.mrb[0].mxu0
      %v1056 = vpop.f32.mrb[0].mxu0
      %v1057 = vadd.f32 0.0, %v1056
      %v1058 = vpop.f32.mrb[0].mxu0
      %1059 = vmatprep.mubr.bf16.mxu0 0
      %1060 = vmatmul.mubr.bf16.gmra.mrb[0].mxu0 %v1000
      %v1061 = vpop.f32.mrb[0].mxu0
      %v1062 = vadd.f32 0.0, %v1061
      %v1063 = vpop.f32.mrb[0].mxu0
      %v1064 = vpop.f32.mrb[0].mxu0
      %v1065 = vadd.f32 0.0, %v1064
      %v1066 = vpop.f32.mrb[0].mxu0
      %1067 = vmatprep.mubr.bf16.mxu0 0
      %1068 = vmatmul.mubr.bf16.gmra.mrb[0].mxu0 %v1003
      %v1069 = vpop.f32.mrb[0].mxu0
      %v1070 = vadd.f32 0.0, %v1069
      %v1071 = vpop.f32.mrb[0].mxu0
      %v1072 = vpop.f32.mrb[0].mxu0
      %v1073 = vadd.f32 0.0, %v1072
      %v1074 = vpop.f32.mrb[0].mxu0
      %1075 = vmatprep.mubr.bf16.mxu0 0
      %1076 = vmatmul.mubr.bf16.gmra.mrb[0].mxu0 %v1006
      %v1077 = vpop.f32.mrb[0].mxu0
      %v1078 = vadd.f32 0.0, %v1077
      %v1079 = vpop.f32.mrb[0].mxu0
      %v1080 = vpop.f32.mrb[0].mxu0
      %v1081 = vadd.f32 0.0, %v1080
      %v1082 = vpop.f32.mrb[0].mxu0
      %1083 = vdwg.mxu0
      %v1084 = vadd.f32 %v969, %v1046
      %v1085 = vadd.f32 %v970, %v1049
      %v1086 = vadd.f32 %v971, %v1054
      %v1087 = vadd.f32 %v972, %v1057
      %v1088 = vadd.f32 %v973, %v1062
      %v1089 = vadd.f32 %v974, %v1065
      %v1090 = vadd.f32 %v975, %v1070
      %v1091 = vadd.f32 %v976, %v1073
      %v1092 = vadd.f32 %v977, %v1078
      %v1093 = vadd.f32 %v978, %v1081
      %s1094 = scalar_lea.vmem %s3, 24
      %v1095 = vld [vmem:[%s1094] sm:$0xf]
      %v1097 = vunpack.c.l.b16 %v329
      %v1098 = vpack.c.b16 %v703, %v354
      %v1099 = vpack.c.b16 %v1097, %v1097
      %v1100 = vrot.slane %v356, 2
      %v1101 = vrot.slane %v357, 2
      %v1102 = vsel %vm981, %v1100, %v1101
      %v1103 = vrot.slane %v358, 2
      %v1104 = vsel %vm981, %v1101, %v1103
      %v1105 = vrot.slane %v359, 2
      %v1106 = vsel %vm981, %v1103, %v1105
      %v1107 = vrot.slane %v1098, 2
      %v1108 = vsel %vm981, %v1105, %v1107
      %v1109 = vrot.slane %v1099, 2
      %v1110 = vsel %vm981, %v1107, %v1109
      %v1112 = vsel %vm406, %v1102, 0
      %v1115 = vsel %vm406, %v1104, 0
      %v1118 = vsel %vm406, %v1106, 0
      %v1121 = vsel %vm406, %v1108, 0
      %v1124 = vsel %vm406, %v1110, 0
      %v1127 = vsel %vm422, %v1095, 0
      %1129 = vmatprep.subr.bf16.mxu0 0
      %1130 = vmatpush1.bf16.msra.mxu0 %v1127
      %1131 = vmatprep.subr.bf16.mxu0 0
      %1132 = vmatpush1.bf16.msra.mxu0 0
      %1133 = vmatprep.subr.bf16.mxu0 0
      %1134 = vmatpush1.bf16.msra.mxu0 0
      %1135 = vmatprep.subr.bf16.mxu0 0
      %1136 = vmatpush1.bf16.msra.mxu0 0
      %1137 = vmatprep.subr.bf16.mxu0 0
      %1138 = vmatpush1.bf16.msra.mxu0 0
      %1139 = vmatprep.subr.bf16.mxu0 0
      %1140 = vmatpush1.bf16.msra.mxu0 0
      %1141 = vmatprep.subr.bf16.mxu0 0
      %1142 = vmatpush1.bf16.msra.mxu0 0
      %1143 = vmatprep.subr.bf16.mxu0 0
      %1144 = vmatpush1.bf16.msra.mxu0 0
      %1145 = vmatprep.subr.bf16.mxu0 0
      %1146 = vmatpush1.bf16.msra.mxu0 0
      %1147 = vmatprep.subr.bf16.mxu0 0
      %1148 = vmatpush1.bf16.msra.mxu0 0
      %1149 = vmatprep.subr.bf16.mxu0 0
      %1150 = vmatpush1.bf16.msra.mxu0 0
      %1151 = vmatprep.subr.bf16.mxu0 0
      %1152 = vmatpush1.bf16.msra.mxu0 0
      %1153 = vmatprep.subr.bf16.mxu0 0
      %1154 = vmatpush1.bf16.msra.mxu0 0
      %1155 = vmatprep.subr.bf16.mxu0 0
      %1156 = vmatpush1.bf16.msra.mxu0 0
      %1157 = vmatprep.subr.bf16.mxu0 0
      %1158 = vmatpush1.bf16.msra.mxu0 0
      %1159 = vmatprep.subr.bf16.mxu0 0
      %1160 = vmatpush1.bf16.msra.mxu0 0
      %1161 = vmatprep.mubr.bf16.mxu0 0
      %1162 = vmatmul.mubr.bf16.gmra.mrb[0].mxu0 %v1112
      %v1163 = vpop.f32.mrb[0].mxu0
      %v1164 = vadd.f32 0.0, %v1163
      %v1165 = vpop.f32.mrb[0].mxu0
      %v1166 = vpop.f32.mrb[0].mxu0
      %v1167 = vadd.f32 0.0, %v1166
      %v1168 = vpop.f32.mrb[0].mxu0
      %1169 = vmatprep.mubr.bf16.mxu0 0
      %1170 = vmatmul.mubr.bf16.gmra.mrb[0].mxu0 %v1115
      %v1171 = vpop.f32.mrb[0].mxu0
      %v1172 = vadd.f32 0.0, %v1171
      %v1173 = vpop.f32.mrb[0].mxu0
      %v1174 = vpop.f32.mrb[0].mxu0
      %v1175 = vadd.f32 0.0, %v1174
      %v1176 = vpop.f32.mrb[0].mxu0
      %1177 = vmatprep.mubr.bf16.mxu0 0
      %1178 = vmatmul.mubr.bf16.gmra.mrb[0].mxu0 %v1118
      %v1179 = vpop.f32.mrb[0].mxu0
      %v1180 = vadd.f32 0.0, %v1179
      %v1181 = vpop.f32.mrb[0].mxu0
      %v1182 = vpop.f32.mrb[0].mxu0
      %v1183 = vadd.f32 0.0, %v1182
      %v1184 = vpop.f32.mrb[0].mxu0
      %1185 = vmatprep.mubr.bf16.mxu0 0
      %1186 = vmatmul.mubr.bf16.gmra.mrb[0].mxu0 %v1121
      %v1187 = vpop.f32.mrb[0].mxu0
      %v1188 = vadd.f32 0.0, %v1187
      %v1189 = vpop.f32.mrb[0].mxu0
      %v1190 = vpop.f32.mrb[0].mxu0
      %v1191 = vadd.f32 0.0, %v1190
      %v1192 = vpop.f32.mrb[0].mxu0
      %1193 = vmatprep.mubr.bf16.mxu0 0
      %1194 = vmatmul.mubr.bf16.gmra.mrb[0].mxu0 %v1124
      %v1195 = vpop.f32.mrb[0].mxu0
      %v1196 = vadd.f32 0.0, %v1195
      %v1197 = vpop.f32.mrb[0].mxu0
      %v1198 = vpop.f32.mrb[0].mxu0
      %v1199 = vadd.f32 0.0, %v1198
      %v1200 = vpop.f32.mrb[0].mxu0
      %1201 = vdwg.mxu0
      %v1202 = vadd.f32 %v1084, %v1164
      %v1203 = vadd.f32 %v1085, %v1167
      %v1204 = vadd.f32 %v1086, %v1172
      %v1205 = vadd.f32 %v1087, %v1175
      %v1206 = vadd.f32 %v1088, %v1180
      %v1207 = vadd.f32 %v1089, %v1183
      %v1208 = vadd.f32 %v1090, %v1188
      %v1209 = vadd.f32 %v1091, %v1191
      %v1210 = vadd.f32 %v1092, %v1196
      %v1211 = vadd.f32 %v1093, %v1199
      %s1212 = scalar_lea.vmem %s3, 28
      %v1213 = vld [vmem:[%s1212] sm:$0xf]
      %vm1214 = vsmask.f32 5376
      %v1215 = vrot.slane %v374, 2
      %v1216 = vrot.slane %v370, 3
      %v1217 = vor.u32 %v1215, %v1216
      %v1218 = vrot.slane %v382, 2
      %v1219 = vrot.slane %v378, 3
      %v1220 = vor.u32 %v1218, %v1219
      %v1221 = vsel %vm1214, %v1217, %v1220
      %v1222 = vrot.slane %v390, 2
      %v1223 = vrot.slane %v386, 3
      %v1224 = vor.u32 %v1222, %v1223
      %v1225 = vsel %vm1214, %v1220, %v1224
      %v1226 = vrot.slane %v398, 2
      %v1227 = vrot.slane %v394, 3
      %v1228 = vor.u32 %v1226, %v1227
      %v1229 = vsel %vm1214, %v1224, %v1228
      %v1231 = vshrl.u32 %v1098, 16
      %v1233 = vrot.slane %v1231, 2
      %v1234 = vshll.u32 %v1098, 16
      %v1236 = vrot.slane %v1234, 3
      %v1237 = vor.u32 %v1233, %v1236
      %v1238 = vsel %vm1214, %v1228, %v1237
      %v1240 = vshrl.u32 %v1099, 16
      %v1242 = vrot.slane %v1240, 2
      %v1243 = vshll.u32 %v1099, 16
      %v1245 = vrot.slane %v1243, 3
      %v1246 = vor.u32 %v1242, %v1245
      %v1247 = vsel %vm1214, %v1237, %v1246
      %v1249 = vsel %vm406, %v1221, 0
      %v1252 = vsel %vm406, %v1225, 0
      %v1255 = vsel %vm406, %v1229, 0
      %v1258 = vsel %vm406, %v1238, 0
      %v1261 = vsel %vm406, %v1247, 0
      %v1264 = vsel %vm422, %v1213, 0
      %1266 = vmatprep.subr.bf16.mxu0 0
      %1267 = vmatpush1.bf16.msra.mxu0 %v1264
      %1268 = vmatprep.subr.bf16.mxu0 0
      %1269 = vmatpush1.bf16.msra.mxu0 0
      %1270 = vmatprep.subr.bf16.mxu0 0
      %1271 = vmatpush1.bf16.msra.mxu0 0
      %1272 = vmatprep.subr.bf16.mxu0 0
      %1273 = vmatpush1.bf16.msra.mxu0 0
      %1274 = vmatprep.subr.bf16.mxu0 0
      %1275 = vmatpush1.bf16.msra.mxu0 0
      %1276 = vmatprep.subr.bf16.mxu0 0
      %1277 = vmatpush1.bf16.msra.mxu0 0
      %1278 = vmatprep.subr.bf16.mxu0 0
      %1279 = vmatpush1.bf16.msra.mxu0 0
      %1280 = vmatprep.subr.bf16.mxu0 0
      %1281 = vmatpush1.bf16.msra.mxu0 0
      %1282 = vmatprep.subr.bf16.mxu0 0
      %1283 = vmatpush1.bf16.msra.mxu0 0
      %1284 = vmatprep.subr.bf16.mxu0 0
      %1285 = vmatpush1.bf16.msra.mxu0 0
      %1286 = vmatprep.subr.bf16.mxu0 0
      %1287 = vmatpush1.bf16.msra.mxu0 0
      %1288 = vmatprep.subr.bf16.mxu0 0
      %1289 = vmatpush1.bf16.msra.mxu0 0
      %1290 = vmatprep.subr.bf16.mxu0 0
      %1291 = vmatpush1.bf16.msra.mxu0 0
      %1292 = vmatprep.subr.bf16.mxu0 0
      %1293 = vmatpush1.bf16.msra.mxu0 0
      %1294 = vmatprep.subr.bf16.mxu0 0
      %1295 = vmatpush1.bf16.msra.mxu0 0
      %1296 = vmatprep.subr.bf16.mxu0 0
      %1297 = vmatpush1.bf16.msra.mxu0 0
      %1298 = vmatprep.mubr.bf16.mxu0 0
      %1299 = vmatmul.mubr.bf16.gmra.mrb[0].mxu0 %v1249
      %v1300 = vpop.f32.mrb[0].mxu0
      %v1301 = vadd.f32 0.0, %v1300
      %v1302 = vpop.f32.mrb[0].mxu0
      %v1303 = vpop.f32.mrb[0].mxu0
      %v1304 = vadd.f32 0.0, %v1303
      %v1305 = vpop.f32.mrb[0].mxu0
      %1306 = vmatprep.mubr.bf16.mxu0 0
      %1307 = vmatmul.mubr.bf16.gmra.mrb[0].mxu0 %v1252
      %v1308 = vpop.f32.mrb[0].mxu0
      %v1309 = vadd.f32 0.0, %v1308
      %v1310 = vpop.f32.mrb[0].mxu0
      %v1311 = vpop.f32.mrb[0].mxu0
      %v1312 = vadd.f32 0.0, %v1311
      %v1313 = vpop.f32.mrb[0].mxu0
      %1314 = vmatprep.mubr.bf16.mxu0 0
      %1315 = vmatmul.mubr.bf16.gmra.mrb[0].mxu0 %v1255
      %v1316 = vpop.f32.mrb[0].mxu0
      %v1317 = vadd.f32 0.0, %v1316
      %v1318 = vpop.f32.mrb[0].mxu0
      %v1319 = vpop.f32.mrb[0].mxu0
      %v1320 = vadd.f32 0.0, %v1319
      %v1321 = vpop.f32.mrb[0].mxu0
      %1322 = vmatprep.mubr.bf16.mxu0 0
      %1323 = vmatmul.mubr.bf16.gmra.mrb[0].mxu0 %v1258
      %v1324 = vpop.f32.mrb[0].mxu0
      %v1325 = vadd.f32 0.0, %v1324
      %v1326 = vpop.f32.mrb[0].mxu0
      %v1327 = vpop.f32.mrb[0].mxu0
      %v1328 = vadd.f32 0.0, %v1327
      %v1329 = vpop.f32.mrb[0].mxu0
      %1330 = vmatprep.mubr.bf16.mxu0 0
      %1331 = vmatmul.mubr.bf16.gmra.mrb[0].mxu0 %v1261
      %v1332 = vpop.f32.mrb[0].mxu0
      %v1333 = vadd.f32 0.0, %v1332
      %v1334 = vpop.f32.mrb[0].mxu0
      %v1335 = vpop.f32.mrb[0].mxu0
      %v1336 = vadd.f32 0.0, %v1335
      %v1337 = vpop.f32.mrb[0].mxu0
      %1338 = vdwg.mxu0
      %v1339 = vadd.f32 %v1202, %v1301
      %v1340 = vadd.f32 %v1203, %v1304
      %v1341 = vadd.f32 %v1204, %v1309
      %v1342 = vadd.f32 %v1205, %v1312
      %v1343 = vadd.f32 %v1206, %v1317
      %v1344 = vadd.f32 %v1207, %v1320
      %v1345 = vadd.f32 %v1208, %v1325
      %v1346 = vadd.f32 %v1209, %v1328
      %v1347 = vadd.f32 %v1210, %v1333
      %v1348 = vadd.f32 %v1211, %v1336
      %s1349 = scalar_lea.vmem %s3, 32
      %v1350 = vld [vmem:[%s1349] sm:$0xf]
      %vm1351 = vcmask 1044480
      %v1352 = vrot.slane %v356, 3
      %v1353 = vrot.slane %v357, 3
      %v1354 = vsel %vm1351, %v1352, %v1353
      %v1355 = vrot.slane %v358, 3
      %v1356 = vsel %vm1351, %v1353, %v1355
      %v1357 = vrot.slane %v359, 3
      %v1358 = vsel %vm1351, %v1355, %v1357
      %v1359 = vrot.slane %v1098, 3
      %v1360 = vsel %vm1351, %v1357, %v1359
      %v1361 = vrot.slane %v1099, 3
      %v1362 = vsel %vm1351, %v1359, %v1361
      %v1364 = vsel %vm406, %v1354, 0
      %v1367 = vsel %vm406, %v1356, 0
      %v1370 = vsel %vm406, %v1358, 0
      %v1373 = vsel %vm406, %v1360, 0
      %v1376 = vsel %vm406, %v1362, 0
      %v1379 = vsel %vm422, %v1350, 0
      %1381 = vmatprep.subr.bf16.mxu0 0
      %1382 = vmatpush1.bf16.msra.mxu0 %v1379
      %1383 = vmatprep.subr.bf16.mxu0 0
      %1384 = vmatpush1.bf16.msra.mxu0 0
      %1385 = vmatprep.subr.bf16.mxu0 0
      %1386 = vmatpush1.bf16.msra.mxu0 0
      %1387 = vmatprep.subr.bf16.mxu0 0
      %1388 = vmatpush1.bf16.msra.mxu0 0
      %1389 = vmatprep.subr.bf16.mxu0 0
      %1390 = vmatpush1.bf16.msra.mxu0 0
      %1391 = vmatprep.subr.bf16.mxu0 0
      %1392 = vmatpush1.bf16.msra.mxu0 0
      %1393 = vmatprep.subr.bf16.mxu0 0
      %1394 = vmatpush1.bf16.msra.mxu0 0
      %1395 = vmatprep.subr.bf16.mxu0 0
      %1396 = vmatpush1.bf16.msra.mxu0 0
      %1397 = vmatprep.subr.bf16.mxu0 0
      %1398 = vmatpush1.bf16.msra.mxu0 0
      %1399 = vmatprep.subr.bf16.mxu0 0
      %1400 = vmatpush1.bf16.msra.mxu0 0
      %1401 = vmatprep.subr.bf16.mxu0 0
      %1402 = vmatpush1.bf16.msra.mxu0 0
      %1403 = vmatprep.subr.bf16.mxu0 0
      %1404 = vmatpush1.bf16.msra.mxu0 0
      %1405 = vmatprep.subr.bf16.mxu0 0
      %1406 = vmatpush1.bf16.msra.mxu0 0
      %1407 = vmatprep.subr.bf16.mxu0 0
      %1408 = vmatpush1.bf16.msra.mxu0 0
      %1409 = vmatprep.subr.bf16.mxu0 0
      %1410 = vmatpush1.bf16.msra.mxu0 0
      %1411 = vmatprep.subr.bf16.mxu0 0
      %1412 = vmatpush1.bf16.msra.mxu0 0
      %1413 = vmatprep.mubr.bf16.mxu0 0
      %1414 = vmatmul.mubr.bf16.gmra.mrb[0].mxu0 %v1364
      %v1415 = vpop.f32.mrb[0].mxu0
      %v1416 = vadd.f32 0.0, %v1415
      %v1417 = vpop.f32.mrb[0].mxu0
      %v1418 = vpop.f32.mrb[0].mxu0
      %v1419 = vadd.f32 0.0, %v1418
      %v1420 = vpop.f32.mrb[0].mxu0
      %1421 = vmatprep.mubr.bf16.mxu0 0
      %1422 = vmatmul.mubr.bf16.gmra.mrb[0].mxu0 %v1367
      %v1423 = vpop.f32.mrb[0].mxu0
      %v1424 = vadd.f32 0.0, %v1423
      %v1425 = vpop.f32.mrb[0].mxu0
      %v1426 = vpop.f32.mrb[0].mxu0
      %v1427 = vadd.f32 0.0, %v1426
      %v1428 = vpop.f32.mrb[0].mxu0
      %1429 = vmatprep.mubr.bf16.mxu0 0
      %1430 = vmatmul.mubr.bf16.gmra.mrb[0].mxu0 %v1370
      %v1431 = vpop.f32.mrb[0].mxu0
      %v1432 = vadd.f32 0.0, %v1431
      %v1433 = vpop.f32.mrb[0].mxu0
      %v1434 = vpop.f32.mrb[0].mxu0
      %v1435 = vadd.f32 0.0, %v1434
      %v1436 = vpop.f32.mrb[0].mxu0
      %1437 = vmatprep.mubr.bf16.mxu0 0
      %1438 = vmatmul.mubr.bf16.gmra.mrb[0].mxu0 %v1373
      %v1439 = vpop.f32.mrb[0].mxu0
      %v1440 = vadd.f32 0.0, %v1439
      %v1441 = vpop.f32.mrb[0].mxu0
      %v1442 = vpop.f32.mrb[0].mxu0
      %v1443 = vadd.f32 0.0, %v1442
      %v1444 = vpop.f32.mrb[0].mxu0
      %1445 = vmatprep.mubr.bf16.mxu0 0
      %1446 = vmatmul.mubr.bf16.gmra.mrb[0].mxu0 %v1376
      %v1447 = vpop.f32.mrb[0].mxu0
      %v1448 = vadd.f32 0.0, %v1447
      %v1449 = vpop.f32.mrb[0].mxu0
      %v1450 = vpop.f32.mrb[0].mxu0
      %v1451 = vadd.f32 0.0, %v1450
      %v1452 = vpop.f32.mrb[0].mxu0
      %1453 = vdwg.mxu0
      %v1454 = vadd.f32 %v1339, %v1416
      %v1455 = vadd.f32 %v1340, %v1419
      %v1456 = vadd.f32 %v1341, %v1424
      %v1457 = vadd.f32 %v1342, %v1427
      %v1458 = vadd.f32 %v1343, %v1432
      %v1459 = vadd.f32 %v1344, %v1435
      %v1460 = vadd.f32 %v1345, %v1440
      %v1461 = vadd.f32 %v1346, %v1443
      %v1462 = vadd.f32 %v1347, %v1448
      %v1463 = vadd.f32 %v1348, %v1451
      %v1464 = vld [vmem:[%s294] sm:$0xf]
      %v1465 = vld [vmem:[%s294 + $0x4] sm:$0xf]
      %v1466 = vld [vmem:[%s294 + $0x8] sm:$0xf]
      %v1467 = vld [vmem:[%s294 + $0xc] sm:$0xf]
      %v1468 = vld [vmem:[%s294 + $0x10] sm:$0xf]
      %v1469 = vld [vmem:[%s294 + $0x14] sm:$0xf]
      %v1470 = vld [vmem:[%s294 + $0x18] sm:$0xf]
      %v1471 = vld [vmem:[%s294 + $0x1c] sm:$0xf]
      %v1472 = vld [vmem:[%s294 + $0x20] sm:$0xf]
      %v1473 = vld [vmem:[%s294 + $0x24] sm:$0xf]
      %v1474 = vld [vmem:[%s294 + $0x28] sm:$0xf]
      %v1475 = vld [vmem:[%s294 + $0x2c] sm:$0xf]
      %v1476 = vld [vmem:[%s294 + $0x30] sm:$0xf]
      %s1477 = scalar_lea.vmem %s3, 36
      %v1478 = vld [vmem:[%s1477] sm:$0xf]
      %v1489 = vunpack.c.l.b16 %v1464
      %v1490 = vunpack.c.l.b16 %v1465
      %v1491 = vunpack.c.l.b16 %v1466
      %v1492 = vunpack.c.l.b16 %v1467
      %v1493 = vunpack.c.l.b16 %v1468
      %v1494 = vunpack.c.l.b16 %v1469
      %v1495 = vunpack.c.l.b16 %v1470
      %v1496 = vunpack.c.l.b16 %v1471
      %v1497 = vunpack.c.l.b16 %v1472
      %v1498 = vunpack.c.l.b16 %v1473
      %v1499 = vpack.c.b16 %v1490, %v1489
      %v1500 = vpack.c.b16 %v1492, %v1491
      %v1501 = vpack.c.b16 %v1494, %v1493
      %v1502 = vpack.c.b16 %v1496, %v1495
      %v1503 = vpack.c.b16 %v1498, %v1497
      %v1505 = vsel %vm406, %v1499, 0
      %v1508 = vsel %vm406, %v1500, 0
      %v1511 = vsel %vm406, %v1501, 0
      %v1514 = vsel %vm406, %v1502, 0
      %v1517 = vsel %vm406, %v1503, 0
      %v1520 = vsel %vm422, %v1478, 0
      %1522 = vmatprep.subr.bf16.mxu0 0
      %1523 = vmatpush1.bf16.msra.mxu0 %v1520
      %1524 = vmatprep.subr.bf16.mxu0 0
      %1525 = vmatpush1.bf16.msra.mxu0 0
      %1526 = vmatprep.subr.bf16.mxu0 0
      %1527 = vmatpush1.bf16.msra.mxu0 0
      %1528 = vmatprep.subr.bf16.mxu0 0
      %1529 = vmatpush1.bf16.msra.mxu0 0
      %1530 = vmatprep.subr.bf16.mxu0 0
      %1531 = vmatpush1.bf16.msra.mxu0 0
      %1532 = vmatprep.subr.bf16.mxu0 0
      %1533 = vmatpush1.bf16.msra.mxu0 0
      %1534 = vmatprep.subr.bf16.mxu0 0
      %1535 = vmatpush1.bf16.msra.mxu0 0
      %1536 = vmatprep.subr.bf16.mxu0 0
      %1537 = vmatpush1.bf16.msra.mxu0 0
      %1538 = vmatprep.subr.bf16.mxu0 0
      %1539 = vmatpush1.bf16.msra.mxu0 0
      %1540 = vmatprep.subr.bf16.mxu0 0
      %1541 = vmatpush1.bf16.msra.mxu0 0
      %1542 = vmatprep.subr.bf16.mxu0 0
      %1543 = vmatpush1.bf16.msra.mxu0 0
      %1544 = vmatprep.subr.bf16.mxu0 0
      %1545 = vmatpush1.bf16.msra.mxu0 0
      %1546 = vmatprep.subr.bf16.mxu0 0
      %1547 = vmatpush1.bf16.msra.mxu0 0
      %1548 = vmatprep.subr.bf16.mxu0 0
      %1549 = vmatpush1.bf16.msra.mxu0 0
      %1550 = vmatprep.subr.bf16.mxu0 0
      %1551 = vmatpush1.bf16.msra.mxu0 0
      %1552 = vmatprep.subr.bf16.mxu0 0
      %1553 = vmatpush1.bf16.msra.mxu0 0
      %1554 = vmatprep.mubr.bf16.mxu0 0
      %1555 = vmatmul.mubr.bf16.gmra.mrb[0].mxu0 %v1505
      %v1556 = vpop.f32.mrb[0].mxu0
      %v1557 = vadd.f32 0.0, %v1556
      %v1558 = vpop.f32.mrb[0].mxu0
      %v1559 = vpop.f32.mrb[0].mxu0
      %v1560 = vadd.f32 0.0, %v1559
      %v1561 = vpop.f32.mrb[0].mxu0
      %1562 = vmatprep.mubr.bf16.mxu0 0
      %1563 = vmatmul.mubr.bf16.gmra.mrb[0].mxu0 %v1508
      %v1564 = vpop.f32.mrb[0].mxu0
      %v1565 = vadd.f32 0.0, %v1564
      %v1566 = vpop.f32.mrb[0].mxu0
      %v1567 = vpop.f32.mrb[0].mxu0
      %v1568 = vadd.f32 0.0, %v1567
      %v1569 = vpop.f32.mrb[0].mxu0
      %1570 = vmatprep.mubr.bf16.mxu0 0
      %1571 = vmatmul.mubr.bf16.gmra.mrb[0].mxu0 %v1511
      %v1572 = vpop.f32.mrb[0].mxu0
      %v1573 = vadd.f32 0.0, %v1572
      %v1574 = vpop.f32.mrb[0].mxu0
      %v1575 = vpop.f32.mrb[0].mxu0
      %v1576 = vadd.f32 0.0, %v1575
      %v1577 = vpop.f32.mrb[0].mxu0
      %1578 = vmatprep.mubr.bf16.mxu0 0
      %1579 = vmatmul.mubr.bf16.gmra.mrb[0].mxu0 %v1514
      %v1580 = vpop.f32.mrb[0].mxu0
      %v1581 = vadd.f32 0.0, %v1580
      %v1582 = vpop.f32.mrb[0].mxu0
      %v1583 = vpop.f32.mrb[0].mxu0
      %v1584 = vadd.f32 0.0, %v1583
      %v1585 = vpop.f32.mrb[0].mxu0
      %1586 = vmatprep.mubr.bf16.mxu0 0
      %1587 = vmatmul.mubr.bf16.gmra.mrb[0].mxu0 %v1517
      %v1588 = vpop.f32.mrb[0].mxu0
      %v1589 = vadd.f32 0.0, %v1588
      %v1590 = vpop.f32.mrb[0].mxu0
      %v1591 = vpop.f32.mrb[0].mxu0
      %v1592 = vadd.f32 0.0, %v1591
      %v1593 = vpop.f32.mrb[0].mxu0
      %1594 = vdwg.mxu0
      %v1595 = vadd.f32 %v1454, %v1557
      %v1596 = vadd.f32 %v1455, %v1560
      %v1597 = vadd.f32 %v1456, %v1565
      %v1598 = vadd.f32 %v1457, %v1568
      %v1599 = vadd.f32 %v1458, %v1573
      %v1600 = vadd.f32 %v1459, %v1576
      %v1601 = vadd.f32 %v1460, %v1581
      %v1602 = vadd.f32 %v1461, %v1584
      %v1603 = vadd.f32 %v1462, %v1589
      %v1604 = vadd.f32 %v1463, %v1592
      %s1605 = scalar_lea.vmem %s3, 40
      %v1606 = vld [vmem:[%s1605] sm:$0xf]
      %v1608 = vunpack.c.l.b16 %v1474
      %v1609 = vpack.c.b16 %v1608, %v1608
      %v1610 = vshrl.u32 %v1499, 16
      %v1612 = vshll.u32 %v1499, 16
      %v1614 = vrot.slane %v1612, 1
      %v1615 = vor.u32 %v1610, %v1614
      %v1616 = vshll.u32 %v1500, 16
      %v1618 = vrot.slane %v1616, 1
      %v1619 = vsel %vm361, %v1615, %v1618
      %v1620 = vshrl.u32 %v1500, 16
      %v1622 = vor.u32 %v1620, %v1618
      %v1623 = vshll.u32 %v1501, 16
      %v1625 = vrot.slane %v1623, 1
      %v1626 = vsel %vm361, %v1622, %v1625
      %v1627 = vshrl.u32 %v1501, 16
      %v1629 = vor.u32 %v1627, %v1625
      %v1630 = vshll.u32 %v1502, 16
      %v1632 = vrot.slane %v1630, 1
      %v1633 = vsel %vm361, %v1629, %v1632
      %v1634 = vshrl.u32 %v1502, 16
      %v1636 = vor.u32 %v1634, %v1632
      %v1637 = vshll.u32 %v1503, 16
      %v1639 = vrot.slane %v1637, 1
      %v1640 = vsel %vm361, %v1636, %v1639
      %v1641 = vshrl.u32 %v1503, 16
      %v1643 = vor.u32 %v1641, %v1639
      %v1645 = vshll.u32 %v1609, 16
      %v1647 = vrot.slane %v1645, 1
      %v1648 = vsel %vm361, %v1643, %v1647
      %v1650 = vsel %vm406, %v1619, 0
      %v1653 = vsel %vm406, %v1626, 0
      %v1656 = vsel %vm406, %v1633, 0
      %v1659 = vsel %vm406, %v1640, 0
      %v1662 = vsel %vm406, %v1648, 0
      %v1665 = vsel %vm422, %v1606, 0
      %1667 = vmatprep.subr.bf16.mxu0 0
      %1668 = vmatpush1.bf16.msra.mxu0 %v1665
      %1669 = vmatprep.subr.bf16.mxu0 0
      %1670 = vmatpush1.bf16.msra.mxu0 0
      %1671 = vmatprep.subr.bf16.mxu0 0
      %1672 = vmatpush1.bf16.msra.mxu0 0
      %1673 = vmatprep.subr.bf16.mxu0 0
      %1674 = vmatpush1.bf16.msra.mxu0 0
      %1675 = vmatprep.subr.bf16.mxu0 0
      %1676 = vmatpush1.bf16.msra.mxu0 0
      %1677 = vmatprep.subr.bf16.mxu0 0
      %1678 = vmatpush1.bf16.msra.mxu0 0
      %1679 = vmatprep.subr.bf16.mxu0 0
      %1680 = vmatpush1.bf16.msra.mxu0 0
      %1681 = vmatprep.subr.bf16.mxu0 0
      %1682 = vmatpush1.bf16.msra.mxu0 0
      %1683 = vmatprep.subr.bf16.mxu0 0
      %1684 = vmatpush1.bf16.msra.mxu0 0
      %1685 = vmatprep.subr.bf16.mxu0 0
      %1686 = vmatpush1.bf16.msra.mxu0 0
      %1687 = vmatprep.subr.bf16.mxu0 0
      %1688 = vmatpush1.bf16.msra.mxu0 0
      %1689 = vmatprep.subr.bf16.mxu0 0
      %1690 = vmatpush1.bf16.msra.mxu0 0
      %1691 = vmatprep.subr.bf16.mxu0 0
      %1692 = vmatpush1.bf16.msra.mxu0 0
      %1693 = vmatprep.subr.bf16.mxu0 0
      %1694 = vmatpush1.bf16.msra.mxu0 0
      %1695 = vmatprep.subr.bf16.mxu0 0
      %1696 = vmatpush1.bf16.msra.mxu0 0
      %1697 = vmatprep.subr.bf16.mxu0 0
      %1698 = vmatpush1.bf16.msra.mxu0 0
      %1699 = vmatprep.mubr.bf16.mxu0 0
      %1700 = vmatmul.mubr.bf16.gmra.mrb[0].mxu0 %v1650
      %v1701 = vpop.f32.mrb[0].mxu0
      %v1702 = vadd.f32 0.0, %v1701
      %v1703 = vpop.f32.mrb[0].mxu0
      %v1704 = vpop.f32.mrb[0].mxu0
      %v1705 = vadd.f32 0.0, %v1704
      %v1706 = vpop.f32.mrb[0].mxu0
      %1707 = vmatprep.mubr.bf16.mxu0 0
      %1708 = vmatmul.mubr.bf16.gmra.mrb[0].mxu0 %v1653
      %v1709 = vpop.f32.mrb[0].mxu0
      %v1710 = vadd.f32 0.0, %v1709
      %v1711 = vpop.f32.mrb[0].mxu0
      %v1712 = vpop.f32.mrb[0].mxu0
      %v1713 = vadd.f32 0.0, %v1712
      %v1714 = vpop.f32.mrb[0].mxu0
      %1715 = vmatprep.mubr.bf16.mxu0 0
      %1716 = vmatmul.mubr.bf16.gmra.mrb[0].mxu0 %v1656
      %v1717 = vpop.f32.mrb[0].mxu0
      %v1718 = vadd.f32 0.0, %v1717
      %v1719 = vpop.f32.mrb[0].mxu0
      %v1720 = vpop.f32.mrb[0].mxu0
      %v1721 = vadd.f32 0.0, %v1720
      %v1722 = vpop.f32.mrb[0].mxu0
      %1723 = vmatprep.mubr.bf16.mxu0 0
      %1724 = vmatmul.mubr.bf16.gmra.mrb[0].mxu0 %v1659
      %v1725 = vpop.f32.mrb[0].mxu0
      %v1726 = vadd.f32 0.0, %v1725
      %v1727 = vpop.f32.mrb[0].mxu0
      %v1728 = vpop.f32.mrb[0].mxu0
      %v1729 = vadd.f32 0.0, %v1728
      %v1730 = vpop.f32.mrb[0].mxu0
      %1731 = vmatprep.mubr.bf16.mxu0 0
      %1732 = vmatmul.mubr.bf16.gmra.mrb[0].mxu0 %v1662
      %v1733 = vpop.f32.mrb[0].mxu0
      %v1734 = vadd.f32 0.0, %v1733
      %v1735 = vpop.f32.mrb[0].mxu0
      %v1736 = vpop.f32.mrb[0].mxu0
      %v1737 = vadd.f32 0.0, %v1736
      %v1738 = vpop.f32.mrb[0].mxu0
      %1739 = vdwg.mxu0
      %v1740 = vadd.f32 %v1595, %v1702
      %v1741 = vadd.f32 %v1596, %v1705
      %v1742 = vadd.f32 %v1597, %v1710
      %v1743 = vadd.f32 %v1598, %v1713
      %v1744 = vadd.f32 %v1599, %v1718
      %v1745 = vadd.f32 %v1600, %v1721
      %v1746 = vadd.f32 %v1601, %v1726
      %v1747 = vadd.f32 %v1602, %v1729
      %v1748 = vadd.f32 %v1603, %v1734
      %v1749 = vadd.f32 %v1604, %v1737
      %s1750 = scalar_lea.vmem %s3, 44
      %v1751 = vld [vmem:[%s1750] sm:$0xf]
      %v1752 = vrot.slane %v1499, 1
      %v1753 = vrot.slane %v1500, 1
      %v1754 = vsel %vm587, %v1752, %v1753
      %v1755 = vrot.slane %v1501, 1
      %v1756 = vsel %vm587, %v1753, %v1755
      %v1757 = vrot.slane %v1502, 1
      %v1758 = vsel %vm587, %v1755, %v1757
      %v1759 = vrot.slane %v1503, 1
      %v1760 = vsel %vm587, %v1757, %v1759
      %v1761 = vrot.slane %v1609, 1
      %v1762 = vsel %vm587, %v1759, %v1761
      %v1764 = vsel %vm406, %v1754, 0
      %v1767 = vsel %vm406, %v1756, 0
      %v1770 = vsel %vm406, %v1758, 0
      %v1773 = vsel %vm406, %v1760, 0
      %v1776 = vsel %vm406, %v1762, 0
      %v1779 = vsel %vm422, %v1751, 0
      %1781 = vmatprep.subr.bf16.mxu0 0
      %1782 = vmatpush1.bf16.msra.mxu0 %v1779
      %1783 = vmatprep.subr.bf16.mxu0 0
      %1784 = vmatpush1.bf16.msra.mxu0 0
      %1785 = vmatprep.subr.bf16.mxu0 0
      %1786 = vmatpush1.bf16.msra.mxu0 0
      %1787 = vmatprep.subr.bf16.mxu0 0
      %1788 = vmatpush1.bf16.msra.mxu0 0
      %1789 = vmatprep.subr.bf16.mxu0 0
      %1790 = vmatpush1.bf16.msra.mxu0 0
      %1791 = vmatprep.subr.bf16.mxu0 0
      %1792 = vmatpush1.bf16.msra.mxu0 0
      %1793 = vmatprep.subr.bf16.mxu0 0
      %1794 = vmatpush1.bf16.msra.mxu0 0
      %1795 = vmatprep.subr.bf16.mxu0 0
      %1796 = vmatpush1.bf16.msra.mxu0 0
      %1797 = vmatprep.subr.bf16.mxu0 0
      %1798 = vmatpush1.bf16.msra.mxu0 0
      %1799 = vmatprep.subr.bf16.mxu0 0
      %1800 = vmatpush1.bf16.msra.mxu0 0
      %1801 = vmatprep.subr.bf16.mxu0 0
      %1802 = vmatpush1.bf16.msra.mxu0 0
      %1803 = vmatprep.subr.bf16.mxu0 0
      %1804 = vmatpush1.bf16.msra.mxu0 0
      %1805 = vmatprep.subr.bf16.mxu0 0
      %1806 = vmatpush1.bf16.msra.mxu0 0
      %1807 = vmatprep.subr.bf16.mxu0 0
      %1808 = vmatpush1.bf16.msra.mxu0 0
      %1809 = vmatprep.subr.bf16.mxu0 0
      %1810 = vmatpush1.bf16.msra.mxu0 0
      %1811 = vmatprep.subr.bf16.mxu0 0
      %1812 = vmatpush1.bf16.msra.mxu0 0
      %1813 = vmatprep.mubr.bf16.mxu0 0
      %1814 = vmatmul.mubr.bf16.gmra.mrb[0].mxu0 %v1764
      %v1815 = vpop.f32.mrb[0].mxu0
      %v1816 = vadd.f32 0.0, %v1815
      %v1817 = vpop.f32.mrb[0].mxu0
      %v1818 = vpop.f32.mrb[0].mxu0
      %v1819 = vadd.f32 0.0, %v1818
      %v1820 = vpop.f32.mrb[0].mxu0
      %1821 = vmatprep.mubr.bf16.mxu0 0
      %1822 = vmatmul.mubr.bf16.gmra.mrb[0].mxu0 %v1767
      %v1823 = vpop.f32.mrb[0].mxu0
      %v1824 = vadd.f32 0.0, %v1823
      %v1825 = vpop.f32.mrb[0].mxu0
      %v1826 = vpop.f32.mrb[0].mxu0
      %v1827 = vadd.f32 0.0, %v1826
      %v1828 = vpop.f32.mrb[0].mxu0
      %1829 = vmatprep.mubr.bf16.mxu0 0
      %1830 = vmatmul.mubr.bf16.gmra.mrb[0].mxu0 %v1770
      %v1831 = vpop.f32.mrb[0].mxu0
      %v1832 = vadd.f32 0.0, %v1831
      %v1833 = vpop.f32.mrb[0].mxu0
      %v1834 = vpop.f32.mrb[0].mxu0
      %v1835 = vadd.f32 0.0, %v1834
      %v1836 = vpop.f32.mrb[0].mxu0
      %1837 = vmatprep.mubr.bf16.mxu0 0
      %1838 = vmatmul.mubr.bf16.gmra.mrb[0].mxu0 %v1773
      %v1839 = vpop.f32.mrb[0].mxu0
      %v1840 = vadd.f32 0.0, %v1839
      %v1841 = vpop.f32.mrb[0].mxu0
      %v1842 = vpop.f32.mrb[0].mxu0
      %v1843 = vadd.f32 0.0, %v1842
      %v1844 = vpop.f32.mrb[0].mxu0
      %1845 = vmatprep.mubr.bf16.mxu0 0
      %1846 = vmatmul.mubr.bf16.gmra.mrb[0].mxu0 %v1776
      %v1847 = vpop.f32.mrb[0].mxu0
      %v1848 = vadd.f32 0.0, %v1847
      %v1849 = vpop.f32.mrb[0].mxu0
      %v1850 = vpop.f32.mrb[0].mxu0
      %v1851 = vadd.f32 0.0, %v1850
      %v1852 = vpop.f32.mrb[0].mxu0
      %1853 = vdwg.mxu0
      %v1854 = vadd.f32 %v1740, %v1816
      %v1855 = vadd.f32 %v1741, %v1819
      %v1856 = vadd.f32 %v1742, %v1824
      %v1857 = vadd.f32 %v1743, %v1827
      %v1858 = vadd.f32 %v1744, %v1832
      %v1859 = vadd.f32 %v1745, %v1835
      %v1860 = vadd.f32 %v1746, %v1840
      %v1861 = vadd.f32 %v1747, %v1843
      %v1862 = vadd.f32 %v1748, %v1848
      %v1863 = vadd.f32 %v1749, %v1851
      %s1864 = scalar_lea.vmem %s3, 48
      %v1865 = vld [vmem:[%s1864] sm:$0xf]
      %v1867 = vunpack.c.l.b16 %v1475
      %v1868 = vpack.c.b16 %v1491, %v1490
      %v1869 = vpack.c.b16 %v1493, %v1492
      %v1870 = vpack.c.b16 %v1495, %v1494
      %v1871 = vpack.c.b16 %v1497, %v1496
      %v1872 = vpack.c.b16 %v1608, %v1498
      %v1873 = vpack.c.b16 %v1867, %v1867
      %v1874 = vrot.slane %v1868, 1
      %v1875 = vrot.slane %v1869, 1
      %v1876 = vsel %vm587, %v1874, %v1875
      %v1877 = vrot.slane %v1870, 1
      %v1878 = vsel %vm587, %v1875, %v1877
      %v1879 = vrot.slane %v1871, 1
      %v1880 = vsel %vm587, %v1877, %v1879
      %v1881 = vrot.slane %v1872, 1
      %v1882 = vsel %vm587, %v1879, %v1881
      %v1883 = vrot.slane %v1873, 1
      %v1884 = vsel %vm587, %v1881, %v1883
      %v1886 = vsel %vm406, %v1876, 0
      %v1889 = vsel %vm406, %v1878, 0
      %v1892 = vsel %vm406, %v1880, 0
      %v1895 = vsel %vm406, %v1882, 0
      %v1898 = vsel %vm406, %v1884, 0
      %v1901 = vsel %vm422, %v1865, 0
      %1903 = vmatprep.subr.bf16.mxu0 0
      %1904 = vmatpush1.bf16.msra.mxu0 %v1901
      %1905 = vmatprep.subr.bf16.mxu0 0
      %1906 = vmatpush1.bf16.msra.mxu0 0
      %1907 = vmatprep.subr.bf16.mxu0 0
      %1908 = vmatpush1.bf16.msra.mxu0 0
      %1909 = vmatprep.subr.bf16.mxu0 0
      %1910 = vmatpush1.bf16.msra.mxu0 0
      %1911 = vmatprep.subr.bf16.mxu0 0
      %1912 = vmatpush1.bf16.msra.mxu0 0
      %1913 = vmatprep.subr.bf16.mxu0 0
      %1914 = vmatpush1.bf16.msra.mxu0 0
      %1915 = vmatprep.subr.bf16.mxu0 0
      %1916 = vmatpush1.bf16.msra.mxu0 0
      %1917 = vmatprep.subr.bf16.mxu0 0
      %1918 = vmatpush1.bf16.msra.mxu0 0
      %1919 = vmatprep.subr.bf16.mxu0 0
      %1920 = vmatpush1.bf16.msra.mxu0 0
      %1921 = vmatprep.subr.bf16.mxu0 0
      %1922 = vmatpush1.bf16.msra.mxu0 0
      %1923 = vmatprep.subr.bf16.mxu0 0
      %1924 = vmatpush1.bf16.msra.mxu0 0
      %1925 = vmatprep.subr.bf16.mxu0 0
      %1926 = vmatpush1.bf16.msra.mxu0 0
      %1927 = vmatprep.subr.bf16.mxu0 0
      %1928 = vmatpush1.bf16.msra.mxu0 0
      %1929 = vmatprep.subr.bf16.mxu0 0
      %1930 = vmatpush1.bf16.msra.mxu0 0
      %1931 = vmatprep.subr.bf16.mxu0 0
      %1932 = vmatpush1.bf16.msra.mxu0 0
      %1933 = vmatprep.subr.bf16.mxu0 0
      %1934 = vmatpush1.bf16.msra.mxu0 0
      %1935 = vmatprep.mubr.bf16.mxu0 0
      %1936 = vmatmul.mubr.bf16.gmra.mrb[0].mxu0 %v1886
      %v1937 = vpop.f32.mrb[0].mxu0
      %v1938 = vadd.f32 0.0, %v1937
      %v1939 = vpop.f32.mrb[0].mxu0
      %v1940 = vpop.f32.mrb[0].mxu0
      %v1941 = vadd.f32 0.0, %v1940
      %v1942 = vpop.f32.mrb[0].mxu0
      %1943 = vmatprep.mubr.bf16.mxu0 0
      %1944 = vmatmul.mubr.bf16.gmra.mrb[0].mxu0 %v1889
      %v1945 = vpop.f32.mrb[0].mxu0
      %v1946 = vadd.f32 0.0, %v1945
      %v1947 = vpop.f32.mrb[0].mxu0
      %v1948 = vpop.f32.mrb[0].mxu0
      %v1949 = vadd.f32 0.0, %v1948
      %v1950 = vpop.f32.mrb[0].mxu0
      %1951 = vmatprep.mubr.bf16.mxu0 0
      %1952 = vmatmul.mubr.bf16.gmra.mrb[0].mxu0 %v1892
      %v1953 = vpop.f32.mrb[0].mxu0
      %v1954 = vadd.f32 0.0, %v1953
      %v1955 = vpop.f32.mrb[0].mxu0
      %v1956 = vpop.f32.mrb[0].mxu0
      %v1957 = vadd.f32 0.0, %v1956
      %v1958 = vpop.f32.mrb[0].mxu0
      %1959 = vmatprep.mubr.bf16.mxu0 0
      %1960 = vmatmul.mubr.bf16.gmra.mrb[0].mxu0 %v1895
      %v1961 = vpop.f32.mrb[0].mxu0
      %v1962 = vadd.f32 0.0, %v1961
      %v1963 = vpop.f32.mrb[0].mxu0
      %v1964 = vpop.f32.mrb[0].mxu0
      %v1965 = vadd.f32 0.0, %v1964
      %v1966 = vpop.f32.mrb[0].mxu0
      %1967 = vmatprep.mubr.bf16.mxu0 0
      %1968 = vmatmul.mubr.bf16.gmra.mrb[0].mxu0 %v1898
      %v1969 = vpop.f32.mrb[0].mxu0
      %v1970 = vadd.f32 0.0, %v1969
      %v1971 = vpop.f32.mrb[0].mxu0
      %v1972 = vpop.f32.mrb[0].mxu0
      %v1973 = vadd.f32 0.0, %v1972
      %v1974 = vpop.f32.mrb[0].mxu0
      %1975 = vdwg.mxu0
      %v1976 = vadd.f32 %v1854, %v1938
      %v1977 = vadd.f32 %v1855, %v1941
      %v1978 = vadd.f32 %v1856, %v1946
      %v1979 = vadd.f32 %v1857, %v1949
      %v1980 = vadd.f32 %v1858, %v1954
      %v1981 = vadd.f32 %v1859, %v1957
      %v1982 = vadd.f32 %v1860, %v1962
      %v1983 = vadd.f32 %v1861, %v1965
      %v1984 = vadd.f32 %v1862, %v1970
      %v1985 = vadd.f32 %v1863, %v1973
      %s1986 = scalar_lea.vmem %s3, 52
      %v1987 = vld [vmem:[%s1986] sm:$0xf]
      %v1989 = vshrl.u32 %v1868, 16
      %v1991 = vrot.slane %v1989, 1
      %v1992 = vshll.u32 %v1868, 16
      %v1994 = vrot.slane %v1992, 2
      %v1995 = vor.u32 %v1991, %v1994
      %v1997 = vshrl.u32 %v1869, 16
      %v1999 = vrot.slane %v1997, 1
      %v2000 = vshll.u32 %v1869, 16
      %v2002 = vrot.slane %v2000, 2
      %v2003 = vor.u32 %v1999, %v2002
      %v2004 = vsel %vm824, %v1995, %v2003
      %v2006 = vshrl.u32 %v1870, 16
      %v2008 = vrot.slane %v2006, 1
      %v2009 = vshll.u32 %v1870, 16
      %v2011 = vrot.slane %v2009, 2
      %v2012 = vor.u32 %v2008, %v2011
      %v2013 = vsel %vm824, %v2003, %v2012
      %v2015 = vshrl.u32 %v1871, 16
      %v2017 = vrot.slane %v2015, 1
      %v2018 = vshll.u32 %v1871, 16
      %v2020 = vrot.slane %v2018, 2
      %v2021 = vor.u32 %v2017, %v2020
      %v2022 = vsel %vm824, %v2012, %v2021
      %v2024 = vshrl.u32 %v1872, 16
      %v2026 = vrot.slane %v2024, 1
      %v2027 = vshll.u32 %v1872, 16
      %v2029 = vrot.slane %v2027, 2
      %v2030 = vor.u32 %v2026, %v2029
      %v2031 = vsel %vm824, %v2021, %v2030
      %v2033 = vshrl.u32 %v1873, 16
      %v2035 = vrot.slane %v2033, 1
      %v2036 = vshll.u32 %v1873, 16
      %v2038 = vrot.slane %v2036, 2
      %v2039 = vor.u32 %v2035, %v2038
      %v2040 = vsel %vm824, %v2030, %v2039
      %v2042 = vsel %vm406, %v2004, 0
      %v2045 = vsel %vm406, %v2013, 0
      %v2048 = vsel %vm406, %v2022, 0
      %v2051 = vsel %vm406, %v2031, 0
      %v2054 = vsel %vm406, %v2040, 0
      %v2057 = vsel %vm422, %v1987, 0
      %2059 = vmatprep.subr.bf16.mxu0 0
      %2060 = vmatpush1.bf16.msra.mxu0 %v2057
      %2061 = vmatprep.subr.bf16.mxu0 0
      %2062 = vmatpush1.bf16.msra.mxu0 0
      %2063 = vmatprep.subr.bf16.mxu0 0
      %2064 = vmatpush1.bf16.msra.mxu0 0
      %2065 = vmatprep.subr.bf16.mxu0 0
      %2066 = vmatpush1.bf16.msra.mxu0 0
      %2067 = vmatprep.subr.bf16.mxu0 0
      %2068 = vmatpush1.bf16.msra.mxu0 0
      %2069 = vmatprep.subr.bf16.mxu0 0
      %2070 = vmatpush1.bf16.msra.mxu0 0
      %2071 = vmatprep.subr.bf16.mxu0 0
      %2072 = vmatpush1.bf16.msra.mxu0 0
      %2073 = vmatprep.subr.bf16.mxu0 0
      %2074 = vmatpush1.bf16.msra.mxu0 0
      %2075 = vmatprep.subr.bf16.mxu0 0
      %2076 = vmatpush1.bf16.msra.mxu0 0
      %2077 = vmatprep.subr.bf16.mxu0 0
      %2078 = vmatpush1.bf16.msra.mxu0 0
      %2079 = vmatprep.subr.bf16.mxu0 0
      %2080 = vmatpush1.bf16.msra.mxu0 0
      %2081 = vmatprep.subr.bf16.mxu0 0
      %2082 = vmatpush1.bf16.msra.mxu0 0
      %2083 = vmatprep.subr.bf16.mxu0 0
      %2084 = vmatpush1.bf16.msra.mxu0 0
      %2085 = vmatprep.subr.bf16.mxu0 0
      %2086 = vmatpush1.bf16.msra.mxu0 0
      %2087 = vmatprep.subr.bf16.mxu0 0
      %2088 = vmatpush1.bf16.msra.mxu0 0
      %2089 = vmatprep.subr.bf16.mxu0 0
      %2090 = vmatpush1.bf16.msra.mxu0 0
      %2091 = vmatprep.mubr.bf16.mxu0 0
      %2092 = vmatmul.mubr.bf16.gmra.mrb[0].mxu0 %v2042
      %v2093 = vpop.f32.mrb[0].mxu0
      %v2094 = vadd.f32 0.0, %v2093
      %v2095 = vpop.f32.mrb[0].mxu0
      %v2096 = vpop.f32.mrb[0].mxu0
      %v2097 = vadd.f32 0.0, %v2096
      %v2098 = vpop.f32.mrb[0].mxu0
      %2099 = vmatprep.mubr.bf16.mxu0 0
      %2100 = vmatmul.mubr.bf16.gmra.mrb[0].mxu0 %v2045
      %v2101 = vpop.f32.mrb[0].mxu0
      %v2102 = vadd.f32 0.0, %v2101
      %v2103 = vpop.f32.mrb[0].mxu0
      %v2104 = vpop.f32.mrb[0].mxu0
      %v2105 = vadd.f32 0.0, %v2104
      %v2106 = vpop.f32.mrb[0].mxu0
      %2107 = vmatprep.mubr.bf16.mxu0 0
      %2108 = vmatmul.mubr.bf16.gmra.mrb[0].mxu0 %v2048
      %v2109 = vpop.f32.mrb[0].mxu0
      %v2110 = vadd.f32 0.0, %v2109
      %v2111 = vpop.f32.mrb[0].mxu0
      %v2112 = vpop.f32.mrb[0].mxu0
      %v2113 = vadd.f32 0.0, %v2112
      %v2114 = vpop.f32.mrb[0].mxu0
      %2115 = vmatprep.mubr.bf16.mxu0 0
      %2116 = vmatmul.mubr.bf16.gmra.mrb[0].mxu0 %v2051
      %v2117 = vpop.f32.mrb[0].mxu0
      %v2118 = vadd.f32 0.0, %v2117
      %v2119 = vpop.f32.mrb[0].mxu0
      %v2120 = vpop.f32.mrb[0].mxu0
      %v2121 = vadd.f32 0.0, %v2120
      %v2122 = vpop.f32.mrb[0].mxu0
      %2123 = vmatprep.mubr.bf16.mxu0 0
      %2124 = vmatmul.mubr.bf16.gmra.mrb[0].mxu0 %v2054
      %v2125 = vpop.f32.mrb[0].mxu0
      %v2126 = vadd.f32 0.0, %v2125
      %v2127 = vpop.f32.mrb[0].mxu0
      %v2128 = vpop.f32.mrb[0].mxu0
      %v2129 = vadd.f32 0.0, %v2128
      %v2130 = vpop.f32.mrb[0].mxu0
      %2131 = vdwg.mxu0
      %v2132 = vadd.f32 %v1976, %v2094
      %v2133 = vadd.f32 %v1977, %v2097
      %v2134 = vadd.f32 %v1978, %v2102
      %v2135 = vadd.f32 %v1979, %v2105
      %v2136 = vadd.f32 %v1980, %v2110
      %v2137 = vadd.f32 %v1981, %v2113
      %v2138 = vadd.f32 %v1982, %v2118
      %v2139 = vadd.f32 %v1983, %v2121
      %v2140 = vadd.f32 %v1984, %v2126
      %v2141 = vadd.f32 %v1985, %v2129
      %s2142 = scalar_lea.vmem %s3, 56
      %v2143 = vld [vmem:[%s2142] sm:$0xf]
      %v2144 = vrot.slane %v1868, 2
      %v2145 = vrot.slane %v1869, 2
      %v2146 = vsel %vm981, %v2144, %v2145
      %v2147 = vrot.slane %v1870, 2
      %v2148 = vsel %vm981, %v2145, %v2147
      %v2149 = vrot.slane %v1871, 2
      %v2150 = vsel %vm981, %v2147, %v2149
      %v2151 = vrot.slane %v1872, 2
      %v2152 = vsel %vm981, %v2149, %v2151
      %v2153 = vrot.slane %v1873, 2
      %v2154 = vsel %vm981, %v2151, %v2153
      %v2156 = vsel %vm406, %v2146, 0
      %v2159 = vsel %vm406, %v2148, 0
      %v2162 = vsel %vm406, %v2150, 0
      %v2165 = vsel %vm406, %v2152, 0
      %v2168 = vsel %vm406, %v2154, 0
      %v2171 = vsel %vm422, %v2143, 0
      %2173 = vmatprep.subr.bf16.mxu0 0
      %2174 = vmatpush1.bf16.msra.mxu0 %v2171
      %2175 = vmatprep.subr.bf16.mxu0 0
      %2176 = vmatpush1.bf16.msra.mxu0 0
      %2177 = vmatprep.subr.bf16.mxu0 0
      %2178 = vmatpush1.bf16.msra.mxu0 0
      %2179 = vmatprep.subr.bf16.mxu0 0
      %2180 = vmatpush1.bf16.msra.mxu0 0
      %2181 = vmatprep.subr.bf16.mxu0 0
      %2182 = vmatpush1.bf16.msra.mxu0 0
      %2183 = vmatprep.subr.bf16.mxu0 0
      %2184 = vmatpush1.bf16.msra.mxu0 0
      %2185 = vmatprep.subr.bf16.mxu0 0
      %2186 = vmatpush1.bf16.msra.mxu0 0
      %2187 = vmatprep.subr.bf16.mxu0 0
      %2188 = vmatpush1.bf16.msra.mxu0 0
      %2189 = vmatprep.subr.bf16.mxu0 0
      %2190 = vmatpush1.bf16.msra.mxu0 0
      %2191 = vmatprep.subr.bf16.mxu0 0
      %2192 = vmatpush1.bf16.msra.mxu0 0
      %2193 = vmatprep.subr.bf16.mxu0 0
      %2194 = vmatpush1.bf16.msra.mxu0 0
      %2195 = vmatprep.subr.bf16.mxu0 0
      %2196 = vmatpush1.bf16.msra.mxu0 0
      %2197 = vmatprep.subr.bf16.mxu0 0
      %2198 = vmatpush1.bf16.msra.mxu0 0
      %2199 = vmatprep.subr.bf16.mxu0 0
      %2200 = vmatpush1.bf16.msra.mxu0 0
      %2201 = vmatprep.subr.bf16.mxu0 0
      %2202 = vmatpush1.bf16.msra.mxu0 0
      %2203 = vmatprep.subr.bf16.mxu0 0
      %2204 = vmatpush1.bf16.msra.mxu0 0
      %2205 = vmatprep.mubr.bf16.mxu0 0
      %2206 = vmatmul.mubr.bf16.gmra.mrb[0].mxu0 %v2156
      %v2207 = vpop.f32.mrb[0].mxu0
      %v2208 = vadd.f32 0.0, %v2207
      %v2209 = vpop.f32.mrb[0].mxu0
      %v2210 = vpop.f32.mrb[0].mxu0
      %v2211 = vadd.f32 0.0, %v2210
      %v2212 = vpop.f32.mrb[0].mxu0
      %2213 = vmatprep.mubr.bf16.mxu0 0
      %2214 = vmatmul.mubr.bf16.gmra.mrb[0].mxu0 %v2159
      %v2215 = vpop.f32.mrb[0].mxu0
      %v2216 = vadd.f32 0.0, %v2215
      %v2217 = vpop.f32.mrb[0].mxu0
      %v2218 = vpop.f32.mrb[0].mxu0
      %v2219 = vadd.f32 0.0, %v2218
      %v2220 = vpop.f32.mrb[0].mxu0
      %2221 = vmatprep.mubr.bf16.mxu0 0
      %2222 = vmatmul.mubr.bf16.gmra.mrb[0].mxu0 %v2162
      %v2223 = vpop.f32.mrb[0].mxu0
      %v2224 = vadd.f32 0.0, %v2223
      %v2225 = vpop.f32.mrb[0].mxu0
      %v2226 = vpop.f32.mrb[0].mxu0
      %v2227 = vadd.f32 0.0, %v2226
      %v2228 = vpop.f32.mrb[0].mxu0
      %2229 = vmatprep.mubr.bf16.mxu0 0
      %2230 = vmatmul.mubr.bf16.gmra.mrb[0].mxu0 %v2165
      %v2231 = vpop.f32.mrb[0].mxu0
      %v2232 = vadd.f32 0.0, %v2231
      %v2233 = vpop.f32.mrb[0].mxu0
      %v2234 = vpop.f32.mrb[0].mxu0
      %v2235 = vadd.f32 0.0, %v2234
      %v2236 = vpop.f32.mrb[0].mxu0
      %2237 = vmatprep.mubr.bf16.mxu0 0
      %2238 = vmatmul.mubr.bf16.gmra.mrb[0].mxu0 %v2168
      %v2239 = vpop.f32.mrb[0].mxu0
      %v2240 = vadd.f32 0.0, %v2239
      %v2241 = vpop.f32.mrb[0].mxu0
      %v2242 = vpop.f32.mrb[0].mxu0
      %v2243 = vadd.f32 0.0, %v2242
      %v2244 = vpop.f32.mrb[0].mxu0
      %2245 = vdwg.mxu0
      %v2246 = vadd.f32 %v2132, %v2208
      %v2247 = vadd.f32 %v2133, %v2211
      %v2248 = vadd.f32 %v2134, %v2216
      %v2249 = vadd.f32 %v2135, %v2219
      %v2250 = vadd.f32 %v2136, %v2224
      %v2251 = vadd.f32 %v2137, %v2227
      %v2252 = vadd.f32 %v2138, %v2232
      %v2253 = vadd.f32 %v2139, %v2235
      %v2254 = vadd.f32 %v2140, %v2240
      %v2255 = vadd.f32 %v2141, %v2243
      %s2256 = scalar_lea.vmem %s3, 60
      %v2257 = vld [vmem:[%s2256] sm:$0xf]
      %v2259 = vunpack.c.l.b16 %v1476
      %v2260 = vpack.c.b16 %v1867, %v1608
      %v2261 = vpack.c.b16 %v2259, %v2259
      %v2262 = vrot.slane %v1500, 2
      %v2263 = vrot.slane %v1501, 2
      %v2264 = vsel %vm981, %v2262, %v2263
      %v2265 = vrot.slane %v1502, 2
      %v2266 = vsel %vm981, %v2263, %v2265
      %v2267 = vrot.slane %v1503, 2
      %v2268 = vsel %vm981, %v2265, %v2267
      %v2269 = vrot.slane %v2260, 2
      %v2270 = vsel %vm981, %v2267, %v2269
      %v2271 = vrot.slane %v2261, 2
      %v2272 = vsel %vm981, %v2269, %v2271
      %v2274 = vsel %vm406, %v2264, 0
      %v2277 = vsel %vm406, %v2266, 0
      %v2280 = vsel %vm406, %v2268, 0
      %v2283 = vsel %vm406, %v2270, 0
      %v2286 = vsel %vm406, %v2272, 0
      %v2289 = vsel %vm422, %v2257, 0
      %2291 = vmatprep.subr.bf16.mxu0 0
      %2292 = vmatpush1.bf16.msra.mxu0 %v2289
      %2293 = vmatprep.subr.bf16.mxu0 0
      %2294 = vmatpush1.bf16.msra.mxu0 0
      %2295 = vmatprep.subr.bf16.mxu0 0
      %2296 = vmatpush1.bf16.msra.mxu0 0
      %2297 = vmatprep.subr.bf16.mxu0 0
      %2298 = vmatpush1.bf16.msra.mxu0 0
      %2299 = vmatprep.subr.bf16.mxu0 0
      %2300 = vmatpush1.bf16.msra.mxu0 0
      %2301 = vmatprep.subr.bf16.mxu0 0
      %2302 = vmatpush1.bf16.msra.mxu0 0
      %2303 = vmatprep.subr.bf16.mxu0 0
      %2304 = vmatpush1.bf16.msra.mxu0 0
      %2305 = vmatprep.subr.bf16.mxu0 0
      %2306 = vmatpush1.bf16.msra.mxu0 0
      %2307 = vmatprep.subr.bf16.mxu0 0
      %2308 = vmatpush1.bf16.msra.mxu0 0
      %2309 = vmatprep.subr.bf16.mxu0 0
      %2310 = vmatpush1.bf16.msra.mxu0 0
      %2311 = vmatprep.subr.bf16.mxu0 0
      %2312 = vmatpush1.bf16.msra.mxu0 0
      %2313 = vmatprep.subr.bf16.mxu0 0
      %2314 = vmatpush1.bf16.msra.mxu0 0
      %2315 = vmatprep.subr.bf16.mxu0 0
      %2316 = vmatpush1.bf16.msra.mxu0 0
      %2317 = vmatprep.subr.bf16.mxu0 0
      %2318 = vmatpush1.bf16.msra.mxu0 0
      %2319 = vmatprep.subr.bf16.mxu0 0
      %2320 = vmatpush1.bf16.msra.mxu0 0
      %2321 = vmatprep.subr.bf16.mxu0 0
      %2322 = vmatpush1.bf16.msra.mxu0 0
      %2323 = vmatprep.mubr.bf16.mxu0 0
      %2324 = vmatmul.mubr.bf16.gmra.mrb[0].mxu0 %v2274
      %v2325 = vpop.f32.mrb[0].mxu0
      %v2326 = vadd.f32 0.0, %v2325
      %v2327 = vpop.f32.mrb[0].mxu0
      %v2328 = vpop.f32.mrb[0].mxu0
      %v2329 = vadd.f32 0.0, %v2328
      %v2330 = vpop.f32.mrb[0].mxu0
      %2331 = vmatprep.mubr.bf16.mxu0 0
      %2332 = vmatmul.mubr.bf16.gmra.mrb[0].mxu0 %v2277
      %v2333 = vpop.f32.mrb[0].mxu0
      %v2334 = vadd.f32 0.0, %v2333
      %v2335 = vpop.f32.mrb[0].mxu0
      %v2336 = vpop.f32.mrb[0].mxu0
      %v2337 = vadd.f32 0.0, %v2336
      %v2338 = vpop.f32.mrb[0].mxu0
      %2339 = vmatprep.mubr.bf16.mxu0 0
      %2340 = vmatmul.mubr.bf16.gmra.mrb[0].mxu0 %v2280
      %v2341 = vpop.f32.mrb[0].mxu0
      %v2342 = vadd.f32 0.0, %v2341
      %v2343 = vpop.f32.mrb[0].mxu0
      %v2344 = vpop.f32.mrb[0].mxu0
      %v2345 = vadd.f32 0.0, %v2344
      %v2346 = vpop.f32.mrb[0].mxu0
      %2347 = vmatprep.mubr.bf16.mxu0 0
      %2348 = vmatmul.mubr.bf16.gmra.mrb[0].mxu0 %v2283
      %v2349 = vpop.f32.mrb[0].mxu0
      %v2350 = vadd.f32 0.0, %v2349
      %v2351 = vpop.f32.mrb[0].mxu0
      %v2352 = vpop.f32.mrb[0].mxu0
      %v2353 = vadd.f32 0.0, %v2352
      %v2354 = vpop.f32.mrb[0].mxu0
      %2355 = vmatprep.mubr.bf16.mxu0 0
      %2356 = vmatmul.mubr.bf16.gmra.mrb[0].mxu0 %v2286
      %v2357 = vpop.f32.mrb[0].mxu0
      %v2358 = vadd.f32 0.0, %v2357
      %v2359 = vpop.f32.mrb[0].mxu0
      %v2360 = vpop.f32.mrb[0].mxu0
      %v2361 = vadd.f32 0.0, %v2360
      %v2362 = vpop.f32.mrb[0].mxu0
      %2363 = vdwg.mxu0
      %v2364 = vadd.f32 %v2246, %v2326
      %v2365 = vadd.f32 %v2247, %v2329
      %v2366 = vadd.f32 %v2248, %v2334
      %v2367 = vadd.f32 %v2249, %v2337
      %v2368 = vadd.f32 %v2250, %v2342
      %v2369 = vadd.f32 %v2251, %v2345
      %v2370 = vadd.f32 %v2252, %v2350
      %v2371 = vadd.f32 %v2253, %v2353
      %v2372 = vadd.f32 %v2254, %v2358
      %v2373 = vadd.f32 %v2255, %v2361
      %s2374 = scalar_lea.vmem %s3, 64
      %v2375 = vld [vmem:[%s2374] sm:$0xf]
      %v2376 = vrot.slane %v1620, 2
      %v2377 = vrot.slane %v1616, 3
      %v2378 = vor.u32 %v2376, %v2377
      %v2379 = vrot.slane %v1627, 2
      %v2380 = vrot.slane %v1623, 3
      %v2381 = vor.u32 %v2379, %v2380
      %v2382 = vsel %vm1214, %v2378, %v2381
      %v2383 = vrot.slane %v1634, 2
      %v2384 = vrot.slane %v1630, 3
      %v2385 = vor.u32 %v2383, %v2384
      %v2386 = vsel %vm1214, %v2381, %v2385
      %v2387 = vrot.slane %v1641, 2
      %v2388 = vrot.slane %v1637, 3
      %v2389 = vor.u32 %v2387, %v2388
      %v2390 = vsel %vm1214, %v2385, %v2389
      %v2392 = vshrl.u32 %v2260, 16
      %v2394 = vrot.slane %v2392, 2
      %v2395 = vshll.u32 %v2260, 16
      %v2397 = vrot.slane %v2395, 3
      %v2398 = vor.u32 %v2394, %v2397
      %v2399 = vsel %vm1214, %v2389, %v2398
      %v2401 = vshrl.u32 %v2261, 16
      %v2403 = vrot.slane %v2401, 2
      %v2404 = vshll.u32 %v2261, 16
      %v2406 = vrot.slane %v2404, 3
      %v2407 = vor.u32 %v2403, %v2406
      %v2408 = vsel %vm1214, %v2398, %v2407
      %v2410 = vsel %vm406, %v2382, 0
      %v2413 = vsel %vm406, %v2386, 0
      %v2416 = vsel %vm406, %v2390, 0
      %v2419 = vsel %vm406, %v2399, 0
      %v2422 = vsel %vm406, %v2408, 0
      %v2425 = vsel %vm422, %v2375, 0
      %2427 = vmatprep.subr.bf16.mxu0 0
      %2428 = vmatpush1.bf16.msra.mxu0 %v2425
      %2429 = vmatprep.subr.bf16.mxu0 0
      %2430 = vmatpush1.bf16.msra.mxu0 0
      %2431 = vmatprep.subr.bf16.mxu0 0
      %2432 = vmatpush1.bf16.msra.mxu0 0
      %2433 = vmatprep.subr.bf16.mxu0 0
      %2434 = vmatpush1.bf16.msra.mxu0 0
      %2435 = vmatprep.subr.bf16.mxu0 0
      %2436 = vmatpush1.bf16.msra.mxu0 0
      %2437 = vmatprep.subr.bf16.mxu0 0
      %2438 = vmatpush1.bf16.msra.mxu0 0
      %2439 = vmatprep.subr.bf16.mxu0 0
      %2440 = vmatpush1.bf16.msra.mxu0 0
      %2441 = vmatprep.subr.bf16.mxu0 0
      %2442 = vmatpush1.bf16.msra.mxu0 0
      %2443 = vmatprep.subr.bf16.mxu0 0
      %2444 = vmatpush1.bf16.msra.mxu0 0
      %2445 = vmatprep.subr.bf16.mxu0 0
      %2446 = vmatpush1.bf16.msra.mxu0 0
      %2447 = vmatprep.subr.bf16.mxu0 0
      %2448 = vmatpush1.bf16.msra.mxu0 0
      %2449 = vmatprep.subr.bf16.mxu0 0
      %2450 = vmatpush1.bf16.msra.mxu0 0
      %2451 = vmatprep.subr.bf16.mxu0 0
      %2452 = vmatpush1.bf16.msra.mxu0 0
      %2453 = vmatprep.subr.bf16.mxu0 0
      %2454 = vmatpush1.bf16.msra.mxu0 0
      %2455 = vmatprep.subr.bf16.mxu0 0
      %2456 = vmatpush1.bf16.msra.mxu0 0
      %2457 = vmatprep.subr.bf16.mxu0 0
      %2458 = vmatpush1.bf16.msra.mxu0 0
      %2459 = vmatprep.mubr.bf16.mxu0 0
      %2460 = vmatmul.mubr.bf16.gmra.mrb[0].mxu0 %v2410
      %v2461 = vpop.f32.mrb[0].mxu0
      %v2462 = vadd.f32 0.0, %v2461
      %v2463 = vpop.f32.mrb[0].mxu0
      %v2464 = vpop.f32.mrb[0].mxu0
      %v2465 = vadd.f32 0.0, %v2464
      %v2466 = vpop.f32.mrb[0].mxu0
      %2467 = vmatprep.mubr.bf16.mxu0 0
      %2468 = vmatmul.mubr.bf16.gmra.mrb[0].mxu0 %v2413
      %v2469 = vpop.f32.mrb[0].mxu0
      %v2470 = vadd.f32 0.0, %v2469
      %v2471 = vpop.f32.mrb[0].mxu0
      %v2472 = vpop.f32.mrb[0].mxu0
      %v2473 = vadd.f32 0.0, %v2472
      %v2474 = vpop.f32.mrb[0].mxu0
      %2475 = vmatprep.mubr.bf16.mxu0 0
      %2476 = vmatmul.mubr.bf16.gmra.mrb[0].mxu0 %v2416
      %v2477 = vpop.f32.mrb[0].mxu0
      %v2478 = vadd.f32 0.0, %v2477
      %v2479 = vpop.f32.mrb[0].mxu0
      %v2480 = vpop.f32.mrb[0].mxu0
      %v2481 = vadd.f32 0.0, %v2480
      %v2482 = vpop.f32.mrb[0].mxu0
      %2483 = vmatprep.mubr.bf16.mxu0 0
      %2484 = vmatmul.mubr.bf16.gmra.mrb[0].mxu0 %v2419
      %v2485 = vpop.f32.mrb[0].mxu0
      %v2486 = vadd.f32 0.0, %v2485
      %v2487 = vpop.f32.mrb[0].mxu0
      %v2488 = vpop.f32.mrb[0].mxu0
      %v2489 = vadd.f32 0.0, %v2488
      %v2490 = vpop.f32.mrb[0].mxu0
      %2491 = vmatprep.mubr.bf16.mxu0 0
      %2492 = vmatmul.mubr.bf16.gmra.mrb[0].mxu0 %v2422
      %v2493 = vpop.f32.mrb[0].mxu0
      %v2494 = vadd.f32 0.0, %v2493
      %v2495 = vpop.f32.mrb[0].mxu0
      %v2496 = vpop.f32.mrb[0].mxu0
      %v2497 = vadd.f32 0.0, %v2496
      %v2498 = vpop.f32.mrb[0].mxu0
      %2499 = vdwg.mxu0
      %v2500 = vadd.f32 %v2364, %v2462
      %v2501 = vadd.f32 %v2365, %v2465
      %v2502 = vadd.f32 %v2366, %v2470
      %v2503 = vadd.f32 %v2367, %v2473
      %v2504 = vadd.f32 %v2368, %v2478
      %v2505 = vadd.f32 %v2369, %v2481
      %v2506 = vadd.f32 %v2370, %v2486
      %v2507 = vadd.f32 %v2371, %v2489
      %v2508 = vadd.f32 %v2372, %v2494
      %v2509 = vadd.f32 %v2373, %v2497
      %s2510 = scalar_lea.vmem %s3, 68
      %v2511 = vld [vmem:[%s2510] sm:$0xf]
      %v2512 = vrot.slane %v1500, 3
      %v2513 = vrot.slane %v1501, 3
      %v2514 = vsel %vm1351, %v2512, %v2513
      %v2515 = vrot.slane %v1502, 3
      %v2516 = vsel %vm1351, %v2513, %v2515
      %v2517 = vrot.slane %v1503, 3
      %v2518 = vsel %vm1351, %v2515, %v2517
      %v2519 = vrot.slane %v2260, 3
      %v2520 = vsel %vm1351, %v2517, %v2519
      %v2521 = vrot.slane %v2261, 3
      %v2522 = vsel %vm1351, %v2519, %v2521
      %v2524 = vsel %vm406, %v2514, 0
      %v2527 = vsel %vm406, %v2516, 0
      %v2530 = vsel %vm406, %v2518, 0
      %v2533 = vsel %vm406, %v2520, 0
      %v2536 = vsel %vm406, %v2522, 0
      %v2539 = vsel %vm422, %v2511, 0
      %2541 = vmatprep.subr.bf16.mxu0 0
      %2542 = vmatpush1.bf16.msra.mxu0 %v2539
      %2543 = vmatprep.subr.bf16.mxu0 0
      %2544 = vmatpush1.bf16.msra.mxu0 0
      %2545 = vmatprep.subr.bf16.mxu0 0
      %2546 = vmatpush1.bf16.msra.mxu0 0
      %2547 = vmatprep.subr.bf16.mxu0 0
      %2548 = vmatpush1.bf16.msra.mxu0 0
      %2549 = vmatprep.subr.bf16.mxu0 0
      %2550 = vmatpush1.bf16.msra.mxu0 0
      %2551 = vmatprep.subr.bf16.mxu0 0
      %2552 = vmatpush1.bf16.msra.mxu0 0
      %2553 = vmatprep.subr.bf16.mxu0 0
      %2554 = vmatpush1.bf16.msra.mxu0 0
      %2555 = vmatprep.subr.bf16.mxu0 0
      %2556 = vmatpush1.bf16.msra.mxu0 0
      %2557 = vmatprep.subr.bf16.mxu0 0
      %2558 = vmatpush1.bf16.msra.mxu0 0
      %2559 = vmatprep.subr.bf16.mxu0 0
      %2560 = vmatpush1.bf16.msra.mxu0 0
      %2561 = vmatprep.subr.bf16.mxu0 0
      %2562 = vmatpush1.bf16.msra.mxu0 0
      %2563 = vmatprep.subr.bf16.mxu0 0
      %2564 = vmatpush1.bf16.msra.mxu0 0
      %2565 = vmatprep.subr.bf16.mxu0 0
      %2566 = vmatpush1.bf16.msra.mxu0 0
      %2567 = vmatprep.subr.bf16.mxu0 0
      %2568 = vmatpush1.bf16.msra.mxu0 0
      %2569 = vmatprep.subr.bf16.mxu0 0
      %2570 = vmatpush1.bf16.msra.mxu0 0
      %2571 = vmatprep.subr.bf16.mxu0 0
      %2572 = vmatpush1.bf16.msra.mxu0 0
      %2573 = vmatprep.mubr.bf16.mxu0 0
      %2574 = vmatmul.mubr.bf16.gmra.mrb[0].mxu0 %v2524
      %v2575 = vpop.f32.mrb[0].mxu0
      %v2576 = vadd.f32 0.0, %v2575
      %v2577 = vpop.f32.mrb[0].mxu0
      %v2578 = vpop.f32.mrb[0].mxu0
      %v2579 = vadd.f32 0.0, %v2578
      %v2580 = vpop.f32.mrb[0].mxu0
      %2581 = vmatprep.mubr.bf16.mxu0 0
      %2582 = vmatmul.mubr.bf16.gmra.mrb[0].mxu0 %v2527
      %v2583 = vpop.f32.mrb[0].mxu0
      %v2584 = vadd.f32 0.0, %v2583
      %v2585 = vpop.f32.mrb[0].mxu0
      %v2586 = vpop.f32.mrb[0].mxu0
      %v2587 = vadd.f32 0.0, %v2586
      %v2588 = vpop.f32.mrb[0].mxu0
      %2589 = vmatprep.mubr.bf16.mxu0 0
      %2590 = vmatmul.mubr.bf16.gmra.mrb[0].mxu0 %v2530
      %v2591 = vpop.f32.mrb[0].mxu0
      %v2592 = vadd.f32 0.0, %v2591
      %v2593 = vpop.f32.mrb[0].mxu0
      %v2594 = vpop.f32.mrb[0].mxu0
      %v2595 = vadd.f32 0.0, %v2594
      %v2596 = vpop.f32.mrb[0].mxu0
      %2597 = vmatprep.mubr.bf16.mxu0 0
      %2598 = vmatmul.mubr.bf16.gmra.mrb[0].mxu0 %v2533
      %v2599 = vpop.f32.mrb[0].mxu0
      %v2600 = vadd.f32 0.0, %v2599
      %v2601 = vpop.f32.mrb[0].mxu0
      %v2602 = vpop.f32.mrb[0].mxu0
      %v2603 = vadd.f32 0.0, %v2602
      %v2604 = vpop.f32.mrb[0].mxu0
      %2605 = vmatprep.mubr.bf16.mxu0 0
      %2606 = vmatmul.mubr.bf16.gmra.mrb[0].mxu0 %v2536
      %v2607 = vpop.f32.mrb[0].mxu0
      %v2608 = vadd.f32 0.0, %v2607
      %v2609 = vpop.f32.mrb[0].mxu0
      %v2610 = vpop.f32.mrb[0].mxu0
      %v2611 = vadd.f32 0.0, %v2610
      %v2612 = vpop.f32.mrb[0].mxu0
      %2613 = vdwg.mxu0
      %v2614 = vadd.f32 %v2500, %v2576
      %v2615 = vadd.f32 %v2501, %v2579
      %v2616 = vadd.f32 %v2502, %v2584
      %v2617 = vadd.f32 %v2503, %v2587
      %v2618 = vadd.f32 %v2504, %v2592
      %v2619 = vadd.f32 %v2505, %v2595
      %v2620 = vadd.f32 %v2506, %v2600
      %v2621 = vadd.f32 %v2507, %v2603
      %v2622 = vadd.f32 %v2508, %v2608
      %v2623 = vadd.f32 %v2509, %v2611
      %v2624 = vld [vmem:[%s305] sm:$0xf]
      %v2625 = vld [vmem:[%s305 + $0x4] sm:$0xf]
      %v2626 = vld [vmem:[%s305 + $0x8] sm:$0xf]
      %v2627 = vld [vmem:[%s305 + $0xc] sm:$0xf]
      %v2628 = vld [vmem:[%s305 + $0x10] sm:$0xf]
      %v2629 = vld [vmem:[%s305 + $0x14] sm:$0xf]
      %v2630 = vld [vmem:[%s305 + $0x18] sm:$0xf]
      %v2631 = vld [vmem:[%s305 + $0x1c] sm:$0xf]
      %v2632 = vld [vmem:[%s305 + $0x20] sm:$0xf]
      %v2633 = vld [vmem:[%s305 + $0x24] sm:$0xf]
      %v2634 = vld [vmem:[%s305 + $0x28] sm:$0xf]
      %v2635 = vld [vmem:[%s305 + $0x2c] sm:$0xf]
      %v2636 = vld [vmem:[%s305 + $0x30] sm:$0xf]
      %s2637 = scalar_lea.vmem %s3, 72
      %v2638 = vld [vmem:[%s2637] sm:$0xf]
      %v2649 = vunpack.c.l.b16 %v2624
      %v2650 = vunpack.c.l.b16 %v2625
      %v2651 = vunpack.c.l.b16 %v2626
      %v2652 = vunpack.c.l.b16 %v2627
      %v2653 = vunpack.c.l.b16 %v2628
      %v2654 = vunpack.c.l.b16 %v2629
      %v2655 = vunpack.c.l.b16 %v2630
      %v2656 = vunpack.c.l.b16 %v2631
      %v2657 = vunpack.c.l.b16 %v2632
      %v2658 = vunpack.c.l.b16 %v2633
      %v2659 = vpack.c.b16 %v2650, %v2649
      %v2660 = vpack.c.b16 %v2652, %v2651
      %v2661 = vpack.c.b16 %v2654, %v2653
      %v2662 = vpack.c.b16 %v2656, %v2655
      %v2663 = vpack.c.b16 %v2658, %v2657
      %v2665 = vsel %vm406, %v2659, 0
      %v2668 = vsel %vm406, %v2660, 0
      %v2671 = vsel %vm406, %v2661, 0
      %v2674 = vsel %vm406, %v2662, 0
      %v2677 = vsel %vm406, %v2663, 0
      %v2680 = vsel %vm422, %v2638, 0
      %2682 = vmatprep.subr.bf16.mxu0 0
      %2683 = vmatpush1.bf16.msra.mxu0 %v2680
      %2684 = vmatprep.subr.bf16.mxu0 0
      %2685 = vmatpush1.bf16.msra.mxu0 0
      %2686 = vmatprep.subr.bf16.mxu0 0
      %2687 = vmatpush1.bf16.msra.mxu0 0
      %2688 = vmatprep.subr.bf16.mxu0 0
      %2689 = vmatpush1.bf16.msra.mxu0 0
      %2690 = vmatprep.subr.bf16.mxu0 0
      %2691 = vmatpush1.bf16.msra.mxu0 0
      %2692 = vmatprep.subr.bf16.mxu0 0
      %2693 = vmatpush1.bf16.msra.mxu0 0
      %2694 = vmatprep.subr.bf16.mxu0 0
      %2695 = vmatpush1.bf16.msra.mxu0 0
      %2696 = vmatprep.subr.bf16.mxu0 0
      %2697 = vmatpush1.bf16.msra.mxu0 0
      %2698 = vmatprep.subr.bf16.mxu0 0
      %2699 = vmatpush1.bf16.msra.mxu0 0
      %2700 = vmatprep.subr.bf16.mxu0 0
      %2701 = vmatpush1.bf16.msra.mxu0 0
      %2702 = vmatprep.subr.bf16.mxu0 0
      %2703 = vmatpush1.bf16.msra.mxu0 0
      %2704 = vmatprep.subr.bf16.mxu0 0
      %2705 = vmatpush1.bf16.msra.mxu0 0
      %2706 = vmatprep.subr.bf16.mxu0 0
      %2707 = vmatpush1.bf16.msra.mxu0 0
      %2708 = vmatprep.subr.bf16.mxu0 0
      %2709 = vmatpush1.bf16.msra.mxu0 0
      %2710 = vmatprep.subr.bf16.mxu0 0
      %2711 = vmatpush1.bf16.msra.mxu0 0
      %2712 = vmatprep.subr.bf16.mxu0 0
      %2713 = vmatpush1.bf16.msra.mxu0 0
      %2714 = vmatprep.mubr.bf16.mxu0 0
      %2715 = vmatmul.mubr.bf16.gmra.mrb[0].mxu0 %v2665
      %v2716 = vpop.f32.mrb[0].mxu0
      %v2717 = vadd.f32 0.0, %v2716
      %v2718 = vpop.f32.mrb[0].mxu0
      %v2719 = vpop.f32.mrb[0].mxu0
      %v2720 = vadd.f32 0.0, %v2719
      %v2721 = vpop.f32.mrb[0].mxu0
      %2722 = vmatprep.mubr.bf16.mxu0 0
      %2723 = vmatmul.mubr.bf16.gmra.mrb[0].mxu0 %v2668
      %v2724 = vpop.f32.mrb[0].mxu0
      %v2725 = vadd.f32 0.0, %v2724
      %v2726 = vpop.f32.mrb[0].mxu0
      %v2727 = vpop.f32.mrb[0].mxu0
      %v2728 = vadd.f32 0.0, %v2727
      %v2729 = vpop.f32.mrb[0].mxu0
      %2730 = vmatprep.mubr.bf16.mxu0 0
      %2731 = vmatmul.mubr.bf16.gmra.mrb[0].mxu0 %v2671
      %v2732 = vpop.f32.mrb[0].mxu0
      %v2733 = vadd.f32 0.0, %v2732
      %v2734 = vpop.f32.mrb[0].mxu0
      %v2735 = vpop.f32.mrb[0].mxu0
      %v2736 = vadd.f32 0.0, %v2735
      %v2737 = vpop.f32.mrb[0].mxu0
      %2738 = vmatprep.mubr.bf16.mxu0 0
      %2739 = vmatmul.mubr.bf16.gmra.mrb[0].mxu0 %v2674
      %v2740 = vpop.f32.mrb[0].mxu0
      %v2741 = vadd.f32 0.0, %v2740
      %v2742 = vpop.f32.mrb[0].mxu0
      %v2743 = vpop.f32.mrb[0].mxu0
      %v2744 = vadd.f32 0.0, %v2743
      %v2745 = vpop.f32.mrb[0].mxu0
      %2746 = vmatprep.mubr.bf16.mxu0 0
      %2747 = vmatmul.mubr.bf16.gmra.mrb[0].mxu0 %v2677
      %v2748 = vpop.f32.mrb[0].mxu0
      %v2749 = vadd.f32 0.0, %v2748
      %v2750 = vpop.f32.mrb[0].mxu0
      %v2751 = vpop.f32.mrb[0].mxu0
      %v2752 = vadd.f32 0.0, %v2751
      %v2753 = vpop.f32.mrb[0].mxu0
      %2754 = vdwg.mxu0
      %v2755 = vadd.f32 %v2614, %v2717
      %v2756 = vadd.f32 %v2615, %v2720
      %v2757 = vadd.f32 %v2616, %v2725
      %v2758 = vadd.f32 %v2617, %v2728
      %v2759 = vadd.f32 %v2618, %v2733
      %v2760 = vadd.f32 %v2619, %v2736
      %v2761 = vadd.f32 %v2620, %v2741
      %v2762 = vadd.f32 %v2621, %v2744
      %v2763 = vadd.f32 %v2622, %v2749
      %v2764 = vadd.f32 %v2623, %v2752
      %s2765 = scalar_lea.vmem %s3, 76
      %v2766 = vld [vmem:[%s2765] sm:$0xf]
      %v2768 = vunpack.c.l.b16 %v2634
      %v2769 = vpack.c.b16 %v2768, %v2768
      %v2770 = vshrl.u32 %v2659, 16
      %v2772 = vshll.u32 %v2659, 16
      %v2774 = vrot.slane %v2772, 1
      %v2775 = vor.u32 %v2770, %v2774
      %v2776 = vshll.u32 %v2660, 16
      %v2778 = vrot.slane %v2776, 1
      %v2779 = vsel %vm361, %v2775, %v2778
      %v2780 = vshrl.u32 %v2660, 16
      %v2782 = vor.u32 %v2780, %v2778
      %v2783 = vshll.u32 %v2661, 16
      %v2785 = vrot.slane %v2783, 1
      %v2786 = vsel %vm361, %v2782, %v2785
      %v2787 = vshrl.u32 %v2661, 16
      %v2789 = vor.u32 %v2787, %v2785
      %v2790 = vshll.u32 %v2662, 16
      %v2792 = vrot.slane %v2790, 1
      %v2793 = vsel %vm361, %v2789, %v2792
      %v2794 = vshrl.u32 %v2662, 16
      %v2796 = vor.u32 %v2794, %v2792
      %v2797 = vshll.u32 %v2663, 16
      %v2799 = vrot.slane %v2797, 1
      %v2800 = vsel %vm361, %v2796, %v2799
      %v2801 = vshrl.u32 %v2663, 16
      %v2803 = vor.u32 %v2801, %v2799
      %v2805 = vshll.u32 %v2769, 16
      %v2807 = vrot.slane %v2805, 1
      %v2808 = vsel %vm361, %v2803, %v2807
      %v2810 = vsel %vm406, %v2779, 0
      %v2813 = vsel %vm406, %v2786, 0
      %v2816 = vsel %vm406, %v2793, 0
      %v2819 = vsel %vm406, %v2800, 0
      %v2822 = vsel %vm406, %v2808, 0
      %v2825 = vsel %vm422, %v2766, 0
      %2827 = vmatprep.subr.bf16.mxu0 0
      %2828 = vmatpush1.bf16.msra.mxu0 %v2825
      %2829 = vmatprep.subr.bf16.mxu0 0
      %2830 = vmatpush1.bf16.msra.mxu0 0
      %2831 = vmatprep.subr.bf16.mxu0 0
      %2832 = vmatpush1.bf16.msra.mxu0 0
      %2833 = vmatprep.subr.bf16.mxu0 0
      %2834 = vmatpush1.bf16.msra.mxu0 0
      %2835 = vmatprep.subr.bf16.mxu0 0
      %2836 = vmatpush1.bf16.msra.mxu0 0
      %2837 = vmatprep.subr.bf16.mxu0 0
      %2838 = vmatpush1.bf16.msra.mxu0 0
      %2839 = vmatprep.subr.bf16.mxu0 0
      %2840 = vmatpush1.bf16.msra.mxu0 0
      %2841 = vmatprep.subr.bf16.mxu0 0
      %2842 = vmatpush1.bf16.msra.mxu0 0
      %2843 = vmatprep.subr.bf16.mxu0 0
      %2844 = vmatpush1.bf16.msra.mxu0 0
      %2845 = vmatprep.subr.bf16.mxu0 0
      %2846 = vmatpush1.bf16.msra.mxu0 0
      %2847 = vmatprep.subr.bf16.mxu0 0
      %2848 = vmatpush1.bf16.msra.mxu0 0
      %2849 = vmatprep.subr.bf16.mxu0 0
      %2850 = vmatpush1.bf16.msra.mxu0 0
      %2851 = vmatprep.subr.bf16.mxu0 0
      %2852 = vmatpush1.bf16.msra.mxu0 0
      %2853 = vmatprep.subr.bf16.mxu0 0
      %2854 = vmatpush1.bf16.msra.mxu0 0
      %2855 = vmatprep.subr.bf16.mxu0 0
      %2856 = vmatpush1.bf16.msra.mxu0 0
      %2857 = vmatprep.subr.bf16.mxu0 0
      %2858 = vmatpush1.bf16.msra.mxu0 0
      %2859 = vmatprep.mubr.bf16.mxu0 0
      %2860 = vmatmul.mubr.bf16.gmra.mrb[0].mxu0 %v2810
      %v2861 = vpop.f32.mrb[0].mxu0
      %v2862 = vadd.f32 0.0, %v2861
      %v2863 = vpop.f32.mrb[0].mxu0
      %v2864 = vpop.f32.mrb[0].mxu0
      %v2865 = vadd.f32 0.0, %v2864
      %v2866 = vpop.f32.mrb[0].mxu0
      %2867 = vmatprep.mubr.bf16.mxu0 0
      %2868 = vmatmul.mubr.bf16.gmra.mrb[0].mxu0 %v2813
      %v2869 = vpop.f32.mrb[0].mxu0
      %v2870 = vadd.f32 0.0, %v2869
      %v2871 = vpop.f32.mrb[0].mxu0
      %v2872 = vpop.f32.mrb[0].mxu0
      %v2873 = vadd.f32 0.0, %v2872
      %v2874 = vpop.f32.mrb[0].mxu0
      %2875 = vmatprep.mubr.bf16.mxu0 0
      %2876 = vmatmul.mubr.bf16.gmra.mrb[0].mxu0 %v2816
      %v2877 = vpop.f32.mrb[0].mxu0
      %v2878 = vadd.f32 0.0, %v2877
      %v2879 = vpop.f32.mrb[0].mxu0
      %v2880 = vpop.f32.mrb[0].mxu0
      %v2881 = vadd.f32 0.0, %v2880
      %v2882 = vpop.f32.mrb[0].mxu0
      %2883 = vmatprep.mubr.bf16.mxu0 0
      %2884 = vmatmul.mubr.bf16.gmra.mrb[0].mxu0 %v2819
      %v2885 = vpop.f32.mrb[0].mxu0
      %v2886 = vadd.f32 0.0, %v2885
      %v2887 = vpop.f32.mrb[0].mxu0
      %v2888 = vpop.f32.mrb[0].mxu0
      %v2889 = vadd.f32 0.0, %v2888
      %v2890 = vpop.f32.mrb[0].mxu0
      %2891 = vmatprep.mubr.bf16.mxu0 0
      %2892 = vmatmul.mubr.bf16.gmra.mrb[0].mxu0 %v2822
      %v2893 = vpop.f32.mrb[0].mxu0
      %v2894 = vadd.f32 0.0, %v2893
      %v2895 = vpop.f32.mrb[0].mxu0
      %v2896 = vpop.f32.mrb[0].mxu0
      %v2897 = vadd.f32 0.0, %v2896
      %v2898 = vpop.f32.mrb[0].mxu0
      %2899 = vdwg.mxu0
      %v2900 = vadd.f32 %v2755, %v2862
      %v2901 = vadd.f32 %v2756, %v2865
      %v2902 = vadd.f32 %v2757, %v2870
      %v2903 = vadd.f32 %v2758, %v2873
      %v2904 = vadd.f32 %v2759, %v2878
      %v2905 = vadd.f32 %v2760, %v2881
      %v2906 = vadd.f32 %v2761, %v2886
      %v2907 = vadd.f32 %v2762, %v2889
      %v2908 = vadd.f32 %v2763, %v2894
      %v2909 = vadd.f32 %v2764, %v2897
      %s2910 = scalar_lea.vmem %s3, 80
      %v2911 = vld [vmem:[%s2910] sm:$0xf]
      %v2912 = vrot.slane %v2659, 1
      %v2913 = vrot.slane %v2660, 1
      %v2914 = vsel %vm587, %v2912, %v2913
      %v2915 = vrot.slane %v2661, 1
      %v2916 = vsel %vm587, %v2913, %v2915
      %v2917 = vrot.slane %v2662, 1
      %v2918 = vsel %vm587, %v2915, %v2917
      %v2919 = vrot.slane %v2663, 1
      %v2920 = vsel %vm587, %v2917, %v2919
      %v2921 = vrot.slane %v2769, 1
      %v2922 = vsel %vm587, %v2919, %v2921
      %v2924 = vsel %vm406, %v2914, 0
      %v2927 = vsel %vm406, %v2916, 0
      %v2930 = vsel %vm406, %v2918, 0
      %v2933 = vsel %vm406, %v2920, 0
      %v2936 = vsel %vm406, %v2922, 0
      %v2939 = vsel %vm422, %v2911, 0
      %2941 = vmatprep.subr.bf16.mxu0 0
      %2942 = vmatpush1.bf16.msra.mxu0 %v2939
      %2943 = vmatprep.subr.bf16.mxu0 0
      %2944 = vmatpush1.bf16.msra.mxu0 0
      %2945 = vmatprep.subr.bf16.mxu0 0
      %2946 = vmatpush1.bf16.msra.mxu0 0
      %2947 = vmatprep.subr.bf16.mxu0 0
      %2948 = vmatpush1.bf16.msra.mxu0 0
      %2949 = vmatprep.subr.bf16.mxu0 0
      %2950 = vmatpush1.bf16.msra.mxu0 0
      %2951 = vmatprep.subr.bf16.mxu0 0
      %2952 = vmatpush1.bf16.msra.mxu0 0
      %2953 = vmatprep.subr.bf16.mxu0 0
      %2954 = vmatpush1.bf16.msra.mxu0 0
      %2955 = vmatprep.subr.bf16.mxu0 0
      %2956 = vmatpush1.bf16.msra.mxu0 0
      %2957 = vmatprep.subr.bf16.mxu0 0
      %2958 = vmatpush1.bf16.msra.mxu0 0
      %2959 = vmatprep.subr.bf16.mxu0 0
      %2960 = vmatpush1.bf16.msra.mxu0 0
      %2961 = vmatprep.subr.bf16.mxu0 0
      %2962 = vmatpush1.bf16.msra.mxu0 0
      %2963 = vmatprep.subr.bf16.mxu0 0
      %2964 = vmatpush1.bf16.msra.mxu0 0
      %2965 = vmatprep.subr.bf16.mxu0 0
      %2966 = vmatpush1.bf16.msra.mxu0 0
      %2967 = vmatprep.subr.bf16.mxu0 0
      %2968 = vmatpush1.bf16.msra.mxu0 0
      %2969 = vmatprep.subr.bf16.mxu0 0
      %2970 = vmatpush1.bf16.msra.mxu0 0
      %2971 = vmatprep.subr.bf16.mxu0 0
      %2972 = vmatpush1.bf16.msra.mxu0 0
      %2973 = vmatprep.mubr.bf16.mxu0 0
      %2974 = vmatmul.mubr.bf16.gmra.mrb[0].mxu0 %v2924
      %v2975 = vpop.f32.mrb[0].mxu0
      %v2976 = vadd.f32 0.0, %v2975
      %v2977 = vpop.f32.mrb[0].mxu0
      %v2978 = vpop.f32.mrb[0].mxu0
      %v2979 = vadd.f32 0.0, %v2978
      %v2980 = vpop.f32.mrb[0].mxu0
      %2981 = vmatprep.mubr.bf16.mxu0 0
      %2982 = vmatmul.mubr.bf16.gmra.mrb[0].mxu0 %v2927
      %v2983 = vpop.f32.mrb[0].mxu0
      %v2984 = vadd.f32 0.0, %v2983
      %v2985 = vpop.f32.mrb[0].mxu0
      %v2986 = vpop.f32.mrb[0].mxu0
      %v2987 = vadd.f32 0.0, %v2986
      %v2988 = vpop.f32.mrb[0].mxu0
      %2989 = vmatprep.mubr.bf16.mxu0 0
      %2990 = vmatmul.mubr.bf16.gmra.mrb[0].mxu0 %v2930
      %v2991 = vpop.f32.mrb[0].mxu0
      %v2992 = vadd.f32 0.0, %v2991
      %v2993 = vpop.f32.mrb[0].mxu0
      %v2994 = vpop.f32.mrb[0].mxu0
      %v2995 = vadd.f32 0.0, %v2994
      %v2996 = vpop.f32.mrb[0].mxu0
      %2997 = vmatprep.mubr.bf16.mxu0 0
      %2998 = vmatmul.mubr.bf16.gmra.mrb[0].mxu0 %v2933
      %v2999 = vpop.f32.mrb[0].mxu0
      %v3000 = vadd.f32 0.0, %v2999
      %v3001 = vpop.f32.mrb[0].mxu0
      %v3002 = vpop.f32.mrb[0].mxu0
      %v3003 = vadd.f32 0.0, %v3002
      %v3004 = vpop.f32.mrb[0].mxu0
      %3005 = vmatprep.mubr.bf16.mxu0 0
      %3006 = vmatmul.mubr.bf16.gmra.mrb[0].mxu0 %v2936
      %v3007 = vpop.f32.mrb[0].mxu0
      %v3008 = vadd.f32 0.0, %v3007
      %v3009 = vpop.f32.mrb[0].mxu0
      %v3010 = vpop.f32.mrb[0].mxu0
      %v3011 = vadd.f32 0.0, %v3010
      %v3012 = vpop.f32.mrb[0].mxu0
      %3013 = vdwg.mxu0
      %v3014 = vadd.f32 %v2900, %v2976
      %v3015 = vadd.f32 %v2901, %v2979
      %v3016 = vadd.f32 %v2902, %v2984
      %v3017 = vadd.f32 %v2903, %v2987
      %v3018 = vadd.f32 %v2904, %v2992
      %v3019 = vadd.f32 %v2905, %v2995
      %v3020 = vadd.f32 %v2906, %v3000
      %v3021 = vadd.f32 %v2907, %v3003
      %v3022 = vadd.f32 %v2908, %v3008
      %v3023 = vadd.f32 %v2909, %v3011
      %s3024 = scalar_lea.vmem %s3, 84
      %v3025 = vld [vmem:[%s3024] sm:$0xf]
      %v3027 = vunpack.c.l.b16 %v2635
      %v3028 = vpack.c.b16 %v2651, %v2650
      %v3029 = vpack.c.b16 %v2653, %v2652
      %v3030 = vpack.c.b16 %v2655, %v2654
      %v3031 = vpack.c.b16 %v2657, %v2656
      %v3032 = vpack.c.b16 %v2768, %v2658
      %v3033 = vpack.c.b16 %v3027, %v3027
      %v3034 = vrot.slane %v3028, 1
      %v3035 = vrot.slane %v3029, 1
      %v3036 = vsel %vm587, %v3034, %v3035
      %v3037 = vrot.slane %v3030, 1
      %v3038 = vsel %vm587, %v3035, %v3037
      %v3039 = vrot.slane %v3031, 1
      %v3040 = vsel %vm587, %v3037, %v3039
      %v3041 = vrot.slane %v3032, 1
      %v3042 = vsel %vm587, %v3039, %v3041
      %v3043 = vrot.slane %v3033, 1
      %v3044 = vsel %vm587, %v3041, %v3043
      %v3046 = vsel %vm406, %v3036, 0
      %v3049 = vsel %vm406, %v3038, 0
      %v3052 = vsel %vm406, %v3040, 0
      %v3055 = vsel %vm406, %v3042, 0
      %v3058 = vsel %vm406, %v3044, 0
      %v3061 = vsel %vm422, %v3025, 0
      %3063 = vmatprep.subr.bf16.mxu0 0
      %3064 = vmatpush1.bf16.msra.mxu0 %v3061
      %3065 = vmatprep.subr.bf16.mxu0 0
      %3066 = vmatpush1.bf16.msra.mxu0 0
      %3067 = vmatprep.subr.bf16.mxu0 0
      %3068 = vmatpush1.bf16.msra.mxu0 0
      %3069 = vmatprep.subr.bf16.mxu0 0
      %3070 = vmatpush1.bf16.msra.mxu0 0
      %3071 = vmatprep.subr.bf16.mxu0 0
      %3072 = vmatpush1.bf16.msra.mxu0 0
      %3073 = vmatprep.subr.bf16.mxu0 0
      %3074 = vmatpush1.bf16.msra.mxu0 0
      %3075 = vmatprep.subr.bf16.mxu0 0
      %3076 = vmatpush1.bf16.msra.mxu0 0
      %3077 = vmatprep.subr.bf16.mxu0 0
      %3078 = vmatpush1.bf16.msra.mxu0 0
      %3079 = vmatprep.subr.bf16.mxu0 0
      %3080 = vmatpush1.bf16.msra.mxu0 0
      %3081 = vmatprep.subr.bf16.mxu0 0
      %3082 = vmatpush1.bf16.msra.mxu0 0
      %3083 = vmatprep.subr.bf16.mxu0 0
      %3084 = vmatpush1.bf16.msra.mxu0 0
      %3085 = vmatprep.subr.bf16.mxu0 0
      %3086 = vmatpush1.bf16.msra.mxu0 0
      %3087 = vmatprep.subr.bf16.mxu0 0
      %3088 = vmatpush1.bf16.msra.mxu0 0
      %3089 = vmatprep.subr.bf16.mxu0 0
      %3090 = vmatpush1.bf16.msra.mxu0 0
      %3091 = vmatprep.subr.bf16.mxu0 0
      %3092 = vmatpush1.bf16.msra.mxu0 0
      %3093 = vmatprep.subr.bf16.mxu0 0
      %3094 = vmatpush1.bf16.msra.mxu0 0
      %3095 = vmatprep.mubr.bf16.mxu0 0
      %3096 = vmatmul.mubr.bf16.gmra.mrb[0].mxu0 %v3046
      %v3097 = vpop.f32.mrb[0].mxu0
      %v3098 = vadd.f32 0.0, %v3097
      %v3099 = vpop.f32.mrb[0].mxu0
      %v3100 = vpop.f32.mrb[0].mxu0
      %v3101 = vadd.f32 0.0, %v3100
      %v3102 = vpop.f32.mrb[0].mxu0
      %3103 = vmatprep.mubr.bf16.mxu0 0
      %3104 = vmatmul.mubr.bf16.gmra.mrb[0].mxu0 %v3049
      %v3105 = vpop.f32.mrb[0].mxu0
      %v3106 = vadd.f32 0.0, %v3105
      %v3107 = vpop.f32.mrb[0].mxu0
      %v3108 = vpop.f32.mrb[0].mxu0
      %v3109 = vadd.f32 0.0, %v3108
      %v3110 = vpop.f32.mrb[0].mxu0
      %3111 = vmatprep.mubr.bf16.mxu0 0
      %3112 = vmatmul.mubr.bf16.gmra.mrb[0].mxu0 %v3052
      %v3113 = vpop.f32.mrb[0].mxu0
      %v3114 = vadd.f32 0.0, %v3113
      %v3115 = vpop.f32.mrb[0].mxu0
      %v3116 = vpop.f32.mrb[0].mxu0
      %v3117 = vadd.f32 0.0, %v3116
      %v3118 = vpop.f32.mrb[0].mxu0
      %3119 = vmatprep.mubr.bf16.mxu0 0
      %3120 = vmatmul.mubr.bf16.gmra.mrb[0].mxu0 %v3055
      %v3121 = vpop.f32.mrb[0].mxu0
      %v3122 = vadd.f32 0.0, %v3121
      %v3123 = vpop.f32.mrb[0].mxu0
      %v3124 = vpop.f32.mrb[0].mxu0
      %v3125 = vadd.f32 0.0, %v3124
      %v3126 = vpop.f32.mrb[0].mxu0
      %3127 = vmatprep.mubr.bf16.mxu0 0
      %3128 = vmatmul.mubr.bf16.gmra.mrb[0].mxu0 %v3058
      %v3129 = vpop.f32.mrb[0].mxu0
      %v3130 = vadd.f32 0.0, %v3129
      %v3131 = vpop.f32.mrb[0].mxu0
      %v3132 = vpop.f32.mrb[0].mxu0
      %v3133 = vadd.f32 0.0, %v3132
      %v3134 = vpop.f32.mrb[0].mxu0
      %3135 = vdwg.mxu0
      %v3136 = vadd.f32 %v3014, %v3098
      %v3137 = vadd.f32 %v3015, %v3101
      %v3138 = vadd.f32 %v3016, %v3106
      %v3139 = vadd.f32 %v3017, %v3109
      %v3140 = vadd.f32 %v3018, %v3114
      %v3141 = vadd.f32 %v3019, %v3117
      %v3142 = vadd.f32 %v3020, %v3122
      %v3143 = vadd.f32 %v3021, %v3125
      %v3144 = vadd.f32 %v3022, %v3130
      %v3145 = vadd.f32 %v3023, %v3133
      %s3146 = scalar_lea.vmem %s3, 88
      %v3147 = vld [vmem:[%s3146] sm:$0xf]
      %v3149 = vshrl.u32 %v3028, 16
      %v3151 = vrot.slane %v3149, 1
      %v3152 = vshll.u32 %v3028, 16
      %v3154 = vrot.slane %v3152, 2
      %v3155 = vor.u32 %v3151, %v3154
      %v3157 = vshrl.u32 %v3029, 16
      %v3159 = vrot.slane %v3157, 1
      %v3160 = vshll.u32 %v3029, 16
      %v3162 = vrot.slane %v3160, 2
      %v3163 = vor.u32 %v3159, %v3162
      %v3164 = vsel %vm824, %v3155, %v3163
      %v3166 = vshrl.u32 %v3030, 16
      %v3168 = vrot.slane %v3166, 1
      %v3169 = vshll.u32 %v3030, 16
      %v3171 = vrot.slane %v3169, 2
      %v3172 = vor.u32 %v3168, %v3171
      %v3173 = vsel %vm824, %v3163, %v3172
      %v3175 = vshrl.u32 %v3031, 16
      %v3177 = vrot.slane %v3175, 1
      %v3178 = vshll.u32 %v3031, 16
      %v3180 = vrot.slane %v3178, 2
      %v3181 = vor.u32 %v3177, %v3180
      %v3182 = vsel %vm824, %v3172, %v3181
      %v3184 = vshrl.u32 %v3032, 16
      %v3186 = vrot.slane %v3184, 1
      %v3187 = vshll.u32 %v3032, 16
      %v3189 = vrot.slane %v3187, 2
      %v3190 = vor.u32 %v3186, %v3189
      %v3191 = vsel %vm824, %v3181, %v3190
      %v3193 = vshrl.u32 %v3033, 16
      %v3195 = vrot.slane %v3193, 1
      %v3196 = vshll.u32 %v3033, 16
      %v3198 = vrot.slane %v3196, 2
      %v3199 = vor.u32 %v3195, %v3198
      %v3200 = vsel %vm824, %v3190, %v3199
      %v3202 = vsel %vm406, %v3164, 0
      %v3205 = vsel %vm406, %v3173, 0
      %v3208 = vsel %vm406, %v3182, 0
      %v3211 = vsel %vm406, %v3191, 0
      %v3214 = vsel %vm406, %v3200, 0
      %v3217 = vsel %vm422, %v3147, 0
      %3219 = vmatprep.subr.bf16.mxu0 0
      %3220 = vmatpush1.bf16.msra.mxu0 %v3217
      %3221 = vmatprep.subr.bf16.mxu0 0
      %3222 = vmatpush1.bf16.msra.mxu0 0
      %3223 = vmatprep.subr.bf16.mxu0 0
      %3224 = vmatpush1.bf16.msra.mxu0 0
      %3225 = vmatprep.subr.bf16.mxu0 0
      %3226 = vmatpush1.bf16.msra.mxu0 0
      %3227 = vmatprep.subr.bf16.mxu0 0
      %3228 = vmatpush1.bf16.msra.mxu0 0
      %3229 = vmatprep.subr.bf16.mxu0 0
      %3230 = vmatpush1.bf16.msra.mxu0 0
      %3231 = vmatprep.subr.bf16.mxu0 0
      %3232 = vmatpush1.bf16.msra.mxu0 0
      %3233 = vmatprep.subr.bf16.mxu0 0
      %3234 = vmatpush1.bf16.msra.mxu0 0
      %3235 = vmatprep.subr.bf16.mxu0 0
      %3236 = vmatpush1.bf16.msra.mxu0 0
      %3237 = vmatprep.subr.bf16.mxu0 0
      %3238 = vmatpush1.bf16.msra.mxu0 0
      %3239 = vmatprep.subr.bf16.mxu0 0
      %3240 = vmatpush1.bf16.msra.mxu0 0
      %3241 = vmatprep.subr.bf16.mxu0 0
      %3242 = vmatpush1.bf16.msra.mxu0 0
      %3243 = vmatprep.subr.bf16.mxu0 0
      %3244 = vmatpush1.bf16.msra.mxu0 0
      %3245 = vmatprep.subr.bf16.mxu0 0
      %3246 = vmatpush1.bf16.msra.mxu0 0
      %3247 = vmatprep.subr.bf16.mxu0 0
      %3248 = vmatpush1.bf16.msra.mxu0 0
      %3249 = vmatprep.subr.bf16.mxu0 0
      %3250 = vmatpush1.bf16.msra.mxu0 0
      %3251 = vmatprep.mubr.bf16.mxu0 0
      %3252 = vmatmul.mubr.bf16.gmra.mrb[0].mxu0 %v3202
      %v3253 = vpop.f32.mrb[0].mxu0
      %v3254 = vadd.f32 0.0, %v3253
      %v3255 = vpop.f32.mrb[0].mxu0
      %v3256 = vpop.f32.mrb[0].mxu0
      %v3257 = vadd.f32 0.0, %v3256
      %v3258 = vpop.f32.mrb[0].mxu0
      %3259 = vmatprep.mubr.bf16.mxu0 0
      %3260 = vmatmul.mubr.bf16.gmra.mrb[0].mxu0 %v3205
      %v3261 = vpop.f32.mrb[0].mxu0
      %v3262 = vadd.f32 0.0, %v3261
      %v3263 = vpop.f32.mrb[0].mxu0
      %v3264 = vpop.f32.mrb[0].mxu0
      %v3265 = vadd.f32 0.0, %v3264
      %v3266 = vpop.f32.mrb[0].mxu0
      %3267 = vmatprep.mubr.bf16.mxu0 0
      %3268 = vmatmul.mubr.bf16.gmra.mrb[0].mxu0 %v3208
      %v3269 = vpop.f32.mrb[0].mxu0
      %v3270 = vadd.f32 0.0, %v3269
      %v3271 = vpop.f32.mrb[0].mxu0
      %v3272 = vpop.f32.mrb[0].mxu0
      %v3273 = vadd.f32 0.0, %v3272
      %v3274 = vpop.f32.mrb[0].mxu0
      %3275 = vmatprep.mubr.bf16.mxu0 0
      %3276 = vmatmul.mubr.bf16.gmra.mrb[0].mxu0 %v3211
      %v3277 = vpop.f32.mrb[0].mxu0
      %v3278 = vadd.f32 0.0, %v3277
      %v3279 = vpop.f32.mrb[0].mxu0
      %v3280 = vpop.f32.mrb[0].mxu0
      %v3281 = vadd.f32 0.0, %v3280
      %v3282 = vpop.f32.mrb[0].mxu0
      %3283 = vmatprep.mubr.bf16.mxu0 0
      %3284 = vmatmul.mubr.bf16.gmra.mrb[0].mxu0 %v3214
      %v3285 = vpop.f32.mrb[0].mxu0
      %v3286 = vadd.f32 0.0, %v3285
      %v3287 = vpop.f32.mrb[0].mxu0
      %v3288 = vpop.f32.mrb[0].mxu0
      %v3289 = vadd.f32 0.0, %v3288
      %v3290 = vpop.f32.mrb[0].mxu0
      %3291 = vdwg.mxu0
      %v3292 = vadd.f32 %v3136, %v3254
      %v3293 = vadd.f32 %v3137, %v3257
      %v3294 = vadd.f32 %v3138, %v3262
      %v3295 = vadd.f32 %v3139, %v3265
      %v3296 = vadd.f32 %v3140, %v3270
      %v3297 = vadd.f32 %v3141, %v3273
      %v3298 = vadd.f32 %v3142, %v3278
      %v3299 = vadd.f32 %v3143, %v3281
      %v3300 = vadd.f32 %v3144, %v3286
      %v3301 = vadd.f32 %v3145, %v3289
      %s3302 = scalar_lea.vmem %s3, 92
      %v3303 = vld [vmem:[%s3302] sm:$0xf]
      %v3304 = vrot.slane %v3028, 2
      %v3305 = vrot.slane %v3029, 2
      %v3306 = vsel %vm981, %v3304, %v3305
      %v3307 = vrot.slane %v3030, 2
      %v3308 = vsel %vm981, %v3305, %v3307
      %v3309 = vrot.slane %v3031, 2
      %v3310 = vsel %vm981, %v3307, %v3309
      %v3311 = vrot.slane %v3032, 2
      %v3312 = vsel %vm981, %v3309, %v3311
      %v3313 = vrot.slane %v3033, 2
      %v3314 = vsel %vm981, %v3311, %v3313
      %v3316 = vsel %vm406, %v3306, 0
      %v3319 = vsel %vm406, %v3308, 0
      %v3322 = vsel %vm406, %v3310, 0
      %v3325 = vsel %vm406, %v3312, 0
      %v3328 = vsel %vm406, %v3314, 0
      %v3331 = vsel %vm422, %v3303, 0
      %3333 = vmatprep.subr.bf16.mxu0 0
      %3334 = vmatpush1.bf16.msra.mxu0 %v3331
      %3335 = vmatprep.subr.bf16.mxu0 0
      %3336 = vmatpush1.bf16.msra.mxu0 0
      %3337 = vmatprep.subr.bf16.mxu0 0
      %3338 = vmatpush1.bf16.msra.mxu0 0
      %3339 = vmatprep.subr.bf16.mxu0 0
      %3340 = vmatpush1.bf16.msra.mxu0 0
      %3341 = vmatprep.subr.bf16.mxu0 0
      %3342 = vmatpush1.bf16.msra.mxu0 0
      %3343 = vmatprep.subr.bf16.mxu0 0
      %3344 = vmatpush1.bf16.msra.mxu0 0
      %3345 = vmatprep.subr.bf16.mxu0 0
      %3346 = vmatpush1.bf16.msra.mxu0 0
      %3347 = vmatprep.subr.bf16.mxu0 0
      %3348 = vmatpush1.bf16.msra.mxu0 0
      %3349 = vmatprep.subr.bf16.mxu0 0
      %3350 = vmatpush1.bf16.msra.mxu0 0
      %3351 = vmatprep.subr.bf16.mxu0 0
      %3352 = vmatpush1.bf16.msra.mxu0 0
      %3353 = vmatprep.subr.bf16.mxu0 0
      %3354 = vmatpush1.bf16.msra.mxu0 0
      %3355 = vmatprep.subr.bf16.mxu0 0
      %3356 = vmatpush1.bf16.msra.mxu0 0
      %3357 = vmatprep.subr.bf16.mxu0 0
      %3358 = vmatpush1.bf16.msra.mxu0 0
      %3359 = vmatprep.subr.bf16.mxu0 0
      %3360 = vmatpush1.bf16.msra.mxu0 0
      %3361 = vmatprep.subr.bf16.mxu0 0
      %3362 = vmatpush1.bf16.msra.mxu0 0
      %3363 = vmatprep.subr.bf16.mxu0 0
      %3364 = vmatpush1.bf16.msra.mxu0 0
      %3365 = vmatprep.mubr.bf16.mxu0 0
      %3366 = vmatmul.mubr.bf16.gmra.mrb[0].mxu0 %v3316
      %v3367 = vpop.f32.mrb[0].mxu0
      %v3368 = vadd.f32 0.0, %v3367
      %v3369 = vpop.f32.mrb[0].mxu0
      %v3370 = vpop.f32.mrb[0].mxu0
      %v3371 = vadd.f32 0.0, %v3370
      %v3372 = vpop.f32.mrb[0].mxu0
      %3373 = vmatprep.mubr.bf16.mxu0 0
      %3374 = vmatmul.mubr.bf16.gmra.mrb[0].mxu0 %v3319
      %v3375 = vpop.f32.mrb[0].mxu0
      %v3376 = vadd.f32 0.0, %v3375
      %v3377 = vpop.f32.mrb[0].mxu0
      %v3378 = vpop.f32.mrb[0].mxu0
      %v3379 = vadd.f32 0.0, %v3378
      %v3380 = vpop.f32.mrb[0].mxu0
      %3381 = vmatprep.mubr.bf16.mxu0 0
      %3382 = vmatmul.mubr.bf16.gmra.mrb[0].mxu0 %v3322
      %v3383 = vpop.f32.mrb[0].mxu0
      %v3384 = vadd.f32 0.0, %v3383
      %v3385 = vpop.f32.mrb[0].mxu0
      %v3386 = vpop.f32.mrb[0].mxu0
      %v3387 = vadd.f32 0.0, %v3386
      %v3388 = vpop.f32.mrb[0].mxu0
      %3389 = vmatprep.mubr.bf16.mxu0 0
      %3390 = vmatmul.mubr.bf16.gmra.mrb[0].mxu0 %v3325
      %v3391 = vpop.f32.mrb[0].mxu0
      %v3392 = vadd.f32 0.0, %v3391
      %v3393 = vpop.f32.mrb[0].mxu0
      %v3394 = vpop.f32.mrb[0].mxu0
      %v3395 = vadd.f32 0.0, %v3394
      %v3396 = vpop.f32.mrb[0].mxu0
      %3397 = vmatprep.mubr.bf16.mxu0 0
      %3398 = vmatmul.mubr.bf16.gmra.mrb[0].mxu0 %v3328
      %v3399 = vpop.f32.mrb[0].mxu0
      %v3400 = vadd.f32 0.0, %v3399
      %v3401 = vpop.f32.mrb[0].mxu0
      %v3402 = vpop.f32.mrb[0].mxu0
      %v3403 = vadd.f32 0.0, %v3402
      %v3404 = vpop.f32.mrb[0].mxu0
      %3405 = vdwg.mxu0
      %v3406 = vadd.f32 %v3292, %v3368
      %v3407 = vadd.f32 %v3293, %v3371
      %v3408 = vadd.f32 %v3294, %v3376
      %v3409 = vadd.f32 %v3295, %v3379
      %v3410 = vadd.f32 %v3296, %v3384
      %v3411 = vadd.f32 %v3297, %v3387
      %v3412 = vadd.f32 %v3298, %v3392
      %v3413 = vadd.f32 %v3299, %v3395
      %v3414 = vadd.f32 %v3300, %v3400
      %v3415 = vadd.f32 %v3301, %v3403
      %s3416 = scalar_lea.vmem %s3, 96
      %v3417 = vld [vmem:[%s3416] sm:$0xf]
      %v3419 = vunpack.c.l.b16 %v2636
      %v3420 = vpack.c.b16 %v3027, %v2768
      %v3421 = vpack.c.b16 %v3419, %v3419
      %v3422 = vrot.slane %v2660, 2
      %v3423 = vrot.slane %v2661, 2
      %v3424 = vsel %vm981, %v3422, %v3423
      %v3425 = vrot.slane %v2662, 2
      %v3426 = vsel %vm981, %v3423, %v3425
      %v3427 = vrot.slane %v2663, 2
      %v3428 = vsel %vm981, %v3425, %v3427
      %v3429 = vrot.slane %v3420, 2
      %v3430 = vsel %vm981, %v3427, %v3429
      %v3431 = vrot.slane %v3421, 2
      %v3432 = vsel %vm981, %v3429, %v3431
      %v3434 = vsel %vm406, %v3424, 0
      %v3437 = vsel %vm406, %v3426, 0
      %v3440 = vsel %vm406, %v3428, 0
      %v3443 = vsel %vm406, %v3430, 0
      %v3446 = vsel %vm406, %v3432, 0
      %v3449 = vsel %vm422, %v3417, 0
      %3451 = vmatprep.subr.bf16.mxu0 0
      %3452 = vmatpush1.bf16.msra.mxu0 %v3449
      %3453 = vmatprep.subr.bf16.mxu0 0
      %3454 = vmatpush1.bf16.msra.mxu0 0
      %3455 = vmatprep.subr.bf16.mxu0 0
      %3456 = vmatpush1.bf16.msra.mxu0 0
      %3457 = vmatprep.subr.bf16.mxu0 0
      %3458 = vmatpush1.bf16.msra.mxu0 0
      %3459 = vmatprep.subr.bf16.mxu0 0
      %3460 = vmatpush1.bf16.msra.mxu0 0
      %3461 = vmatprep.subr.bf16.mxu0 0
      %3462 = vmatpush1.bf16.msra.mxu0 0
      %3463 = vmatprep.subr.bf16.mxu0 0
      %3464 = vmatpush1.bf16.msra.mxu0 0
      %3465 = vmatprep.subr.bf16.mxu0 0
      %3466 = vmatpush1.bf16.msra.mxu0 0
      %3467 = vmatprep.subr.bf16.mxu0 0
      %3468 = vmatpush1.bf16.msra.mxu0 0
      %3469 = vmatprep.subr.bf16.mxu0 0
      %3470 = vmatpush1.bf16.msra.mxu0 0
      %3471 = vmatprep.subr.bf16.mxu0 0
      %3472 = vmatpush1.bf16.msra.mxu0 0
      %3473 = vmatprep.subr.bf16.mxu0 0
      %3474 = vmatpush1.bf16.msra.mxu0 0
      %3475 = vmatprep.subr.bf16.mxu0 0
      %3476 = vmatpush1.bf16.msra.mxu0 0
      %3477 = vmatprep.subr.bf16.mxu0 0
      %3478 = vmatpush1.bf16.msra.mxu0 0
      %3479 = vmatprep.subr.bf16.mxu0 0
      %3480 = vmatpush1.bf16.msra.mxu0 0
      %3481 = vmatprep.subr.bf16.mxu0 0
      %3482 = vmatpush1.bf16.msra.mxu0 0
      %3483 = vmatprep.mubr.bf16.mxu0 0
      %3484 = vmatmul.mubr.bf16.gmra.mrb[0].mxu0 %v3434
      %v3485 = vpop.f32.mrb[0].mxu0
      %v3486 = vadd.f32 0.0, %v3485
      %v3487 = vpop.f32.mrb[0].mxu0
      %v3488 = vpop.f32.mrb[0].mxu0
      %v3489 = vadd.f32 0.0, %v3488
      %v3490 = vpop.f32.mrb[0].mxu0
      %3491 = vmatprep.mubr.bf16.mxu0 0
      %3492 = vmatmul.mubr.bf16.gmra.mrb[0].mxu0 %v3437
      %v3493 = vpop.f32.mrb[0].mxu0
      %v3494 = vadd.f32 0.0, %v3493
      %v3495 = vpop.f32.mrb[0].mxu0
      %v3496 = vpop.f32.mrb[0].mxu0
      %v3497 = vadd.f32 0.0, %v3496
      %v3498 = vpop.f32.mrb[0].mxu0
      %3499 = vmatprep.mubr.bf16.mxu0 0
      %3500 = vmatmul.mubr.bf16.gmra.mrb[0].mxu0 %v3440
      %v3501 = vpop.f32.mrb[0].mxu0
      %v3502 = vadd.f32 0.0, %v3501
      %v3503 = vpop.f32.mrb[0].mxu0
      %v3504 = vpop.f32.mrb[0].mxu0
      %v3505 = vadd.f32 0.0, %v3504
      %v3506 = vpop.f32.mrb[0].mxu0
      %3507 = vmatprep.mubr.bf16.mxu0 0
      %3508 = vmatmul.mubr.bf16.gmra.mrb[0].mxu0 %v3443
      %v3509 = vpop.f32.mrb[0].mxu0
      %v3510 = vadd.f32 0.0, %v3509
      %v3511 = vpop.f32.mrb[0].mxu0
      %v3512 = vpop.f32.mrb[0].mxu0
      %v3513 = vadd.f32 0.0, %v3512
      %v3514 = vpop.f32.mrb[0].mxu0
      %3515 = vmatprep.mubr.bf16.mxu0 0
      %3516 = vmatmul.mubr.bf16.gmra.mrb[0].mxu0 %v3446
      %v3517 = vpop.f32.mrb[0].mxu0
      %v3518 = vadd.f32 0.0, %v3517
      %v3519 = vpop.f32.mrb[0].mxu0
      %v3520 = vpop.f32.mrb[0].mxu0
      %v3521 = vadd.f32 0.0, %v3520
      %v3522 = vpop.f32.mrb[0].mxu0
      %3523 = vdwg.mxu0
      %v3524 = vadd.f32 %v3406, %v3486
      %v3525 = vadd.f32 %v3407, %v3489
      %v3526 = vadd.f32 %v3408, %v3494
      %v3527 = vadd.f32 %v3409, %v3497
      %v3528 = vadd.f32 %v3410, %v3502
      %v3529 = vadd.f32 %v3411, %v3505
      %v3530 = vadd.f32 %v3412, %v3510
      %v3531 = vadd.f32 %v3413, %v3513
      %v3532 = vadd.f32 %v3414, %v3518
      %v3533 = vadd.f32 %v3415, %v3521
      %s3534 = scalar_lea.vmem %s3, 100
      %v3535 = vld [vmem:[%s3534] sm:$0xf]
      %v3536 = vrot.slane %v2780, 2
      %v3537 = vrot.slane %v2776, 3
      %v3538 = vor.u32 %v3536, %v3537
      %v3539 = vrot.slane %v2787, 2
      %v3540 = vrot.slane %v2783, 3
      %v3541 = vor.u32 %v3539, %v3540
      %v3542 = vsel %vm1214, %v3538, %v3541
      %v3543 = vrot.slane %v2794, 2
      %v3544 = vrot.slane %v2790, 3
      %v3545 = vor.u32 %v3543, %v3544
      %v3546 = vsel %vm1214, %v3541, %v3545
      %v3547 = vrot.slane %v2801, 2
      %v3548 = vrot.slane %v2797, 3
      %v3549 = vor.u32 %v3547, %v3548
      %v3550 = vsel %vm1214, %v3545, %v3549
      %v3552 = vshrl.u32 %v3420, 16
      %v3554 = vrot.slane %v3552, 2
      %v3555 = vshll.u32 %v3420, 16
      %v3557 = vrot.slane %v3555, 3
      %v3558 = vor.u32 %v3554, %v3557
      %v3559 = vsel %vm1214, %v3549, %v3558
      %v3561 = vshrl.u32 %v3421, 16
      %v3563 = vrot.slane %v3561, 2
      %v3564 = vshll.u32 %v3421, 16
      %v3566 = vrot.slane %v3564, 3
      %v3567 = vor.u32 %v3563, %v3566
      %v3568 = vsel %vm1214, %v3558, %v3567
      %v3570 = vsel %vm406, %v3542, 0
      %v3573 = vsel %vm406, %v3546, 0
      %v3576 = vsel %vm406, %v3550, 0
      %v3579 = vsel %vm406, %v3559, 0
      %v3582 = vsel %vm406, %v3568, 0
      %v3585 = vsel %vm422, %v3535, 0
      %3587 = vmatprep.subr.bf16.mxu0 0
      %3588 = vmatpush1.bf16.msra.mxu0 %v3585
      %3589 = vmatprep.subr.bf16.mxu0 0
      %3590 = vmatpush1.bf16.msra.mxu0 0
      %3591 = vmatprep.subr.bf16.mxu0 0
      %3592 = vmatpush1.bf16.msra.mxu0 0
      %3593 = vmatprep.subr.bf16.mxu0 0
      %3594 = vmatpush1.bf16.msra.mxu0 0
      %3595 = vmatprep.subr.bf16.mxu0 0
      %3596 = vmatpush1.bf16.msra.mxu0 0
      %3597 = vmatprep.subr.bf16.mxu0 0
      %3598 = vmatpush1.bf16.msra.mxu0 0
      %3599 = vmatprep.subr.bf16.mxu0 0
      %3600 = vmatpush1.bf16.msra.mxu0 0
      %3601 = vmatprep.subr.bf16.mxu0 0
      %3602 = vmatpush1.bf16.msra.mxu0 0
      %3603 = vmatprep.subr.bf16.mxu0 0
      %3604 = vmatpush1.bf16.msra.mxu0 0
      %3605 = vmatprep.subr.bf16.mxu0 0
      %3606 = vmatpush1.bf16.msra.mxu0 0
      %3607 = vmatprep.subr.bf16.mxu0 0
      %3608 = vmatpush1.bf16.msra.mxu0 0
      %3609 = vmatprep.subr.bf16.mxu0 0
      %3610 = vmatpush1.bf16.msra.mxu0 0
      %3611 = vmatprep.subr.bf16.mxu0 0
      %3612 = vmatpush1.bf16.msra.mxu0 0
      %3613 = vmatprep.subr.bf16.mxu0 0
      %3614 = vmatpush1.bf16.msra.mxu0 0
      %3615 = vmatprep.subr.bf16.mxu0 0
      %3616 = vmatpush1.bf16.msra.mxu0 0
      %3617 = vmatprep.subr.bf16.mxu0 0
      %3618 = vmatpush1.bf16.msra.mxu0 0
      %3619 = vmatprep.mubr.bf16.mxu0 0
      %3620 = vmatmul.mubr.bf16.gmra.mrb[0].mxu0 %v3570
      %v3621 = vpop.f32.mrb[0].mxu0
      %v3622 = vadd.f32 0.0, %v3621
      %v3623 = vpop.f32.mrb[0].mxu0
      %v3624 = vpop.f32.mrb[0].mxu0
      %v3625 = vadd.f32 0.0, %v3624
      %v3626 = vpop.f32.mrb[0].mxu0
      %3627 = vmatprep.mubr.bf16.mxu0 0
      %3628 = vmatmul.mubr.bf16.gmra.mrb[0].mxu0 %v3573
      %v3629 = vpop.f32.mrb[0].mxu0
      %v3630 = vadd.f32 0.0, %v3629
      %v3631 = vpop.f32.mrb[0].mxu0
      %v3632 = vpop.f32.mrb[0].mxu0
      %v3633 = vadd.f32 0.0, %v3632
      %v3634 = vpop.f32.mrb[0].mxu0
      %3635 = vmatprep.mubr.bf16.mxu0 0
      %3636 = vmatmul.mubr.bf16.gmra.mrb[0].mxu0 %v3576
      %v3637 = vpop.f32.mrb[0].mxu0
      %v3638 = vadd.f32 0.0, %v3637
      %v3639 = vpop.f32.mrb[0].mxu0
      %v3640 = vpop.f32.mrb[0].mxu0
      %v3641 = vadd.f32 0.0, %v3640
      %v3642 = vpop.f32.mrb[0].mxu0
      %3643 = vmatprep.mubr.bf16.mxu0 0
      %3644 = vmatmul.mubr.bf16.gmra.mrb[0].mxu0 %v3579
      %v3645 = vpop.f32.mrb[0].mxu0
      %v3646 = vadd.f32 0.0, %v3645
      %v3647 = vpop.f32.mrb[0].mxu0
      %v3648 = vpop.f32.mrb[0].mxu0
      %v3649 = vadd.f32 0.0, %v3648
      %v3650 = vpop.f32.mrb[0].mxu0
      %3651 = vmatprep.mubr.bf16.mxu0 0
      %3652 = vmatmul.mubr.bf16.gmra.mrb[0].mxu0 %v3582
      %v3653 = vpop.f32.mrb[0].mxu0
      %v3654 = vadd.f32 0.0, %v3653
      %v3655 = vpop.f32.mrb[0].mxu0
      %v3656 = vpop.f32.mrb[0].mxu0
      %v3657 = vadd.f32 0.0, %v3656
      %v3658 = vpop.f32.mrb[0].mxu0
      %3659 = vdwg.mxu0
      %v3660 = vadd.f32 %v3524, %v3622
      %v3661 = vadd.f32 %v3525, %v3625
      %v3662 = vadd.f32 %v3526, %v3630
      %v3663 = vadd.f32 %v3527, %v3633
      %v3664 = vadd.f32 %v3528, %v3638
      %v3665 = vadd.f32 %v3529, %v3641
      %v3666 = vadd.f32 %v3530, %v3646
      %v3667 = vadd.f32 %v3531, %v3649
      %v3668 = vadd.f32 %v3532, %v3654
      %v3669 = vadd.f32 %v3533, %v3657
      %s3670 = scalar_lea.vmem %s3, 104
      %v3671 = vld [vmem:[%s3670] sm:$0xf]
      %v3672 = vrot.slane %v2660, 3
      %v3673 = vrot.slane %v2661, 3
      %v3674 = vsel %vm1351, %v3672, %v3673
      %v3675 = vrot.slane %v2662, 3
      %v3676 = vsel %vm1351, %v3673, %v3675
      %v3677 = vrot.slane %v2663, 3
      %v3678 = vsel %vm1351, %v3675, %v3677
      %v3679 = vrot.slane %v3420, 3
      %v3680 = vsel %vm1351, %v3677, %v3679
      %v3681 = vrot.slane %v3421, 3
      %v3682 = vsel %vm1351, %v3679, %v3681
      %v3684 = vsel %vm406, %v3674, 0
      %v3687 = vsel %vm406, %v3676, 0
      %v3690 = vsel %vm406, %v3678, 0
      %v3693 = vsel %vm406, %v3680, 0
      %v3696 = vsel %vm406, %v3682, 0
      %v3699 = vsel %vm422, %v3671, 0
      %3701 = vmatprep.subr.bf16.mxu0 0
      %3702 = vmatpush1.bf16.msra.mxu0 %v3699
      %3703 = vmatprep.subr.bf16.mxu0 0
      %3704 = vmatpush1.bf16.msra.mxu0 0
      %3705 = vmatprep.subr.bf16.mxu0 0
      %3706 = vmatpush1.bf16.msra.mxu0 0
      %3707 = vmatprep.subr.bf16.mxu0 0
      %3708 = vmatpush1.bf16.msra.mxu0 0
      %3709 = vmatprep.subr.bf16.mxu0 0
      %3710 = vmatpush1.bf16.msra.mxu0 0
      %3711 = vmatprep.subr.bf16.mxu0 0
      %3712 = vmatpush1.bf16.msra.mxu0 0
      %3713 = vmatprep.subr.bf16.mxu0 0
      %3714 = vmatpush1.bf16.msra.mxu0 0
      %3715 = vmatprep.subr.bf16.mxu0 0
      %3716 = vmatpush1.bf16.msra.mxu0 0
      %3717 = vmatprep.subr.bf16.mxu0 0
      %3718 = vmatpush1.bf16.msra.mxu0 0
      %3719 = vmatprep.subr.bf16.mxu0 0
      %3720 = vmatpush1.bf16.msra.mxu0 0
      %3721 = vmatprep.subr.bf16.mxu0 0
      %3722 = vmatpush1.bf16.msra.mxu0 0
      %3723 = vmatprep.subr.bf16.mxu0 0
      %3724 = vmatpush1.bf16.msra.mxu0 0
      %3725 = vmatprep.subr.bf16.mxu0 0
      %3726 = vmatpush1.bf16.msra.mxu0 0
      %3727 = vmatprep.subr.bf16.mxu0 0
      %3728 = vmatpush1.bf16.msra.mxu0 0
      %3729 = vmatprep.subr.bf16.mxu0 0
      %3730 = vmatpush1.bf16.msra.mxu0 0
      %3731 = vmatprep.subr.bf16.mxu0 0
      %3732 = vmatpush1.bf16.msra.mxu0 0
      %3733 = vmatprep.mubr.bf16.mxu0 0
      %3734 = vmatmul.mubr.bf16.gmra.mrb[0].mxu0 %v3684
      %v3735 = vpop.f32.mrb[0].mxu0
      %v3736 = vadd.f32 0.0, %v3735
      %v3737 = vpop.f32.mrb[0].mxu0
      %v3738 = vpop.f32.mrb[0].mxu0
      %v3739 = vadd.f32 0.0, %v3738
      %v3740 = vpop.f32.mrb[0].mxu0
      %3741 = vmatprep.mubr.bf16.mxu0 0
      %3742 = vmatmul.mubr.bf16.gmra.mrb[0].mxu0 %v3687
      %v3743 = vpop.f32.mrb[0].mxu0
      %v3744 = vadd.f32 0.0, %v3743
      %v3745 = vpop.f32.mrb[0].mxu0
      %v3746 = vpop.f32.mrb[0].mxu0
      %v3747 = vadd.f32 0.0, %v3746
      %v3748 = vpop.f32.mrb[0].mxu0
      %3749 = vmatprep.mubr.bf16.mxu0 0
      %3750 = vmatmul.mubr.bf16.gmra.mrb[0].mxu0 %v3690
      %v3751 = vpop.f32.mrb[0].mxu0
      %v3752 = vadd.f32 0.0, %v3751
      %v3753 = vpop.f32.mrb[0].mxu0
      %v3754 = vpop.f32.mrb[0].mxu0
      %v3755 = vadd.f32 0.0, %v3754
      %v3756 = vpop.f32.mrb[0].mxu0
      %3757 = vmatprep.mubr.bf16.mxu0 0
      %3758 = vmatmul.mubr.bf16.gmra.mrb[0].mxu0 %v3693
      %v3759 = vpop.f32.mrb[0].mxu0
      %v3760 = vadd.f32 0.0, %v3759
      %v3761 = vpop.f32.mrb[0].mxu0
      %v3762 = vpop.f32.mrb[0].mxu0
      %v3763 = vadd.f32 0.0, %v3762
      %v3764 = vpop.f32.mrb[0].mxu0
      %3765 = vmatprep.mubr.bf16.mxu0 0
      %3766 = vmatmul.mubr.bf16.gmra.mrb[0].mxu0 %v3696
      %v3767 = vpop.f32.mrb[0].mxu0
      %v3768 = vadd.f32 0.0, %v3767
      %v3769 = vpop.f32.mrb[0].mxu0
      %v3770 = vpop.f32.mrb[0].mxu0
      %v3771 = vadd.f32 0.0, %v3770
      %v3772 = vpop.f32.mrb[0].mxu0
      %3773 = vdwg.mxu0
      %v3774 = vadd.f32 %v3660, %v3736
      %v3775 = vadd.f32 %v3661, %v3739
      %v3776 = vadd.f32 %v3662, %v3744
      %v3777 = vadd.f32 %v3663, %v3747
      %v3778 = vadd.f32 %v3664, %v3752
      %v3779 = vadd.f32 %v3665, %v3755
      %v3780 = vadd.f32 %v3666, %v3760
      %v3781 = vadd.f32 %v3667, %v3763
      %v3782 = vadd.f32 %v3668, %v3768
      %v3783 = vadd.f32 %v3669, %v3771
      %3784 = vst [vmem:[%s315] sm:$0xff] %v3774
      %3785 = vst [vmem:[%s315 + $0x8] sm:$0xff] %v3775
      %3786 = vst [vmem:[%s315 + $0x10] sm:$0xff] %v3776
      %3787 = vst [vmem:[%s315 + $0x18] sm:$0xff] %v3777
      %3788 = vst [vmem:[%s315 + $0x20] sm:$0xff] %v3778
      %3789 = vst [vmem:[%s315 + $0x28] sm:$0xff] %v3779
      %3790 = vst [vmem:[%s315 + $0x30] sm:$0xff] %v3780
      %3791 = vst [vmem:[%s315 + $0x38] sm:$0xff] %v3781
      %3792 = vst [vmem:[%s315 + $0x40] sm:$0xff] %v3782
      %3793 = vst [vmem:[%s315 + $0x48] sm:$0xff] %v3783
      %p3794 = scmp.lt.s32.totalorder %s19, 1
      %s3795 = scalar_select %p3794, %s19, 1
      %p3796 = scmp.lt.s32.totalorder %s20, 7
      %s3797 = scalar_select %p3796, %s20, 7
      %s3798 = smul.addr %s3797, 10
      %s3799 = smul.addr %s3795, 80
      %s3800 = sadd.s32 %s3798, %s3799
      %s3801 = smul.addr %s3800, 8
      %s3802 = scalar_lea.vmem %s4, %s3801
      // Predicated region
      $region37: #{deform_basic_block.6} parent=35 // pred_check
        %p3803 = pneg %p156
      $region38: #{deform_basic_block.6} parent=35 // pred_check_branch
        %3805 = sbr.rel (%p3803) target = $region40
      $region39: #{deform_basic_block.6} parent=35 // pred_region
        _
      $region40: #{deform_basic_block.6} parent=35 // pred_fallthru
        _
    $region36: #{deform_basic_block.6} parent=5 // pred_fallthru
      _
    %p3806 = scmp.le.s32.totalorder 2, %s10
    // Predicated region
    $region41: #{deform_basic_block.6} parent=5 // pred_check
      %p3807 = pneg %p3806
    $region42: #{deform_basic_block.6} parent=5 // pred_check_branch
      %3809 = sbr.rel (%p3807) target = $region44
    $region43: #{deform_basic_block.6} parent=5 // pred_region
      %s3810 = ssub.s32 %s10, 2
      // Predicated region
      $region45: #{deform_basic_block.6} parent=43 // pred_check
        %p3811 = pneg %p162
      $region46: #{deform_basic_block.6} parent=43 // pred_check_branch
        %3813 = sbr.rel (%p3811) target = $region48
      $region47: #{deform_basic_block.6} parent=43 // pred_region
        %p3814 = scmp.lt.s32.totalorder %s21, 1
        %s3815 = scalar_select %p3814, %s21, 1
        %p3816 = scmp.lt.s32.totalorder %s22, 7
        %s3817 = scalar_select %p3816, %s22, 7
        %s3818 = smul.addr %s3817, 10
        %s3819 = smul.addr %s3815, 80
        %s3820 = sadd.s32 %s3818, %s3819
        %s3821 = smul.addr %s3820, 8
        %s3822 = scalar_lea.vmem %s4, %s3821
      $region48: #{deform_basic_block.6} parent=43 // pred_fallthru
        _
    $region44: #{deform_basic_block.6} parent=5 // pred_fallthru
      _
  $region6: #{deform_basic_block.6} parent=0 // loop_footer
    %s14 = sadd.s32 1, %s10
  $region7: #{deform_basic_block.6} parent=0 // loop_footer_branch
    %9 = sbr.rel target = $region3
  $region8: #{deform_basic_block.6} parent=0 // loop_exit
    _

// kernel: deform_basic_block.7
$region0: #{deform_basic_block.7}
  #allocation0 [shape = 'u32[]', space=smem, size = 0x4, offset = 0x4, fixed_abs, tag = 'smem constant byte address 0x4 - core index']
  #allocation1 [shape = 'u32[144,128]{1,0:T(1,128)}', space=vmem, size = 0x12000, scoped, tag = 'internal scratch']
  %s0 = inlined_call_operand.vmem [shape: bf16[1024,128], index: 0, kind: input, shape index: {}]
  %s1 = inlined_call_operand.vmem [shape: bf16[128,128], index: 1, kind: input, shape index: {}]
  %s2 = inlined_call_operand.vmem [shape: bf16[1024,128], index: 2, kind: output, shape index: {0}]
  %s3 = inlined_call_operand.vmem [shape: f32[8,1,128], index: 3, kind: output, shape index: {1}]
  %s4 = inlined_call_operand.vmem [shape: f32[8,1,128], index: 4, kind: output, shape index: {2}]
  %5 = xla_tuple %s2, %s3, %s4
  %s6 = sld [smem:[#allocation0]]
  $region57: #{deform_basic_block.7} parent=0
    _
  %s8 = ssub.s32 1, %s6
  %s9 = scalar_select 0, %s8, %s6
  loop: start=0, step=1, limit=10
  $region2: #{deform_basic_block.7} parent=0 // loop_pre_header
    _
  $region3: #{deform_basic_block.7} parent=0 // loop_header
    %s11 = sphi 0, %s15
    %p12 = scmp.ge.s32.totalorder %s11, 10
    %s21 = sphi 0, %s23
    %s24 = sphi 0, %s21
    %s25 = sphi 0, %s24
    %s41 = sphi 0, %s25
    %s45 = sphi 0, %s45
    %s47 = sphi 0, %s45
    %s48 = sphi 0, %s47
    %s62 = sphi 0, %s48
    %s68 = sphi 0, %s70
    %s71 = sphi 0, %s68
    %s72 = sphi 0, %s71
    %s88 = sphi 0, %s72
    %s94 = sphi 0, %s96
    %s97 = sphi 0, %s94
    %s98 = sphi 0, %s97
    %s114 = sphi 0, %s98
    %s120 = sphi 0, %s122
    %s123 = sphi 0, %s120
    %s124 = sphi 0, %s123
    %s140 = sphi 0, %s124
  $region4: #{deform_basic_block.7} parent=0 // loop_header_branch
    %14 = sbr.rel (%p12) target = $region8
  $region5: #{deform_basic_block.7} parent=0 // loop_body
    %s16 = ssub.s32 %s11, 1
    %s17 = ssub.s32 %s11, 2
    %s18 = sadd.s32 %s11, 1
    %s19 = ssub.s32 %s11, %s18
    %p20 = scmp.eq.s32.totalorder %s19, 0
    %s22 = sadd.s32 %s21, 1
    %s23 = scalar_select %p20, %s21, %s22
    %p26 = pneg %p20
    %p27 = scmp.eq.s32.totalorder %s11, 7
    %p28 = por %p26, %p27
    %p29 = scmp.ne.s32.totalorder %s21, %s24
    %p30 = scmp.eq.s32.totalorder %s11, 0
    %p31 = por %p29, %p30
    %p32 = scmp.ne.s32.totalorder %s21, %s24
    %p33 = scmp.eq.s32.totalorder %s16, 7
    %p34 = por %p32, %p33
    %p35 = scmp.ne.s32.totalorder %s24, %s25
    %p36 = scmp.eq.s32.totalorder %s16, 0
    %p37 = por %p35, %p36
    %p38 = scmp.ne.s32.totalorder %s24, %s25
    %p39 = scmp.eq.s32.totalorder %s17, 7
    %p40 = por %p38, %p39
    %p42 = scmp.ne.s32.totalorder %s25, %s41
    %p43 = scmp.eq.s32.totalorder %s17, 0
    %p44 = por %p42, %p43
    %s46 = sadd.s32 %s45, 1
    %p49 = scmp.eq.s32.totalorder %s11, 7
    %p50 = scmp.ne.s32.totalorder %s45, %s47
    %p51 = scmp.eq.s32.totalorder %s11, 0
    %p52 = por %p50, %p51
    %p53 = scmp.ne.s32.totalorder %s45, %s47
    %p54 = scmp.eq.s32.totalorder %s16, 7
    %p55 = por %p53, %p54
    %p56 = scmp.ne.s32.totalorder %s47, %s48
    %p57 = scmp.eq.s32.totalorder %s16, 0
    %p58 = por %p56, %p57
    %p59 = scmp.ne.s32.totalorder %s47, %s48
    %p60 = scmp.eq.s32.totalorder %s17, 7
    %p61 = por %p59, %p60
    %p63 = scmp.ne.s32.totalorder %s48, %s62
    %p64 = scmp.eq.s32.totalorder %s17, 0
    %p65 = por %p63, %p64
    %s66 = ssub.s32 %s11, %s18
    %p67 = scmp.eq.s32.totalorder %s66, 0
    %s69 = sadd.s32 %s68, 1
    %s70 = scalar_select %p67, %s68, %s69
    %p73 = pneg %p67
    %p74 = scmp.eq.s32.totalorder %s11, 7
    %p75 = por %p73, %p74
    %p76 = scmp.ne.s32.totalorder %s68, %s71
    %p77 = scmp.eq.s32.totalorder %s11, 0
    %p78 = por %p76, %p77
    %p79 = scmp.ne.s32.totalorder %s68, %s71
    %p80 = scmp.eq.s32.totalorder %s16, 7
    %p81 = por %p79, %p80
    %p82 = scmp.ne.s32.totalorder %s71, %s72
    %p83 = scmp.eq.s32.totalorder %s16, 0
    %p84 = por %p82, %p83
    %p85 = scmp.ne.s32.totalorder %s71, %s72
    %p86 = scmp.eq.s32.totalorder %s17, 7
    %p87 = por %p85, %p86
    %p89 = scmp.ne.s32.totalorder %s72, %s88
    %p90 = scmp.eq.s32.totalorder %s17, 0
    %p91 = por %p89, %p90
    %s92 = ssub.s32 %s11, %s18
    %p93 = scmp.eq.s32.totalorder %s92, 0
    %s95 = sadd.s32 %s94, 1
    %s96 = scalar_select %p93, %s94, %s95
    %p99 = pneg %p93
    %p100 = scmp.eq.s32.totalorder %s11, 7
    %p101 = por %p99, %p100
    %p102 = scmp.ne.s32.totalorder %s94, %s97
    %p103 = scmp.eq.s32.totalorder %s11, 0
    %p104 = por %p102, %p103
    %p105 = scmp.ne.s32.totalorder %s94, %s97
    %p106 = scmp.eq.s32.totalorder %s16, 7
    %p107 = por %p105, %p106
    %p108 = scmp.ne.s32.totalorder %s97, %s98
    %p109 = scmp.eq.s32.totalorder %s16, 0
    %p110 = por %p108, %p109
    %p111 = scmp.ne.s32.totalorder %s97, %s98
    %p112 = scmp.eq.s32.totalorder %s17, 7
    %p113 = por %p111, %p112
    %p115 = scmp.ne.s32.totalorder %s98, %s114
    %p116 = scmp.eq.s32.totalorder %s17, 0
    %p117 = por %p115, %p116
    %s118 = ssub.s32 %s11, %s18
    %p119 = scmp.eq.s32.totalorder %s118, 0
    %s121 = sadd.s32 %s120, 1
    %s122 = scalar_select %p119, %s120, %s121
    %p125 = pneg %p119
    %p126 = scmp.eq.s32.totalorder %s11, 7
    %p127 = por %p125, %p126
    %p128 = scmp.ne.s32.totalorder %s120, %s123
    %p129 = scmp.eq.s32.totalorder %s11, 0
    %p130 = por %p128, %p129
    %p131 = scmp.ne.s32.totalorder %s120, %s123
    %p132 = scmp.eq.s32.totalorder %s16, 7
    %p133 = por %p131, %p132
    %p134 = scmp.ne.s32.totalorder %s123, %s124
    %p135 = scmp.eq.s32.totalorder %s16, 0
    %p136 = por %p134, %p135
    %p137 = scmp.ne.s32.totalorder %s123, %s124
    %p138 = scmp.eq.s32.totalorder %s17, 7
    %p139 = por %p137, %p138
    %p141 = scmp.ne.s32.totalorder %s124, %s140
    %p142 = scmp.eq.s32.totalorder %s17, 0
    %p143 = por %p141, %p142
    %p144 = scmp.le.s32.totalorder 1, %s11
    %p145 = scmp.lt.s32.totalorder %s11, 9
    %p146 = pnand %p144, %p145
    %p147 = pneg %p146
    // Predicated region
    $region9: #{deform_basic_block.7} parent=5 // pred_check
      _
    $region10: #{deform_basic_block.7} parent=5 // pred_check_branch
      %149 = sbr.rel (%p146) target = $region12
    $region11: #{deform_basic_block.7} parent=5 // pred_region
      %s150 = ssub.s32 %s11, 1
      // Predicated region
      $region13: #{deform_basic_block.7} parent=11 // pred_check
        %p151 = pneg %p58
      $region14: #{deform_basic_block.7} parent=11 // pred_check_branch
        %153 = sbr.rel (%p151) target = $region16
      $region15: #{deform_basic_block.7} parent=11 // pred_region
        _
      $region16: #{deform_basic_block.7} parent=11 // pred_fallthru
        _
    $region12: #{deform_basic_block.7} parent=5 // pred_fallthru
      _
    %p154 = scmp.lt.s32.totalorder %s11, 8
    // Predicated region
    $region17: #{deform_basic_block.7} parent=5 // pred_check
      %p155 = pneg %p154
    $region18: #{deform_basic_block.7} parent=5 // pred_check_branch
      %157 = sbr.rel (%p155) target = $region20
    $region19: #{deform_basic_block.7} parent=5 // pred_region
      // Predicated region
      $region21: #{deform_basic_block.7} parent=19 // pred_check
        %p158 = pneg %p31
      $region22: #{deform_basic_block.7} parent=19 // pred_check_branch
        %160 = sbr.rel (%p158) target = $region24
      $region23: #{deform_basic_block.7} parent=19 // pred_region
        %s161 = smul.u32 16, %s11
        %p162 = scmp.lt.s32.totalorder %s161, 127
        %s163 = scalar_select %p162, %s161, 127
        %s164 = smul.addr %s163, 4
        %s165 = scalar_lea.vmem %s0, %s164
        %s166 = smul.u32 16, %s11
      $region24: #{deform_basic_block.7} parent=19 // pred_fallthru
        _
    $region20: #{deform_basic_block.7} parent=5 // pred_fallthru
      _
    %p167 = scmp.le.s32.totalorder 1, %s11
    %p168 = scmp.lt.s32.totalorder %s11, 9
    %p169 = pnand %p167, %p168
    %p170 = pneg %p169
    // Predicated region
    $region25: #{deform_basic_block.7} parent=5 // pred_check
      _
    $region26: #{deform_basic_block.7} parent=5 // pred_check_branch
      %172 = sbr.rel (%p169) target = $region28
    $region27: #{deform_basic_block.7} parent=5 // pred_region
      %s173 = ssub.s32 %s11, 1
      %s174 = smul.u32 16, %s16
      %p175 = scmp.lt.s32.totalorder %s174, 127
      %s176 = scalar_select %p175, %s174, 127
      %s177 = smul.addr %s176, 4
      %s178 = scalar_lea.vmem %s0, %s177
      %p179 = pneg %p37
      %p180 = pneg %p34
      %p181 = pneg %p58
      %p182 = pneg %p55
      %p183 = pneg %p84
      %p184 = pneg %p81
      %s185 = smul.u32 16, %s16
      %p186 = scmp.lt.s32.totalorder %s185, 127
      %s187 = scalar_select %p186, %s185, 127
      %s188 = smul.addr %s187, 4
      %s189 = scalar_lea.vmem %s2, %s188
      %p190 = pneg %p110
      %p191 = pneg %p107
      %p192 = scmp.lt.s32.totalorder %s16, 7
      %s193 = scalar_select %p192, %s16, 7
      %s194 = scalar_lea.vmem %s3, %s193
      %p195 = pneg %p136
      %p196 = pneg %p133
      %p197 = scmp.lt.s32.totalorder %s16, 7
      %s198 = scalar_select %p197, %s16, 7
      %s199 = scalar_lea.vmem %s4, %s198
      %s200 = smul.u32 16, %s16
      %p201 = scmp.lt.s32.totalorder %s200, 127
      %s202 = scalar_select %p201, %s200, 127
      %s203 = smul.addr %s202, 4
      %s204 = scalar_lea.vmem %s0, %s203
      %s205 = smul.u32 16, %s16
      %s206 = smul.u32 16, %s16
      %p207 = scmp.lt.s32.totalorder %s206, 127
      %s208 = scalar_select %p207, %s206, 127
      %s209 = smul.addr %s208, 4
      %s210 = scalar_lea.vmem %s2, %s209
      %s211 = smul.u32 16, %s16
      %p212 = scmp.lt.s32.totalorder %s16, 7
      %s213 = scalar_select %p212, %s16, 7
      %s214 = scalar_lea.vmem %s3, %s213
      %p215 = scmp.lt.s32.totalorder %s16, 7
      %s216 = scalar_select %p215, %s16, 7
      %s217 = scalar_lea.vmem %s4, %s216
      %v219 = vld [vmem:[%s204] sm:$0xf]
      %v220 = vld [vmem:[%s204 + $0x4] sm:$0xf]
      %v221 = vld [vmem:[%s204 + $0x8] sm:$0xf]
      %v222 = vld [vmem:[%s204 + $0xc] sm:$0xf]
      %v223 = vld [vmem:[%s204 + $0x10] sm:$0xf]
      %v224 = vld [vmem:[%s204 + $0x14] sm:$0xf]
      %v225 = vld [vmem:[%s204 + $0x18] sm:$0xf]
      %v226 = vld [vmem:[%s204 + $0x1c] sm:$0xf]
      %v227 = vld [vmem:[%s204 + $0x20] sm:$0xf]
      %v228 = vld [vmem:[%s204 + $0x24] sm:$0xf]
      %v229 = vld [vmem:[%s204 + $0x28] sm:$0xf]
      %v230 = vld [vmem:[%s204 + $0x2c] sm:$0xf]
      %v231 = vld [vmem:[%s204 + $0x30] sm:$0xf]
      %v232 = vld [vmem:[%s204 + $0x34] sm:$0xf]
      %v233 = vld [vmem:[%s204 + $0x38] sm:$0xf]
      %v234 = vld [vmem:[%s204 + $0x3c] sm:$0xf]
      %v235 = vld [vmem:[%s1] sm:$0xf]
      %v236 = vld [vmem:[%s1 + $0x4] sm:$0xf]
      %v237 = vld [vmem:[%s1 + $0x8] sm:$0xf]
      %v238 = vld [vmem:[%s1 + $0xc] sm:$0xf]
      %v239 = vld [vmem:[%s1 + $0x10] sm:$0xf]
      %v240 = vld [vmem:[%s1 + $0x14] sm:$0xf]
      %v241 = vld [vmem:[%s1 + $0x18] sm:$0xf]
      %v242 = vld [vmem:[%s1 + $0x1c] sm:$0xf]
      %v243 = vld [vmem:[%s1 + $0x20] sm:$0xf]
      %v244 = vld [vmem:[%s1 + $0x24] sm:$0xf]
      %v245 = vld [vmem:[%s1 + $0x28] sm:$0xf]
      %v246 = vld [vmem:[%s1 + $0x2c] sm:$0xf]
      %v247 = vld [vmem:[%s1 + $0x30] sm:$0xf]
      %v248 = vld [vmem:[%s1 + $0x34] sm:$0xf]
      %v249 = vld [vmem:[%s1 + $0x38] sm:$0xf]
      %v250 = vld [vmem:[%s1 + $0x3c] sm:$0xf]
      %v267 = vunpack.c.l.b16 %v219
      %v268 = vunpack.c.l.b16 %v220
      %v269 = vunpack.c.l.b16 %v221
      %v270 = vunpack.c.l.b16 %v222
      %v271 = vunpack.c.l.b16 %v223
      %v272 = vunpack.c.l.b16 %v224
      %v273 = vunpack.c.l.b16 %v225
      %v274 = vunpack.c.l.b16 %v226
      %v275 = vunpack.c.l.b16 %v227
      %v276 = vunpack.c.l.b16 %v228
      %v277 = vunpack.c.l.b16 %v229
      %v278 = vunpack.c.l.b16 %v230
      %v279 = vunpack.c.l.b16 %v231
      %v280 = vunpack.c.l.b16 %v232
      %v281 = vunpack.c.l.b16 %v233
      %v282 = vunpack.c.l.b16 %v234
      %v283 = vpack.c.b16 %v268, %v267
      %v284 = vpack.c.b16 %v270, %v269
      %v285 = vpack.c.b16 %v272, %v271
      %v286 = vpack.c.b16 %v274, %v273
      %v287 = vpack.c.b16 %v276, %v275
      %v288 = vpack.c.b16 %v278, %v277
      %v289 = vpack.c.b16 %v280, %v279
      %v290 = vpack.c.b16 %v282, %v281
      %v315 = vunpack.c.l.b16 %v235
      %v316 = vunpack.c.l.b16 %v236
      %v317 = vunpack.c.l.b16 %v237
      %v318 = vunpack.c.l.b16 %v238
      %v319 = vunpack.c.l.b16 %v239
      %v320 = vunpack.c.l.b16 %v240
      %v321 = vunpack.c.l.b16 %v241
      %v322 = vunpack.c.l.b16 %v242
      %v323 = vunpack.c.l.b16 %v243
      %v324 = vunpack.c.l.b16 %v244
      %v325 = vunpack.c.l.b16 %v245
      %v326 = vunpack.c.l.b16 %v246
      %v327 = vunpack.c.l.b16 %v247
      %v328 = vunpack.c.l.b16 %v248
      %v329 = vunpack.c.l.b16 %v249
      %v330 = vunpack.c.l.b16 %v250
      %v331 = vpack.c.b16 %v316, %v315
      %v332 = vpack.c.b16 %v318, %v317
      %v333 = vpack.c.b16 %v320, %v319
      %v334 = vpack.c.b16 %v322, %v321
      %v335 = vpack.c.b16 %v324, %v323
      %v336 = vpack.c.b16 %v326, %v325
      %v337 = vpack.c.b16 %v328, %v327
      %v338 = vpack.c.b16 %v330, %v329
      %347 = vmatprep.subr.bf16.mxu0 0
      %348 = vmatpush1.bf16.msra.mxu0 %v331
      %349 = vmatprep.subr.bf16.mxu0 0
      %350 = vmatpush1.bf16.msra.mxu0 %v332
      %351 = vmatprep.subr.bf16.mxu0 0
      %352 = vmatpush1.bf16.msra.mxu0 %v333
      %353 = vmatprep.subr.bf16.mxu0 0
      %354 = vmatpush1.bf16.msra.mxu0 %v334
      %355 = vmatprep.subr.bf16.mxu0 0
      %356 = vmatpush1.bf16.msra.mxu0 %v335
      %357 = vmatprep.subr.bf16.mxu0 0
      %358 = vmatpush1.bf16.msra.mxu0 %v336
      %359 = vmatprep.subr.bf16.mxu0 0
      %360 = vmatpush1.bf16.msra.mxu0 %v337
      %361 = vmatprep.subr.bf16.mxu0 0
      %362 = vmatpush1.bf16.msra.mxu0 %v338
      %363 = vmatprep.subr.bf16.mxu0 0
      %364 = vmatpush1.bf16.msra.mxu0 0
      %365 = vmatprep.subr.bf16.mxu0 0
      %366 = vmatpush1.bf16.msra.mxu0 0
      %367 = vmatprep.subr.bf16.mxu0 0
      %368 = vmatpush1.bf16.msra.mxu0 0
      %369 = vmatprep.subr.bf16.mxu0 0
      %370 = vmatpush1.bf16.msra.mxu0 0
      %371 = vmatprep.subr.bf16.mxu0 0
      %372 = vmatpush1.bf16.msra.mxu0 0
      %373 = vmatprep.subr.bf16.mxu0 0
      %374 = vmatpush1.bf16.msra.mxu0 0
      %375 = vmatprep.subr.bf16.mxu0 0
      %376 = vmatpush1.bf16.msra.mxu0 0
      %377 = vmatprep.subr.bf16.mxu0 0
      %378 = vmatpush1.bf16.msra.mxu0 0
      %379 = vmatprep.mubr.bf16.mxu0 0
      %380 = vmatmul.mubr.bf16.gmra.mrb[0].mxu0 %v283
      %v381 = vpop.f32.mrb[0].mxu0
      %v382 = vadd.f32 0.0, %v381
      %v383 = vpop.f32.mrb[0].mxu0
      %v384 = vpop.f32.mrb[0].mxu0
      %v385 = vadd.f32 0.0, %v384
      %v386 = vpop.f32.mrb[0].mxu0
      %387 = vmatprep.mubr.bf16.mxu0 0
      %388 = vmatmul.mubr.bf16.gmra.mrb[0].mxu0 %v284
      %v389 = vpop.f32.mrb[0].mxu0
      %v390 = vadd.f32 0.0, %v389
      %v391 = vpop.f32.mrb[0].mxu0
      %v392 = vpop.f32.mrb[0].mxu0
      %v393 = vadd.f32 0.0, %v392
      %v394 = vpop.f32.mrb[0].mxu0
      %395 = vmatprep.mubr.bf16.mxu0 0
      %396 = vmatmul.mubr.bf16.gmra.mrb[0].mxu0 %v285
      %v397 = vpop.f32.mrb[0].mxu0
      %v398 = vadd.f32 0.0, %v397
      %v399 = vpop.f32.mrb[0].mxu0
      %v400 = vpop.f32.mrb[0].mxu0
      %v401 = vadd.f32 0.0, %v400
      %v402 = vpop.f32.mrb[0].mxu0
      %403 = vmatprep.mubr.bf16.mxu0 0
      %404 = vmatmul.mubr.bf16.gmra.mrb[0].mxu0 %v286
      %v405 = vpop.f32.mrb[0].mxu0
      %v406 = vadd.f32 0.0, %v405
      %v407 = vpop.f32.mrb[0].mxu0
      %v408 = vpop.f32.mrb[0].mxu0
      %v409 = vadd.f32 0.0, %v408
      %v410 = vpop.f32.mrb[0].mxu0
      %411 = vmatprep.mubr.bf16.mxu0 0
      %412 = vmatmul.mubr.bf16.gmra.mrb[0].mxu0 %v287
      %v413 = vpop.f32.mrb[0].mxu0
      %v414 = vadd.f32 0.0, %v413
      %v415 = vpop.f32.mrb[0].mxu0
      %v416 = vpop.f32.mrb[0].mxu0
      %v417 = vadd.f32 0.0, %v416
      %v418 = vpop.f32.mrb[0].mxu0
      %419 = vmatprep.mubr.bf16.mxu0 0
      %420 = vmatmul.mubr.bf16.gmra.mrb[0].mxu0 %v288
      %v421 = vpop.f32.mrb[0].mxu0
      %v422 = vadd.f32 0.0, %v421
      %v423 = vpop.f32.mrb[0].mxu0
      %v424 = vpop.f32.mrb[0].mxu0
      %v425 = vadd.f32 0.0, %v424
      %v426 = vpop.f32.mrb[0].mxu0
      %427 = vmatprep.mubr.bf16.mxu0 0
      %428 = vmatmul.mubr.bf16.gmra.mrb[0].mxu0 %v289
      %v429 = vpop.f32.mrb[0].mxu0
      %v430 = vadd.f32 0.0, %v429
      %v431 = vpop.f32.mrb[0].mxu0
      %v432 = vpop.f32.mrb[0].mxu0
      %v433 = vadd.f32 0.0, %v432
      %v434 = vpop.f32.mrb[0].mxu0
      %435 = vmatprep.mubr.bf16.mxu0 0
      %436 = vmatmul.mubr.bf16.gmra.mrb[0].mxu0 %v290
      %v437 = vpop.f32.mrb[0].mxu0
      %v438 = vadd.f32 0.0, %v437
      %v439 = vpop.f32.mrb[0].mxu0
      %v440 = vpop.f32.mrb[0].mxu0
      %v441 = vadd.f32 0.0, %v440
      %v442 = vpop.f32.mrb[0].mxu0
      %443 = vdwg.mxu0
      %v444 = vpack.c.bf16 %v385, %v382
      %v445 = vpack.c.bf16 %v393, %v390
      %v446 = vpack.c.bf16 %v401, %v398
      %v447 = vpack.c.bf16 %v409, %v406
      %v448 = vpack.c.bf16 %v417, %v414
      %v449 = vpack.c.bf16 %v425, %v422
      %v450 = vpack.c.bf16 %v433, %v430
      %v451 = vpack.c.bf16 %v441, %v438
      %v460 = vunpack.c.l.b16 %v444
      %v461 = vunpack.c.h.b16 %v444
      %v462 = vunpack.c.l.b16 %v445
      %v463 = vunpack.c.h.b16 %v445
      %v464 = vunpack.c.l.b16 %v446
      %v465 = vunpack.c.h.b16 %v446
      %v466 = vunpack.c.l.b16 %v447
      %v467 = vunpack.c.h.b16 %v447
      %v468 = vunpack.c.l.b16 %v448
      %v469 = vunpack.c.h.b16 %v448
      %v470 = vunpack.c.l.b16 %v449
      %v471 = vunpack.c.h.b16 %v449
      %v472 = vunpack.c.l.b16 %v450
      %v473 = vunpack.c.h.b16 %v450
      %v474 = vunpack.c.l.b16 %v451
      %v475 = vunpack.c.h.b16 %v451
      %v476 = vpack.c.b16 %v460, %v460
      %v477 = vpack.c.b16 %v461, %v461
      %v478 = vpack.c.b16 %v462, %v462
      %v479 = vpack.c.b16 %v463, %v463
      %v480 = vpack.c.b16 %v464, %v464
      %v481 = vpack.c.b16 %v465, %v465
      %v482 = vpack.c.b16 %v466, %v466
      %v483 = vpack.c.b16 %v467, %v467
      %v484 = vpack.c.b16 %v468, %v468
      %v485 = vpack.c.b16 %v469, %v469
      %v486 = vpack.c.b16 %v470, %v470
      %v487 = vpack.c.b16 %v471, %v471
      %v488 = vpack.c.b16 %v472, %v472
      %v489 = vpack.c.b16 %v473, %v473
      %v490 = vpack.c.b16 %v474, %v474
      %v491 = vpack.c.b16 %v475, %v475
      %508 = vst [vmem:[%s210] sm:$0xf] %v476
      %509 = vst [vmem:[%s210 + $0x4] sm:$0xf] %v477
      %510 = vst [vmem:[%s210 + $0x8] sm:$0xf] %v478
      %511 = vst [vmem:[%s210 + $0xc] sm:$0xf] %v479
      %512 = vst [vmem:[%s210 + $0x10] sm:$0xf] %v480
      %513 = vst [vmem:[%s210 + $0x14] sm:$0xf] %v481
      %514 = vst [vmem:[%s210 + $0x18] sm:$0xf] %v482
      %515 = vst [vmem:[%s210 + $0x1c] sm:$0xf] %v483
      %516 = vst [vmem:[%s210 + $0x20] sm:$0xf] %v484
      %517 = vst [vmem:[%s210 + $0x24] sm:$0xf] %v485
      %518 = vst [vmem:[%s210 + $0x28] sm:$0xf] %v486
      %519 = vst [vmem:[%s210 + $0x2c] sm:$0xf] %v487
      %520 = vst [vmem:[%s210 + $0x30] sm:$0xf] %v488
      %521 = vst [vmem:[%s210 + $0x34] sm:$0xf] %v489
      %522 = vst [vmem:[%s210 + $0x38] sm:$0xf] %v490
      %523 = vst [vmem:[%s210 + $0x3c] sm:$0xf] %v491
      %v524 = vadd.f32 %v382, %v385
      %v525 = vadd.f32 %v524, %v390
      %v526 = vadd.f32 %v525, %v393
      %v527 = vadd.f32 %v526, %v398
      %v528 = vadd.f32 %v527, %v401
      %v529 = vadd.f32 %v528, %v406
      %v530 = vadd.f32 %v529, %v409
      %v531 = vadd.f32 %v530, %v414
      %v532 = vadd.f32 %v531, %v417
      %v533 = vadd.f32 %v532, %v422
      %v534 = vadd.f32 %v533, %v425
      %v535 = vadd.f32 %v534, %v430
      %v536 = vadd.f32 %v535, %v433
      %v537 = vadd.f32 %v536, %v438
      %v538 = vadd.f32 %v537, %v441
      %v539 = vrot.slane %v538, 4
      %v540 = vadd.f32 %v538, %v539
      %v541 = vrot.slane %v540, 2
      %v542 = vadd.f32 %v540, %v541
      %v543 = vrot.slane %v542, 1
      %v544 = vadd.f32 %v542, %v543
      %545 = vst [vmem:[%s214] sm:$0x1] %v544
      %v546 = vmul.f32 %v382, %v382
      %v547 = vmul.f32 %v385, %v385
      %v548 = vmul.f32 %v390, %v390
      %v549 = vmul.f32 %v393, %v393
      %v550 = vmul.f32 %v398, %v398
      %v551 = vmul.f32 %v401, %v401
      %v552 = vmul.f32 %v406, %v406
      %v553 = vmul.f32 %v409, %v409
      %v554 = vmul.f32 %v414, %v414
      %v555 = vmul.f32 %v417, %v417
      %v556 = vmul.f32 %v422, %v422
      %v557 = vmul.f32 %v425, %v425
      %v558 = vmul.f32 %v430, %v430
      %v559 = vmul.f32 %v433, %v433
      %v560 = vmul.f32 %v438, %v438
      %v561 = vmul.f32 %v441, %v441
      %v562 = vadd.f32 %v546, %v547
      %v563 = vadd.f32 %v562, %v548
      %v564 = vadd.f32 %v563, %v549
      %v565 = vadd.f32 %v564, %v550
      %v566 = vadd.f32 %v565, %v551
      %v567 = vadd.f32 %v566, %v552
      %v568 = vadd.f32 %v567, %v553
      %v569 = vadd.f32 %v568, %v554
      %v570 = vadd.f32 %v569, %v555
      %v571 = vadd.f32 %v570, %v556
      %v572 = vadd.f32 %v571, %v557
      %v573 = vadd.f32 %v572, %v558
      %v574 = vadd.f32 %v573, %v559
      %v575 = vadd.f32 %v574, %v560
      %v576 = vadd.f32 %v575, %v561
      %v577 = vrot.slane %v576, 4
      %v578 = vadd.f32 %v576, %v577
      %v579 = vrot.slane %v578, 2
      %v580 = vadd.f32 %v578, %v579
      %v581 = vrot.slane %v580, 1
      %v582 = vadd.f32 %v580, %v581
      %583 = vst [vmem:[%s217] sm:$0x1] %v582
      %s584 = smul.u32 16, %s16
      %p585 = scmp.lt.s32.totalorder %s584, 127
      %s586 = scalar_select %p585, %s584, 127
      %s587 = smul.addr %s586, 4
      %s588 = scalar_lea.vmem %s2, %s587
      %p589 = scmp.lt.s32.totalorder %s16, 7
      %s590 = scalar_select %p589, %s16, 7
      %s591 = scalar_lea.vmem %s3, %s590
      %p592 = scmp.lt.s32.totalorder %s16, 7
      %s593 = scalar_select %p592, %s16, 7
      %s594 = scalar_lea.vmem %s4, %s593
      // Predicated region
      $region29: #{deform_basic_block.7} parent=27 // pred_check
        %p595 = pneg %p81
      $region30: #{deform_basic_block.7} parent=27 // pred_check_branch
        %597 = sbr.rel (%p595) target = $region32
      $region31: #{deform_basic_block.7} parent=27 // pred_region
        %s598 = smul.u32 16, %s16
      $region32: #{deform_basic_block.7} parent=27 // pred_fallthru
        _
      // Predicated region
      $region33: #{deform_basic_block.7} parent=27 // pred_check
        %p599 = pneg %p107
      $region34: #{deform_basic_block.7} parent=27 // pred_check_branch
        %601 = sbr.rel (%p599) target = $region36
      $region35: #{deform_basic_block.7} parent=27 // pred_region
        _
      $region36: #{deform_basic_block.7} parent=27 // pred_fallthru
        _
      // Predicated region
      $region37: #{deform_basic_block.7} parent=27 // pred_check
        %p602 = pneg %p133
      $region38: #{deform_basic_block.7} parent=27 // pred_check_branch
        %604 = sbr.rel (%p602) target = $region40
      $region39: #{deform_basic_block.7} parent=27 // pred_region
        _
      $region40: #{deform_basic_block.7} parent=27 // pred_fallthru
        _
    $region28: #{deform_basic_block.7} parent=5 // pred_fallthru
      _
    %p605 = scmp.le.s32.totalorder 2, %s11
    // Predicated region
    $region41: #{deform_basic_block.7} parent=5 // pred_check
      %p606 = pneg %p605
    $region42: #{deform_basic_block.7} parent=5 // pred_check_branch
      %608 = sbr.rel (%p606) target = $region44
    $region43: #{deform_basic_block.7} parent=5 // pred_region
      %s609 = ssub.s32 %s11, 2
      // Predicated region
      $region45: #{deform_basic_block.7} parent=43 // pred_check
        %p610 = pneg %p87
      $region46: #{deform_basic_block.7} parent=43 // pred_check_branch
        %612 = sbr.rel (%p610) target = $region48
      $region47: #{deform_basic_block.7} parent=43 // pred_region
        %s613 = smul.u32 16, %s17
        %p614 = scmp.lt.s32.totalorder %s613, 127
        %s615 = scalar_select %p614, %s613, 127
        %s616 = smul.addr %s615, 4
        %s617 = scalar_lea.vmem %s2, %s616
      $region48: #{deform_basic_block.7} parent=43 // pred_fallthru
        _
      // Predicated region
      $region49: #{deform_basic_block.7} parent=43 // pred_check
        %p618 = pneg %p113
      $region50: #{deform_basic_block.7} parent=43 // pred_check_branch
        %620 = sbr.rel (%p618) target = $region52
      $region51: #{deform_basic_block.7} parent=43 // pred_region
        %p621 = scmp.lt.s32.totalorder %s17, 7
        %s622 = scalar_select %p621, %s17, 7
        %s623 = scalar_lea.vmem %s3, %s622
      $region52: #{deform_basic_block.7} parent=43 // pred_fallthru
        _
      // Predicated region
      $region53: #{deform_basic_block.7} parent=43 // pred_check
        %p624 = pneg %p139
      $region54: #{deform_basic_block.7} parent=43 // pred_check_branch
        %626 = sbr.rel (%p624) target = $region56
      $region55: #{deform_basic_block.7} parent=43 // pred_region
        %p627 = scmp.lt.s32.totalorder %s17, 7
        %s628 = scalar_select %p627, %s17, 7
        %s629 = scalar_lea.vmem %s4, %s628
      $region56: #{deform_basic_block.7} parent=43 // pred_fallthru
        _
    $region44: #{deform_basic_block.7} parent=5 // pred_fallthru
      _
  $region6: #{deform_basic_block.7} parent=0 // loop_footer
    %s15 = sadd.s32 1, %s11
  $region7: #{deform_basic_block.7} parent=0 // loop_footer_branch
    %10 = sbr.rel target = $region3
  $region8: #{deform_basic_block.7} parent=0 // loop_exit
    _

// kernel: deform_basic_block.8
$region0: #{deform_basic_block.8}
  #allocation0 [shape = 'u32[]', space=smem, size = 0x4, offset = 0x4, fixed_abs, tag = 'smem constant byte address 0x4 - core index']
  #allocation1 [shape = 'u32[144,128]{1,0:T(1,128)}', space=vmem, size = 0x12000, scoped, tag = 'internal scratch']
  %s0 = inlined_call_operand.vmem [shape: bf16[1024,128], index: 0, kind: input, shape index: {}]
  %s1 = inlined_call_operand.vmem [shape: f32[1,128], index: 1, kind: input, shape index: {}]
  %s2 = inlined_call_operand.vmem [shape: f32[1,128], index: 2, kind: input, shape index: {}]
  %s3 = inlined_call_operand.vmem [shape: bf16[1024,128], index: 3, kind: output, shape index: {}]
  %s4 = sld [smem:[#allocation0]]
  $region45: #{deform_basic_block.8} parent=0
    _
  %s6 = ssub.s32 1, %s4
  %s7 = scalar_select 0, %s6, %s4
  loop: start=0, step=1, limit=10
  $region2: #{deform_basic_block.8} parent=0 // loop_pre_header
    _
  $region3: #{deform_basic_block.8} parent=0 // loop_header
    %s9 = sphi 0, %s13
    %p10 = scmp.ge.s32.totalorder %s9, 10
    %s19 = sphi 0, %s21
    %s22 = sphi 0, %s19
    %s23 = sphi 0, %s22
    %s39 = sphi 0, %s23
    %s43 = sphi 0, %s43
    %s45 = sphi 0, %s43
    %s46 = sphi 0, %s45
    %s60 = sphi 0, %s46
    %s64 = sphi 0, %s64
    %s66 = sphi 0, %s64
    %s67 = sphi 0, %s66
    %s81 = sphi 0, %s67
    %s87 = sphi 0, %s89
    %s90 = sphi 0, %s87
    %s91 = sphi 0, %s90
    %s107 = sphi 0, %s91
  $region4: #{deform_basic_block.8} parent=0 // loop_header_branch
    %12 = sbr.rel (%p10) target = $region8
  $region5: #{deform_basic_block.8} parent=0 // loop_body
    %s14 = ssub.s32 %s9, 1
    %s15 = ssub.s32 %s9, 2
    %s16 = sadd.s32 %s9, 1
    %s17 = ssub.s32 %s9, %s16
    %p18 = scmp.eq.s32.totalorder %s17, 0
    %s20 = sadd.s32 %s19, 1
    %s21 = scalar_select %p18, %s19, %s20
    %p24 = pneg %p18
    %p25 = scmp.eq.s32.totalorder %s9, 7
    %p26 = por %p24, %p25
    %p27 = scmp.ne.s32.totalorder %s19, %s22
    %p28 = scmp.eq.s32.totalorder %s9, 0
    %p29 = por %p27, %p28
    %p30 = scmp.ne.s32.totalorder %s19, %s22
    %p31 = scmp.eq.s32.totalorder %s14, 7
    %p32 = por %p30, %p31
    %p33 = scmp.ne.s32.totalorder %s22, %s23
    %p34 = scmp.eq.s32.totalorder %s14, 0
    %p35 = por %p33, %p34
    %p36 = scmp.ne.s32.totalorder %s22, %s23
    %p37 = scmp.eq.s32.totalorder %s15, 7
    %p38 = por %p36, %p37
    %p40 = scmp.ne.s32.totalorder %s23, %s39
    %p41 = scmp.eq.s32.totalorder %s15, 0
    %p42 = por %p40, %p41
    %s44 = sadd.s32 %s43, 1
    %p47 = scmp.eq.s32.totalorder %s9, 7
    %p48 = scmp.ne.s32.totalorder %s43, %s45
    %p49 = scmp.eq.s32.totalorder %s9, 0
    %p50 = por %p48, %p49
    %p51 = scmp.ne.s32.totalorder %s43, %s45
    %p52 = scmp.eq.s32.totalorder %s14, 7
    %p53 = por %p51, %p52
    %p54 = scmp.ne.s32.totalorder %s45, %s46
    %p55 = scmp.eq.s32.totalorder %s14, 0
    %p56 = por %p54, %p55
    %p57 = scmp.ne.s32.totalorder %s45, %s46
    %p58 = scmp.eq.s32.totalorder %s15, 7
    %p59 = por %p57, %p58
    %p61 = scmp.ne.s32.totalorder %s46, %s60
    %p62 = scmp.eq.s32.totalorder %s15, 0
    %p63 = por %p61, %p62
    %s65 = sadd.s32 %s64, 1
    %p68 = scmp.eq.s32.totalorder %s9, 7
    %p69 = scmp.ne.s32.totalorder %s64, %s66
    %p70 = scmp.eq.s32.totalorder %s9, 0
    %p71 = por %p69, %p70
    %p72 = scmp.ne.s32.totalorder %s64, %s66
    %p73 = scmp.eq.s32.totalorder %s14, 7
    %p74 = por %p72, %p73
    %p75 = scmp.ne.s32.totalorder %s66, %s67
    %p76 = scmp.eq.s32.totalorder %s14, 0
    %p77 = por %p75, %p76
    %p78 = scmp.ne.s32.totalorder %s66, %s67
    %p79 = scmp.eq.s32.totalorder %s15, 7
    %p80 = por %p78, %p79
    %p82 = scmp.ne.s32.totalorder %s67, %s81
    %p83 = scmp.eq.s32.totalorder %s15, 0
    %p84 = por %p82, %p83
    %s85 = ssub.s32 %s9, %s16
    %p86 = scmp.eq.s32.totalorder %s85, 0
    %s88 = sadd.s32 %s87, 1
    %s89 = scalar_select %p86, %s87, %s88
    %p92 = pneg %p86
    %p93 = scmp.eq.s32.totalorder %s9, 7
    %p94 = por %p92, %p93
    %p95 = scmp.ne.s32.totalorder %s87, %s90
    %p96 = scmp.eq.s32.totalorder %s9, 0
    %p97 = por %p95, %p96
    %p98 = scmp.ne.s32.totalorder %s87, %s90
    %p99 = scmp.eq.s32.totalorder %s14, 7
    %p100 = por %p98, %p99
    %p101 = scmp.ne.s32.totalorder %s90, %s91
    %p102 = scmp.eq.s32.totalorder %s14, 0
    %p103 = por %p101, %p102
    %p104 = scmp.ne.s32.totalorder %s90, %s91
    %p105 = scmp.eq.s32.totalorder %s15, 7
    %p106 = por %p104, %p105
    %p108 = scmp.ne.s32.totalorder %s91, %s107
    %p109 = scmp.eq.s32.totalorder %s15, 0
    %p110 = por %p108, %p109
    %p111 = scmp.le.s32.totalorder 1, %s9
    %p112 = scmp.lt.s32.totalorder %s9, 9
    %p113 = pnand %p111, %p112
    %p114 = pneg %p113
    // Predicated region
    $region9: #{deform_basic_block.8} parent=5 // pred_check
      _
    $region10: #{deform_basic_block.8} parent=5 // pred_check_branch
      %116 = sbr.rel (%p113) target = $region12
    $region11: #{deform_basic_block.8} parent=5 // pred_region
      %s117 = ssub.s32 %s9, 1
      // Predicated region
      $region13: #{deform_basic_block.8} parent=11 // pred_check
        %p118 = pneg %p56
      $region14: #{deform_basic_block.8} parent=11 // pred_check_branch
        %120 = sbr.rel (%p118) target = $region16
      $region15: #{deform_basic_block.8} parent=11 // pred_region
        _
      $region16: #{deform_basic_block.8} parent=11 // pred_fallthru
        _
      // Predicated region
      $region17: #{deform_basic_block.8} parent=11 // pred_check
        %p121 = pneg %p77
      $region18: #{deform_basic_block.8} parent=11 // pred_check_branch
        %123 = sbr.rel (%p121) target = $region20
      $region19: #{deform_basic_block.8} parent=11 // pred_region
        _
      $region20: #{deform_basic_block.8} parent=11 // pred_fallthru
        _
    $region12: #{deform_basic_block.8} parent=5 // pred_fallthru
      _
    %p124 = scmp.lt.s32.totalorder %s9, 8
    // Predicated region
    $region21: #{deform_basic_block.8} parent=5 // pred_check
      %p125 = pneg %p124
    $region22: #{deform_basic_block.8} parent=5 // pred_check_branch
      %127 = sbr.rel (%p125) target = $region24
    $region23: #{deform_basic_block.8} parent=5 // pred_region
      // Predicated region
      $region25: #{deform_basic_block.8} parent=23 // pred_check
        %p128 = pneg %p29
      $region26: #{deform_basic_block.8} parent=23 // pred_check_branch
        %130 = sbr.rel (%p128) target = $region28
      $region27: #{deform_basic_block.8} parent=23 // pred_region
        %s131 = smul.u32 16, %s9
        %p132 = scmp.lt.s32.totalorder %s131, 127
        %s133 = scalar_select %p132, %s131, 127
        %s134 = smul.addr %s133, 4
        %s135 = scalar_lea.vmem %s0, %s134
        %s136 = smul.u32 16, %s9
      $region28: #{deform_basic_block.8} parent=23 // pred_fallthru
        _
    $region24: #{deform_basic_block.8} parent=5 // pred_fallthru
      _
    %p137 = scmp.le.s32.totalorder 1, %s9
    %p138 = scmp.lt.s32.totalorder %s9, 9
    %p139 = pnand %p137, %p138
    %p140 = pneg %p139
    // Predicated region
    $region29: #{deform_basic_block.8} parent=5 // pred_check
      _
    $region30: #{deform_basic_block.8} parent=5 // pred_check_branch
      %142 = sbr.rel (%p139) target = $region32
    $region31: #{deform_basic_block.8} parent=5 // pred_region
      %s143 = ssub.s32 %s9, 1
      %s144 = smul.u32 16, %s14
      %p145 = scmp.lt.s32.totalorder %s144, 127
      %s146 = scalar_select %p145, %s144, 127
      %s147 = smul.addr %s146, 4
      %s148 = scalar_lea.vmem %s0, %s147
      %p149 = pneg %p35
      %p150 = pneg %p32
      %p151 = pneg %p56
      %p152 = pneg %p53
      %p153 = pneg %p77
      %p154 = pneg %p74
      %p155 = pneg %p103
      %p156 = pneg %p100
      %s157 = smul.u32 16, %s14
      %p158 = scmp.lt.s32.totalorder %s157, 127
      %s159 = scalar_select %p158, %s157, 127
      %s160 = smul.addr %s159, 4
      %s161 = scalar_lea.vmem %s3, %s160
      %s162 = smul.u32 16, %s14
      %p163 = scmp.lt.s32.totalorder %s162, 127
      %s164 = scalar_select %p163, %s162, 127
      %s165 = smul.addr %s164, 4
      %s166 = scalar_lea.vmem %s0, %s165
      %s167 = smul.u32 16, %s14
      %s168 = smul.u32 16, %s14
      %p169 = scmp.lt.s32.totalorder %s168, 127
      %s170 = scalar_select %p169, %s168, 127
      %s171 = smul.addr %s170, 4
      %s172 = scalar_lea.vmem %s3, %s171
      %s173 = smul.u32 16, %s14
      %v174 = vld [vmem:[%s166] sm:$0xf]
      %v175 = vld [vmem:[%s166 + $0x4] sm:$0xf]
      %v176 = vld [vmem:[%s166 + $0x8] sm:$0xf]
      %v177 = vld [vmem:[%s166 + $0xc] sm:$0xf]
      %v178 = vld [vmem:[%s166 + $0x10] sm:$0xf]
      %v179 = vld [vmem:[%s166 + $0x14] sm:$0xf]
      %v180 = vld [vmem:[%s166 + $0x18] sm:$0xf]
      %v181 = vld [vmem:[%s166 + $0x1c] sm:$0xf]
      %v182 = vld [vmem:[%s166 + $0x20] sm:$0xf]
      %v183 = vld [vmem:[%s166 + $0x24] sm:$0xf]
      %v184 = vld [vmem:[%s166 + $0x28] sm:$0xf]
      %v185 = vld [vmem:[%s166 + $0x2c] sm:$0xf]
      %v186 = vld [vmem:[%s166 + $0x30] sm:$0xf]
      %v187 = vld [vmem:[%s166 + $0x34] sm:$0xf]
      %v188 = vld [vmem:[%s166 + $0x38] sm:$0xf]
      %v189 = vld [vmem:[%s166 + $0x3c] sm:$0xf]
      %v190 = vunpack.c.l.bf16 %v174
      %v191 = vunpack.c.l.bf16 %v175
      %v192 = vunpack.c.l.bf16 %v176
      %v193 = vunpack.c.l.bf16 %v177
      %v194 = vunpack.c.l.bf16 %v178
      %v195 = vunpack.c.l.bf16 %v179
      %v196 = vunpack.c.l.bf16 %v180
      %v197 = vunpack.c.l.bf16 %v181
      %v198 = vunpack.c.l.bf16 %v182
      %v199 = vunpack.c.l.bf16 %v183
      %v200 = vunpack.c.l.bf16 %v184
      %v201 = vunpack.c.l.bf16 %v185
      %v202 = vunpack.c.l.bf16 %v186
      %v203 = vunpack.c.l.bf16 %v187
      %v204 = vunpack.c.l.bf16 %v188
      %v205 = vunpack.c.l.bf16 %v189
      %v206 = vld [vmem:[%s1] sm:$0x1]
      %v208 = vlaneseq
      %v209 = vshrl.u32 %v208, 7
      %v210 = vsub.s32 0, %v209
      %v211 = vrot.slane %v206, %v210
      %v213 = vmul.f32 %v190, %v211
      %v214 = vmul.f32 %v191, %v211
      %v215 = vmul.f32 %v192, %v211
      %v216 = vmul.f32 %v193, %v211
      %v217 = vmul.f32 %v194, %v211
      %v218 = vmul.f32 %v195, %v211
      %v219 = vmul.f32 %v196, %v211
      %v220 = vmul.f32 %v197, %v211
      %v221 = vmul.f32 %v198, %v211
      %v222 = vmul.f32 %v199, %v211
      %v223 = vmul.f32 %v200, %v211
      %v224 = vmul.f32 %v201, %v211
      %v225 = vmul.f32 %v202, %v211
      %v226 = vmul.f32 %v203, %v211
      %v227 = vmul.f32 %v204, %v211
      %v228 = vmul.f32 %v205, %v211
      %v229 = vld [vmem:[%s2] sm:$0x1]
      %v231 = vlaneseq
      %v232 = vshrl.u32 %v231, 7
      %v233 = vsub.s32 0, %v232
      %v234 = vrot.slane %v229, %v233
      %v236 = vadd.f32 %v213, %v234
      %v237 = vadd.f32 %v214, %v234
      %v238 = vadd.f32 %v215, %v234
      %v239 = vadd.f32 %v216, %v234
      %v240 = vadd.f32 %v217, %v234
      %v241 = vadd.f32 %v218, %v234
      %v242 = vadd.f32 %v219, %v234
      %v243 = vadd.f32 %v220, %v234
      %v244 = vadd.f32 %v221, %v234
      %v245 = vadd.f32 %v222, %v234
      %v246 = vadd.f32 %v223, %v234
      %v247 = vadd.f32 %v224, %v234
      %v248 = vadd.f32 %v225, %v234
      %v249 = vadd.f32 %v226, %v234
      %v250 = vadd.f32 %v227, %v234
      %v251 = vadd.f32 %v228, %v234
      %v252 = vmax.f32 %v236, 0.0
      %v253 = vmax.f32 %v237, 0.0
      %v254 = vmax.f32 %v238, 0.0
      %v255 = vmax.f32 %v239, 0.0
      %v256 = vmax.f32 %v240, 0.0
      %v257 = vmax.f32 %v241, 0.0
      %v258 = vmax.f32 %v242, 0.0
      %v259 = vmax.f32 %v243, 0.0
      %v260 = vmax.f32 %v244, 0.0
      %v261 = vmax.f32 %v245, 0.0
      %v262 = vmax.f32 %v246, 0.0
      %v263 = vmax.f32 %v247, 0.0
      %v264 = vmax.f32 %v248, 0.0
      %v265 = vmax.f32 %v249, 0.0
      %v266 = vmax.f32 %v250, 0.0
      %v267 = vmax.f32 %v251, 0.0
      %v268 = vpack.c.bf16 %v253, %v252
      %v269 = vpack.c.bf16 %v255, %v254
      %v270 = vpack.c.bf16 %v257, %v256
      %v271 = vpack.c.bf16 %v259, %v258
      %v272 = vpack.c.bf16 %v261, %v260
      %v273 = vpack.c.bf16 %v263, %v262
      %v274 = vpack.c.bf16 %v265, %v264
      %v275 = vpack.c.bf16 %v267, %v266
      %v284 = vunpack.c.l.b16 %v268
      %v285 = vunpack.c.h.b16 %v268
      %v286 = vunpack.c.l.b16 %v269
      %v287 = vunpack.c.h.b16 %v269
      %v288 = vunpack.c.l.b16 %v270
      %v289 = vunpack.c.h.b16 %v270
      %v290 = vunpack.c.l.b16 %v271
      %v291 = vunpack.c.h.b16 %v271
      %v292 = vunpack.c.l.b16 %v272
      %v293 = vunpack.c.h.b16 %v272
      %v294 = vunpack.c.l.b16 %v273
      %v295 = vunpack.c.h.b16 %v273
      %v296 = vunpack.c.l.b16 %v274
      %v297 = vunpack.c.h.b16 %v274
      %v298 = vunpack.c.l.b16 %v275
      %v299 = vunpack.c.h.b16 %v275
      %v300 = vpack.c.b16 %v284, %v284
      %v301 = vpack.c.b16 %v285, %v285
      %v302 = vpack.c.b16 %v286, %v286
      %v303 = vpack.c.b16 %v287, %v287
      %v304 = vpack.c.b16 %v288, %v288
      %v305 = vpack.c.b16 %v289, %v289
      %v306 = vpack.c.b16 %v290, %v290
      %v307 = vpack.c.b16 %v291, %v291
      %v308 = vpack.c.b16 %v292, %v292
      %v309 = vpack.c.b16 %v293, %v293
      %v310 = vpack.c.b16 %v294, %v294
      %v311 = vpack.c.b16 %v295, %v295
      %v312 = vpack.c.b16 %v296, %v296
      %v313 = vpack.c.b16 %v297, %v297
      %v314 = vpack.c.b16 %v298, %v298
      %v315 = vpack.c.b16 %v299, %v299
      %332 = vst [vmem:[%s172] sm:$0xf] %v300
      %333 = vst [vmem:[%s172 + $0x4] sm:$0xf] %v301
      %334 = vst [vmem:[%s172 + $0x8] sm:$0xf] %v302
      %335 = vst [vmem:[%s172 + $0xc] sm:$0xf] %v303
      %336 = vst [vmem:[%s172 + $0x10] sm:$0xf] %v304
      %337 = vst [vmem:[%s172 + $0x14] sm:$0xf] %v305
      %338 = vst [vmem:[%s172 + $0x18] sm:$0xf] %v306
      %339 = vst [vmem:[%s172 + $0x1c] sm:$0xf] %v307
      %340 = vst [vmem:[%s172 + $0x20] sm:$0xf] %v308
      %341 = vst [vmem:[%s172 + $0x24] sm:$0xf] %v309
      %342 = vst [vmem:[%s172 + $0x28] sm:$0xf] %v310
      %343 = vst [vmem:[%s172 + $0x2c] sm:$0xf] %v311
      %344 = vst [vmem:[%s172 + $0x30] sm:$0xf] %v312
      %345 = vst [vmem:[%s172 + $0x34] sm:$0xf] %v313
      %346 = vst [vmem:[%s172 + $0x38] sm:$0xf] %v314
      %347 = vst [vmem:[%s172 + $0x3c] sm:$0xf] %v315
      %s348 = smul.u32 16, %s14
      %p349 = scmp.lt.s32.totalorder %s348, 127
      %s350 = scalar_select %p349, %s348, 127
      %s351 = smul.addr %s350, 4
      %s352 = scalar_lea.vmem %s3, %s351
      // Predicated region
      $region33: #{deform_basic_block.8} parent=31 // pred_check
        %p353 = pneg %p100
      $region34: #{deform_basic_block.8} parent=31 // pred_check_branch
        %355 = sbr.rel (%p353) target = $region36
      $region35: #{deform_basic_block.8} parent=31 // pred_region
        %s356 = smul.u32 16, %s14
      $region36: #{deform_basic_block.8} parent=31 // pred_fallthru
        _
    $region32: #{deform_basic_block.8} parent=5 // pred_fallthru
      _
    %p357 = scmp.le.s32.totalorder 2, %s9
    // Predicated region
    $region37: #{deform_basic_block.8} parent=5 // pred_check
      %p358 = pneg %p357
    $region38: #{deform_basic_block.8} parent=5 // pred_check_branch
      %360 = sbr.rel (%p358) target = $region40
    $region39: #{deform_basic_block.8} parent=5 // pred_region
      %s361 = ssub.s32 %s9, 2
      // Predicated region
      $region41: #{deform_basic_block.8} parent=39 // pred_check
        %p362 = pneg %p106
      $region42: #{deform_basic_block.8} parent=39 // pred_check_branch
        %364 = sbr.rel (%p362) target = $region44
      $region43: #{deform_basic_block.8} parent=39 // pred_region
        %s365 = smul.u32 16, %s15
        %p366 = scmp.lt.s32.totalorder %s365, 127
        %s367 = scalar_select %p366, %s365, 127
        %s368 = smul.addr %s367, 4
        %s369 = scalar_lea.vmem %s3, %s368
      $region44: #{deform_basic_block.8} parent=39 // pred_fallthru
        _
    $region40: #{deform_basic_block.8} parent=5 // pred_fallthru
      _
  $region6: #{deform_basic_block.8} parent=0 // loop_footer
    %s13 = sadd.s32 1, %s9
  $region7: #{deform_basic_block.8} parent=0 // loop_footer_branch
    %8 = sbr.rel target = $region3
  $region8: #{deform_basic_block.8} parent=0 // loop_exit
    _

// kernel: deform_basic_block.11
$region0: #{deform_basic_block.11}
  #allocation0 [shape = 'u32[]', space=smem, size = 0x4, offset = 0x4, fixed_abs, tag = 'smem constant byte address 0x4 - core index']
  #allocation1 [shape = 'u32[144,128]{1,0:T(1,128)}', space=vmem, size = 0x12000, scoped, tag = 'internal scratch']
  %s0 = inlined_call_operand.vmem [shape: bf16[1024,128], index: 0, kind: input, shape index: {}]
  %s1 = inlined_call_operand.vmem [shape: f32[1,128], index: 1, kind: input, shape index: {}]
  %s2 = inlined_call_operand.vmem [shape: f32[1,128], index: 2, kind: input, shape index: {}]
  %s3 = inlined_call_operand.vmem [shape: bf16[1024,128], index: 3, kind: input, shape index: {}]
  %s4 = inlined_call_operand.vmem [shape: bf16[1024,128], index: 4, kind: output, shape index: {}]
  %s5 = sld [smem:[#allocation0]]
  $region49: #{deform_basic_block.11} parent=0
    _
  %s7 = ssub.s32 1, %s5
  %s8 = scalar_select 0, %s7, %s5
  loop: start=0, step=1, limit=10
  $region2: #{deform_basic_block.11} parent=0 // loop_pre_header
    _
  $region3: #{deform_basic_block.11} parent=0 // loop_header
    %s10 = sphi 0, %s14
    %p11 = scmp.ge.s32.totalorder %s10, 10
    %s20 = sphi 0, %s22
    %s23 = sphi 0, %s20
    %s24 = sphi 0, %s23
    %s40 = sphi 0, %s24
    %s44 = sphi 0, %s44
    %s46 = sphi 0, %s44
    %s47 = sphi 0, %s46
    %s61 = sphi 0, %s47
    %s65 = sphi 0, %s65
    %s67 = sphi 0, %s65
    %s68 = sphi 0, %s67
    %s82 = sphi 0, %s68
    %s88 = sphi 0, %s90
    %s91 = sphi 0, %s88
    %s92 = sphi 0, %s91
    %s108 = sphi 0, %s92
    %s114 = sphi 0, %s116
    %s117 = sphi 0, %s114
    %s118 = sphi 0, %s117
    %s134 = sphi 0, %s118
  $region4: #{deform_basic_block.11} parent=0 // loop_header_branch
    %13 = sbr.rel (%p11) target = $region8
  $region5: #{deform_basic_block.11} parent=0 // loop_body
    %s15 = ssub.s32 %s10, 1
    %s16 = ssub.s32 %s10, 2
    %s17 = sadd.s32 %s10, 1
    %s18 = ssub.s32 %s10, %s17
    %p19 = scmp.eq.s32.totalorder %s18, 0
    %s21 = sadd.s32 %s20, 1
    %s22 = scalar_select %p19, %s20, %s21
    %p25 = pneg %p19
    %p26 = scmp.eq.s32.totalorder %s10, 7
    %p27 = por %p25, %p26
    %p28 = scmp.ne.s32.totalorder %s20, %s23
    %p29 = scmp.eq.s32.totalorder %s10, 0
    %p30 = por %p28, %p29
    %p31 = scmp.ne.s32.totalorder %s20, %s23
    %p32 = scmp.eq.s32.totalorder %s15, 7
    %p33 = por %p31, %p32
    %p34 = scmp.ne.s32.totalorder %s23, %s24
    %p35 = scmp.eq.s32.totalorder %s15, 0
    %p36 = por %p34, %p35
    %p37 = scmp.ne.s32.totalorder %s23, %s24
    %p38 = scmp.eq.s32.totalorder %s16, 7
    %p39 = por %p37, %p38
    %p41 = scmp.ne.s32.totalorder %s24, %s40
    %p42 = scmp.eq.s32.totalorder %s16, 0
    %p43 = por %p41, %p42
    %s45 = sadd.s32 %s44, 1
    %p48 = scmp.eq.s32.totalorder %s10, 7
    %p49 = scmp.ne.s32.totalorder %s44, %s46
    %p50 = scmp.eq.s32.totalorder %s10, 0
    %p51 = por %p49, %p50
    %p52 = scmp.ne.s32.totalorder %s44, %s46
    %p53 = scmp.eq.s32.totalorder %s15, 7
    %p54 = por %p52, %p53
    %p55 = scmp.ne.s32.totalorder %s46, %s47
    %p56 = scmp.eq.s32.totalorder %s15, 0
    %p57 = por %p55, %p56
    %p58 = scmp.ne.s32.totalorder %s46, %s47
    %p59 = scmp.eq.s32.totalorder %s16, 7
    %p60 = por %p58, %p59
    %p62 = scmp.ne.s32.totalorder %s47, %s61
    %p63 = scmp.eq.s32.totalorder %s16, 0
    %p64 = por %p62, %p63
    %s66 = sadd.s32 %s65, 1
    %p69 = scmp.eq.s32.totalorder %s10, 7
    %p70 = scmp.ne.s32.totalorder %s65, %s67
    %p71 = scmp.eq.s32.totalorder %s10, 0
    %p72 = por %p70, %p71
    %p73 = scmp.ne.s32.totalorder %s65, %s67
    %p74 = scmp.eq.s32.totalorder %s15, 7
    %p75 = por %p73, %p74
    %p76 = scmp.ne.s32.totalorder %s67, %s68
    %p77 = scmp.eq.s32.totalorder %s15, 0
    %p78 = por %p76, %p77
    %p79 = scmp.ne.s32.totalorder %s67, %s68
    %p80 = scmp.eq.s32.totalorder %s16, 7
    %p81 = por %p79, %p80
    %p83 = scmp.ne.s32.totalorder %s68, %s82
    %p84 = scmp.eq.s32.totalorder %s16, 0
    %p85 = por %p83, %p84
    %s86 = ssub.s32 %s10, %s17
    %p87 = scmp.eq.s32.totalorder %s86, 0
    %s89 = sadd.s32 %s88, 1
    %s90 = scalar_select %p87, %s88, %s89
    %p93 = pneg %p87
    %p94 = scmp.eq.s32.totalorder %s10, 7
    %p95 = por %p93, %p94
    %p96 = scmp.ne.s32.totalorder %s88, %s91
    %p97 = scmp.eq.s32.totalorder %s10, 0
    %p98 = por %p96, %p97
    %p99 = scmp.ne.s32.totalorder %s88, %s91
    %p100 = scmp.eq.s32.totalorder %s15, 7
    %p101 = por %p99, %p100
    %p102 = scmp.ne.s32.totalorder %s91, %s92
    %p103 = scmp.eq.s32.totalorder %s15, 0
    %p104 = por %p102, %p103
    %p105 = scmp.ne.s32.totalorder %s91, %s92
    %p106 = scmp.eq.s32.totalorder %s16, 7
    %p107 = por %p105, %p106
    %p109 = scmp.ne.s32.totalorder %s92, %s108
    %p110 = scmp.eq.s32.totalorder %s16, 0
    %p111 = por %p109, %p110
    %s112 = ssub.s32 %s10, %s17
    %p113 = scmp.eq.s32.totalorder %s112, 0
    %s115 = sadd.s32 %s114, 1
    %s116 = scalar_select %p113, %s114, %s115
    %p119 = pneg %p113
    %p120 = scmp.eq.s32.totalorder %s10, 7
    %p121 = por %p119, %p120
    %p122 = scmp.ne.s32.totalorder %s114, %s117
    %p123 = scmp.eq.s32.totalorder %s10, 0
    %p124 = por %p122, %p123
    %p125 = scmp.ne.s32.totalorder %s114, %s117
    %p126 = scmp.eq.s32.totalorder %s15, 7
    %p127 = por %p125, %p126
    %p128 = scmp.ne.s32.totalorder %s117, %s118
    %p129 = scmp.eq.s32.totalorder %s15, 0
    %p130 = por %p128, %p129
    %p131 = scmp.ne.s32.totalorder %s117, %s118
    %p132 = scmp.eq.s32.totalorder %s16, 7
    %p133 = por %p131, %p132
    %p135 = scmp.ne.s32.totalorder %s118, %s134
    %p136 = scmp.eq.s32.totalorder %s16, 0
    %p137 = por %p135, %p136
    %p138 = scmp.le.s32.totalorder 1, %s10
    %p139 = scmp.lt.s32.totalorder %s10, 9
    %p140 = pnand %p138, %p139
    %p141 = pneg %p140
    // Predicated region
    $region9: #{deform_basic_block.11} parent=5 // pred_check
      _
    $region10: #{deform_basic_block.11} parent=5 // pred_check_branch
      %143 = sbr.rel (%p140) target = $region12
    $region11: #{deform_basic_block.11} parent=5 // pred_region
      %s144 = ssub.s32 %s10, 1
      // Predicated region
      $region13: #{deform_basic_block.11} parent=11 // pred_check
        %p145 = pneg %p57
      $region14: #{deform_basic_block.11} parent=11 // pred_check_branch
        %147 = sbr.rel (%p145) target = $region16
      $region15: #{deform_basic_block.11} parent=11 // pred_region
        _
      $region16: #{deform_basic_block.11} parent=11 // pred_fallthru
        _
      // Predicated region
      $region17: #{deform_basic_block.11} parent=11 // pred_check
        %p148 = pneg %p78
      $region18: #{deform_basic_block.11} parent=11 // pred_check_branch
        %150 = sbr.rel (%p148) target = $region20
      $region19: #{deform_basic_block.11} parent=11 // pred_region
        _
      $region20: #{deform_basic_block.11} parent=11 // pred_fallthru
        _
    $region12: #{deform_basic_block.11} parent=5 // pred_fallthru
      _
    %p151 = scmp.lt.s32.totalorder %s10, 8
    // Predicated region
    $region21: #{deform_basic_block.11} parent=5 // pred_check
      %p152 = pneg %p151
    $region22: #{deform_basic_block.11} parent=5 // pred_check_branch
      %154 = sbr.rel (%p152) target = $region24
    $region23: #{deform_basic_block.11} parent=5 // pred_region
      // Predicated region
      $region25: #{deform_basic_block.11} parent=23 // pred_check
        %p155 = pneg %p30
      $region26: #{deform_basic_block.11} parent=23 // pred_check_branch
        %157 = sbr.rel (%p155) target = $region28
      $region27: #{deform_basic_block.11} parent=23 // pred_region
        %s158 = smul.u32 16, %s10
        %p159 = scmp.lt.s32.totalorder %s158, 127
        %s160 = scalar_select %p159, %s158, 127
        %s161 = smul.addr %s160, 4
        %s162 = scalar_lea.vmem %s0, %s161
        %s163 = smul.u32 16, %s10
      $region28: #{deform_basic_block.11} parent=23 // pred_fallthru
        _
      // Predicated region
      $region29: #{deform_basic_block.11} parent=23 // pred_check
        %p164 = pneg %p98
      $region30: #{deform_basic_block.11} parent=23 // pred_check_branch
        %166 = sbr.rel (%p164) target = $region32
      $region31: #{deform_basic_block.11} parent=23 // pred_region
        %s167 = smul.u32 16, %s10
        %p168 = scmp.lt.s32.totalorder %s167, 127
        %s169 = scalar_select %p168, %s167, 127
        %s170 = smul.addr %s169, 4
        %s171 = scalar_lea.vmem %s3, %s170
        %s172 = smul.u32 16, %s10
      $region32: #{deform_basic_block.11} parent=23 // pred_fallthru
        _
    $region24: #{deform_basic_block.11} parent=5 // pred_fallthru
      _
    %p173 = scmp.le.s32.totalorder 1, %s10
    %p174 = scmp.lt.s32.totalorder %s10, 9
    %p175 = pnand %p173, %p174
    %p176 = pneg %p175
    // Predicated region
    $region33: #{deform_basic_block.11} parent=5 // pred_check
      _
    $region34: #{deform_basic_block.11} parent=5 // pred_check_branch
      %178 = sbr.rel (%p175) target = $region36
    $region35: #{deform_basic_block.11} parent=5 // pred_region
      %s179 = ssub.s32 %s10, 1
      %s180 = smul.u32 16, %s15
      %p181 = scmp.lt.s32.totalorder %s180, 127
      %s182 = scalar_select %p181, %s180, 127
      %s183 = smul.addr %s182, 4
      %s184 = scalar_lea.vmem %s0, %s183
      %p185 = pneg %p36
      %p186 = pneg %p33
      %p187 = pneg %p57
      %p188 = pneg %p54
      %p189 = pneg %p78
      %p190 = pneg %p75
      %s191 = smul.u32 16, %s15
      %p192 = scmp.lt.s32.totalorder %s191, 127
      %s193 = scalar_select %p192, %s191, 127
      %s194 = smul.addr %s193, 4
      %s195 = scalar_lea.vmem %s3, %s194
      %p196 = pneg %p104
      %p197 = pneg %p101
      %p198 = pneg %p130
      %p199 = pneg %p127
      %s200 = smul.u32 16, %s15
      %p201 = scmp.lt.s32.totalorder %s200, 127
      %s202 = scalar_select %p201, %s200, 127
      %s203 = smul.addr %s202, 4
      %s204 = scalar_lea.vmem %s4, %s203
      %s205 = smul.u32 16, %s15
      %p206 = scmp.lt.s32.totalorder %s205, 127
      %s207 = scalar_select %p206, %s205, 127
      %s208 = smul.addr %s207, 4
      %s209 = scalar_lea.vmem %s0, %s208
      %s210 = smul.u32 16, %s15
      %s211 = smul.u32 16, %s15
      %p212 = scmp.lt.s32.totalorder %s211, 127
      %s213 = scalar_select %p212, %s211, 127
      %s214 = smul.addr %s213, 4
      %s215 = scalar_lea.vmem %s3, %s214
      %s216 = smul.u32 16, %s15
      %s217 = smul.u32 16, %s15
      %p218 = scmp.lt.s32.totalorder %s217, 127
      %s219 = scalar_select %p218, %s217, 127
      %s220 = smul.addr %s219, 4
      %s221 = scalar_lea.vmem %s4, %s220
      %s222 = smul.u32 16, %s15
      %v223 = vld [vmem:[%s209] sm:$0xf]
      %v224 = vld [vmem:[%s209 + $0x4] sm:$0xf]
      %v225 = vld [vmem:[%s209 + $0x8] sm:$0xf]
      %v226 = vld [vmem:[%s209 + $0xc] sm:$0xf]
      %v227 = vld [vmem:[%s209 + $0x10] sm:$0xf]
      %v228 = vld [vmem:[%s209 + $0x14] sm:$0xf]
      %v229 = vld [vmem:[%s209 + $0x18] sm:$0xf]
      %v230 = vld [vmem:[%s209 + $0x1c] sm:$0xf]
      %v231 = vld [vmem:[%s209 + $0x20] sm:$0xf]
      %v232 = vld [vmem:[%s209 + $0x24] sm:$0xf]
      %v233 = vld [vmem:[%s209 + $0x28] sm:$0xf]
      %v234 = vld [vmem:[%s209 + $0x2c] sm:$0xf]
      %v235 = vld [vmem:[%s209 + $0x30] sm:$0xf]
      %v236 = vld [vmem:[%s209 + $0x34] sm:$0xf]
      %v237 = vld [vmem:[%s209 + $0x38] sm:$0xf]
      %v238 = vld [vmem:[%s209 + $0x3c] sm:$0xf]
      %v239 = vunpack.c.l.bf16 %v223
      %v240 = vunpack.c.l.bf16 %v224
      %v241 = vunpack.c.l.bf16 %v225
      %v242 = vunpack.c.l.bf16 %v226
      %v243 = vunpack.c.l.bf16 %v227
      %v244 = vunpack.c.l.bf16 %v228
      %v245 = vunpack.c.l.bf16 %v229
      %v246 = vunpack.c.l.bf16 %v230
      %v247 = vunpack.c.l.bf16 %v231
      %v248 = vunpack.c.l.bf16 %v232
      %v249 = vunpack.c.l.bf16 %v233
      %v250 = vunpack.c.l.bf16 %v234
      %v251 = vunpack.c.l.bf16 %v235
      %v252 = vunpack.c.l.bf16 %v236
      %v253 = vunpack.c.l.bf16 %v237
      %v254 = vunpack.c.l.bf16 %v238
      %v255 = vld [vmem:[%s1] sm:$0x1]
      %v257 = vlaneseq
      %v258 = vshrl.u32 %v257, 7
      %v259 = vsub.s32 0, %v258
      %v260 = vrot.slane %v255, %v259
      %v262 = vmul.f32 %v239, %v260
      %v263 = vmul.f32 %v240, %v260
      %v264 = vmul.f32 %v241, %v260
      %v265 = vmul.f32 %v242, %v260
      %v266 = vmul.f32 %v243, %v260
      %v267 = vmul.f32 %v244, %v260
      %v268 = vmul.f32 %v245, %v260
      %v269 = vmul.f32 %v246, %v260
      %v270 = vmul.f32 %v247, %v260
      %v271 = vmul.f32 %v248, %v260
      %v272 = vmul.f32 %v249, %v260
      %v273 = vmul.f32 %v250, %v260
      %v274 = vmul.f32 %v251, %v260
      %v275 = vmul.f32 %v252, %v260
      %v276 = vmul.f32 %v253, %v260
      %v277 = vmul.f32 %v254, %v260
      %v278 = vld [vmem:[%s2] sm:$0x1]
      %v280 = vlaneseq
      %v281 = vshrl.u32 %v280, 7
      %v282 = vsub.s32 0, %v281
      %v283 = vrot.slane %v278, %v282
      %v285 = vadd.f32 %v262, %v283
      %v286 = vadd.f32 %v263, %v283
      %v287 = vadd.f32 %v264, %v283
      %v288 = vadd.f32 %v265, %v283
      %v289 = vadd.f32 %v266, %v283
      %v290 = vadd.f32 %v267, %v283
      %v291 = vadd.f32 %v268, %v283
      %v292 = vadd.f32 %v269, %v283
      %v293 = vadd.f32 %v270, %v283
      %v294 = vadd.f32 %v271, %v283
      %v295 = vadd.f32 %v272, %v283
      %v296 = vadd.f32 %v273, %v283
      %v297 = vadd.f32 %v274, %v283
      %v298 = vadd.f32 %v275, %v283
      %v299 = vadd.f32 %v276, %v283
      %v300 = vadd.f32 %v277, %v283
      %v301 = vld [vmem:[%s215] sm:$0xf]
      %v302 = vld [vmem:[%s215 + $0x4] sm:$0xf]
      %v303 = vld [vmem:[%s215 + $0x8] sm:$0xf]
      %v304 = vld [vmem:[%s215 + $0xc] sm:$0xf]
      %v305 = vld [vmem:[%s215 + $0x10] sm:$0xf]
      %v306 = vld [vmem:[%s215 + $0x14] sm:$0xf]
      %v307 = vld [vmem:[%s215 + $0x18] sm:$0xf]
      %v308 = vld [vmem:[%s215 + $0x1c] sm:$0xf]
      %v309 = vld [vmem:[%s215 + $0x20] sm:$0xf]
      %v310 = vld [vmem:[%s215 + $0x24] sm:$0xf]
      %v311 = vld [vmem:[%s215 + $0x28] sm:$0xf]
      %v312 = vld [vmem:[%s215 + $0x2c] sm:$0xf]
      %v313 = vld [vmem:[%s215 + $0x30] sm:$0xf]
      %v314 = vld [vmem:[%s215 + $0x34] sm:$0xf]
      %v315 = vld [vmem:[%s215 + $0x38] sm:$0xf]
      %v316 = vld [vmem:[%s215 + $0x3c] sm:$0xf]
      %v317 = vunpack.c.l.bf16 %v301
      %v318 = vunpack.c.l.bf16 %v302
      %v319 = vunpack.c.l.bf16 %v303
      %v320 = vunpack.c.l.bf16 %v304
      %v321 = vunpack.c.l.bf16 %v305
      %v322 = vunpack.c.l.bf16 %v306
      %v323 = vunpack.c.l.bf16 %v307
      %v324 = vunpack.c.l.bf16 %v308
      %v325 = vunpack.c.l.bf16 %v309
      %v326 = vunpack.c.l.bf16 %v310
      %v327 = vunpack.c.l.bf16 %v311
      %v328 = vunpack.c.l.bf16 %v312
      %v329 = vunpack.c.l.bf16 %v313
      %v330 = vunpack.c.l.bf16 %v314
      %v331 = vunpack.c.l.bf16 %v315
      %v332 = vunpack.c.l.bf16 %v316
      %v333 = vadd.f32 %v285, %v317
      %v334 = vadd.f32 %v286, %v318
      %v335 = vadd.f32 %v287, %v319
      %v336 = vadd.f32 %v288, %v320
      %v337 = vadd.f32 %v289, %v321
      %v338 = vadd.f32 %v290, %v322
      %v339 = vadd.f32 %v291, %v323
      %v340 = vadd.f32 %v292, %v324
      %v341 = vadd.f32 %v293, %v325
      %v342 = vadd.f32 %v294, %v326
      %v343 = vadd.f32 %v295, %v327
      %v344 = vadd.f32 %v296, %v328
      %v345 = vadd.f32 %v297, %v329
      %v346 = vadd.f32 %v298, %v330
      %v347 = vadd.f32 %v299, %v331
      %v348 = vadd.f32 %v300, %v332
      %v349 = vmax.f32 %v333, 0.0
      %v350 = vmax.f32 %v334, 0.0
      %v351 = vmax.f32 %v335, 0.0
      %v352 = vmax.f32 %v336, 0.0
      %v353 = vmax.f32 %v337, 0.0
      %v354 = vmax.f32 %v338, 0.0
      %v355 = vmax.f32 %v339, 0.0
      %v356 = vmax.f32 %v340, 0.0
      %v357 = vmax.f32 %v341, 0.0
      %v358 = vmax.f32 %v342, 0.0
      %v359 = vmax.f32 %v343, 0.0
      %v360 = vmax.f32 %v344, 0.0
      %v361 = vmax.f32 %v345, 0.0
      %v362 = vmax.f32 %v346, 0.0
      %v363 = vmax.f32 %v347, 0.0
      %v364 = vmax.f32 %v348, 0.0
      %v365 = vpack.c.bf16 %v350, %v349
      %v366 = vpack.c.bf16 %v352, %v351
      %v367 = vpack.c.bf16 %v354, %v353
      %v368 = vpack.c.bf16 %v356, %v355
      %v369 = vpack.c.bf16 %v358, %v357
      %v370 = vpack.c.bf16 %v360, %v359
      %v371 = vpack.c.bf16 %v362, %v361
      %v372 = vpack.c.bf16 %v364, %v363
      %v381 = vunpack.c.l.b16 %v365
      %v382 = vunpack.c.h.b16 %v365
      %v383 = vunpack.c.l.b16 %v366
      %v384 = vunpack.c.h.b16 %v366
      %v385 = vunpack.c.l.b16 %v367
      %v386 = vunpack.c.h.b16 %v367
      %v387 = vunpack.c.l.b16 %v368
      %v388 = vunpack.c.h.b16 %v368
      %v389 = vunpack.c.l.b16 %v369
      %v390 = vunpack.c.h.b16 %v369
      %v391 = vunpack.c.l.b16 %v370
      %v392 = vunpack.c.h.b16 %v370
      %v393 = vunpack.c.l.b16 %v371
      %v394 = vunpack.c.h.b16 %v371
      %v395 = vunpack.c.l.b16 %v372
      %v396 = vunpack.c.h.b16 %v372
      %v397 = vpack.c.b16 %v381, %v381
      %v398 = vpack.c.b16 %v382, %v382
      %v399 = vpack.c.b16 %v383, %v383
      %v400 = vpack.c.b16 %v384, %v384
      %v401 = vpack.c.b16 %v385, %v385
      %v402 = vpack.c.b16 %v386, %v386
      %v403 = vpack.c.b16 %v387, %v387
      %v404 = vpack.c.b16 %v388, %v388
      %v405 = vpack.c.b16 %v389, %v389
      %v406 = vpack.c.b16 %v390, %v390
      %v407 = vpack.c.b16 %v391, %v391
      %v408 = vpack.c.b16 %v392, %v392
      %v409 = vpack.c.b16 %v393, %v393
      %v410 = vpack.c.b16 %v394, %v394
      %v411 = vpack.c.b16 %v395, %v395
      %v412 = vpack.c.b16 %v396, %v396
      %429 = vst [vmem:[%s221] sm:$0xf] %v397
      %430 = vst [vmem:[%s221 + $0x4] sm:$0xf] %v398
      %431 = vst [vmem:[%s221 + $0x8] sm:$0xf] %v399
      %432 = vst [vmem:[%s221 + $0xc] sm:$0xf] %v400
      %433 = vst [vmem:[%s221 + $0x10] sm:$0xf] %v401
      %434 = vst [vmem:[%s221 + $0x14] sm:$0xf] %v402
      %435 = vst [vmem:[%s221 + $0x18] sm:$0xf] %v403
      %436 = vst [vmem:[%s221 + $0x1c] sm:$0xf] %v404
      %437 = vst [vmem:[%s221 + $0x20] sm:$0xf] %v405
      %438 = vst [vmem:[%s221 + $0x24] sm:$0xf] %v406
      %439 = vst [vmem:[%s221 + $0x28] sm:$0xf] %v407
      %440 = vst [vmem:[%s221 + $0x2c] sm:$0xf] %v408
      %441 = vst [vmem:[%s221 + $0x30] sm:$0xf] %v409
      %442 = vst [vmem:[%s221 + $0x34] sm:$0xf] %v410
      %443 = vst [vmem:[%s221 + $0x38] sm:$0xf] %v411
      %444 = vst [vmem:[%s221 + $0x3c] sm:$0xf] %v412
      %s445 = smul.u32 16, %s15
      %p446 = scmp.lt.s32.totalorder %s445, 127
      %s447 = scalar_select %p446, %s445, 127
      %s448 = smul.addr %s447, 4
      %s449 = scalar_lea.vmem %s4, %s448
      // Predicated region
      $region37: #{deform_basic_block.11} parent=35 // pred_check
        %p450 = pneg %p127
      $region38: #{deform_basic_block.11} parent=35 // pred_check_branch
        %452 = sbr.rel (%p450) target = $region40
      $region39: #{deform_basic_block.11} parent=35 // pred_region
        %s453 = smul.u32 16, %s15
      $region40: #{deform_basic_block.11} parent=35 // pred_fallthru
        _
    $region36: #{deform_basic_block.11} parent=5 // pred_fallthru
      _
    %p454 = scmp.le.s32.totalorder 2, %s10
    // Predicated region
    $region41: #{deform_basic_block.11} parent=5 // pred_check
      %p455 = pneg %p454
    $region42: #{deform_basic_block.11} parent=5 // pred_check_branch
      %457 = sbr.rel (%p455) target = $region44
    $region43: #{deform_basic_block.11} parent=5 // pred_region
      %s458 = ssub.s32 %s10, 2
      // Predicated region
      $region45: #{deform_basic_block.11} parent=43 // pred_check
        %p459 = pneg %p133
      $region46: #{deform_basic_block.11} parent=43 // pred_check_branch
        %461 = sbr.rel (%p459) target = $region48
      $region47: #{deform_basic_block.11} parent=43 // pred_region
        %s462 = smul.u32 16, %s16
        %p463 = scmp.lt.s32.totalorder %s462, 127
        %s464 = scalar_select %p463, %s462, 127
        %s465 = smul.addr %s464, 4
        %s466 = scalar_lea.vmem %s4, %s465
      $region48: #{deform_basic_block.11} parent=43 // pred_fallthru
        _
    $region44: #{deform_basic_block.11} parent=5 // pred_fallthru
      _
  $region6: #{deform_basic_block.11} parent=0 // loop_footer
    %s14 = sadd.s32 1, %s10
  $region7: #{deform_basic_block.11} parent=0 // loop_footer_branch
    %9 = sbr.rel target = $region3
  $region8: #{deform_basic_block.11} parent=0 // loop_exit
    _

</llo_original>
